<compile_context>
chip_gen: v7x
topology: tpu7x:2x2x1
jax: 0.10.0
libtpu: 0.0.40
codegen_flags: <defaults>
</compile_context>

<pallas_src>
import functools

import jax
import jax.numpy as jnp
from jax.experimental import pallas as pl
from jax.experimental.pallas import tpu as pltpu


# ----------------------------------------------------------------------------
# Fused forward kernel (whole network in one kernel body)
# ----------------------------------------------------------------------------
def _make_fused_kernel(n_enc, n_dec, batch):
    """Build the fused kernel for a fixed (n_encoders, n_decoders, batch)."""

    def kernel(*refs):
        # refs = [x, t, init_w, init_b, emb,
        #         enc0(8), enc1(8), ..., mid_w, mid_b,
        #         dec0(8), dec1(8), ..., fin_w, fin_b, out]
        x_ref, t_ref = refs[0], refs[1]
        out_ref = refs[-1]
        p = list(refs[2:-1])

        idx = 0

        def take(n):
            nonlocal idx
            r = tuple(p[idx:idx + n])
            idx += n
            return r

        init_w, init_b = take(2)
        (emb_ref,) = take(1)
        encs = [take(8) for _ in range(n_enc)]
        mid_w, mid_b = take(2)
        decs = [take(8) for _ in range(n_dec)]
        fin_w, fin_b = take(2)

        # ---- helpers (all values stay in VMEM/vregs) -------------------
        def linear(v, w_ref, b_ref):
            return (jnp.dot(v, w_ref[...], preferred_element_type=jnp.float32)
                    + b_ref[...])

        def inorm_lrelu(z):
            # InstanceNorm1d on a 2D (B, F) tensor == per-row normalization
            # over features, biased variance, eps=1e-5, no affine.
            mean = jnp.mean(z, axis=-1, keepdims=True)
            cz = z - mean
            var = jnp.mean(cz * cz, axis=-1, keepdims=True)
            zn = cz * jax.lax.rsqrt(var + 1e-5)
            return jnp.maximum(zn, 0.2 * zn)          # LeakyReLU(0.2)

        def fc_block(v, w_ref, b_ref):
            return inorm_lrelu(linear(v, w_ref, b_ref))

        def silu(v):
            return v * jax.nn.sigmoid(v)

        def time_mlp(v, t_emb, w1, b1, w2, b2):
            h = silu(linear(t_emb, w1, b1))
            return silu(v + linear(h, w2, b2))

        # ---- in-kernel nn.Embedding lookup (one-hot matmul) ------------
        T = emb_ref.shape[0]
        col = jax.lax.broadcasted_iota(jnp.int32, (batch, T), 1)
        row = jax.lax.broadcasted_iota(jnp.int32, (batch, T), 0)
        onehot = jnp.zeros((batch, T), jnp.float32)
        for i in range(batch):
            ti = t_ref[i]                              # scalar read from SMEM
            onehot = jnp.where((row == i) & (col == ti), 1.0, onehot)
        t_emb = jnp.dot(onehot, emb_ref[...],
                        preferred_element_type=jnp.float32)   # (B, E)

        # ---- forward pass ----------------------------------------------
        x = fc_block(x_ref[...], init_w, init_b)

        shortcuts = []
        for (c0w, c0b, tw1, tb1, tw2, tb2, c1w, c1b) in encs:
            sc = fc_block(x, c0w, c0b)                 # x_shortcut = conv0(x)
            x = time_mlp(sc, t_emb, tw1, tb1, tw2, tb2)
            x = fc_block(x, c1w, c1b)                  # conv1
            shortcuts.append(sc)

        x = fc_block(x, mid_w, mid_b)                  # mid block

        for (c0w, c0b, tw1, tb1, tw2, tb2, c1w, c1b), sc in zip(
                decs, shortcuts[::-1]):
            # cat([x, sc], dim=1) @ W  ==  x @ W_top + sc @ W_bot  (no concat)
            fx = x.shape[1]
            fs = c0w.shape[0] - fx
            z = (jnp.dot(x, c0w[pl.ds(0, fx), :],
                         preferred_element_type=jnp.float32)
                 + jnp.dot(sc, c0w[pl.ds(fx, fs), :],
                           preferred_element_type=jnp.float32)
                 + c0b[...])
            x = inorm_lrelu(z)
            x = time_mlp(x, t_emb, tw1, tb1, tw2, tb2)
            x = fc_block(x, c1w, c1b)

        out_ref[...] = fc_block(x, fin_w, fin_b)       # final_FC

    return kernel


# ----------------------------------------------------------------------------
# Deterministic parameter construction (synthetic init, PyTorch-like scaling)
# ----------------------------------------------------------------------------
def _linear_params(key, fan_in, fan_out):
    kw, kb = jax.random.split(key)
    bound = 1.0 / float(fan_in) ** 0.5
    w = jax.random.uniform(kw, (fan_in, fan_out), jnp.float32, -bound, bound)
    b = jax.random.uniform(kb, (1, fan_out), jnp.float32, -bound, bound)
    return w, b


def _time_mlp_params(key, emb_dim, hidden_dim, out_dim):
    k1, k2 = jax.random.split(key)
    w1, b1 = _linear_params(k1, emb_dim, hidden_dim)
    w2, b2 = _linear_params(k2, hidden_dim, out_dim)
    return (w1, b1, w2, b2)


def _cal_channels(bottleneck_dim, n_layers):
    dims = [bottleneck_dim * 2 ** i for i in range(n_layers + 1)][::-1]
    return [(dims[i], dims[i + 1]) for i in range(len(dims) - 1)]


def init_fc_params(key, im_size, timesteps, time_embedding_dim,
                   in_channels=3, out_channels=2, bottleneck_dim=32, n_layers=2):
    in_dim = in_channels * im_size ** 2
    channels = _cal_channels(bottleneck_dim, n_layers)

    keys = jax.random.split(key, 4 + 2 * len(channels))
    ki = iter(keys)

    params = {}
    params["init_FC"] = _linear_params(next(ki), in_dim, channels[0][0])
    params["time_embedding"] = jax.random.normal(
        next(ki), (timesteps, time_embedding_dim), jnp.float32)

    encoders = []
    for (c_in, c_out) in channels:
        k = jax.random.split(next(ki), 3)
        encoders.append({
            "conv0": _linear_params(k[0], c_in, c_out // 2),
            "time_mlp": _time_mlp_params(k[1], time_embedding_dim, c_out, c_out // 2),
            "conv1": _linear_params(k[2], c_out // 2, c_out),
        })
    params["encoders"] = encoders

    decoders = []
    for (c_out, c_in) in channels[::-1]:  # DecoderBlock(c[1], c[0]) for c reversed
        k = jax.random.split(next(ki), 3)
        decoders.append({
            "conv0": _linear_params(k[0], c_in, c_in // 2),
            "time_mlp": _time_mlp_params(k[1], time_embedding_dim, c_in, c_in // 2),
            "conv1": _linear_params(k[2], c_in // 2, c_out // 2),
        })
    params["decoders"] = decoders

    params["mid"] = _linear_params(next(ki), channels[-1][1], channels[-1][1] // 2)
    params["final_FC"] = _linear_params(
        next(ki), channels[0][0] // 2, out_channels * im_size ** 2)
    return params


def _flatten_params(params):
    """Flatten params into the exact operand order the fused kernel expects."""
    flat = []
    flat += list(params["init_FC"])
    flat.append(params["time_embedding"])
    for enc in params["encoders"]:
        flat += list(enc["conv0"]) + list(enc["time_mlp"]) + list(enc["conv1"])
    flat += list(params["mid"])
    for dec in params["decoders"]:
        flat += list(dec["conv0"]) + list(dec["time_mlp"]) + list(dec["conv1"])
    flat += list(params["final_FC"])
    return flat


# ----------------------------------------------------------------------------
# Forward pass: one fused pallas_call (mirrors FC.forward with t provided)
# ----------------------------------------------------------------------------
def fc_forward(params, x, t):
    b, c, h, w = x.shape
    x2 = x.reshape(b, -1)                              # (B, C*H*W) glue
    flat = _flatten_params(params)
    n_enc = len(params["encoders"])
    n_dec = len(params["decoders"])
    out_dim = params["final_FC"][0].shape[1]

    kernel = _make_fused_kernel(n_enc, n_dec, b)

    vmem_spec = pl.BlockSpec(memory_space=pltpu.MemorySpace.VMEM)
    smem_spec = pl.BlockSpec(memory_space=pltpu.MemorySpace.SMEM)
    in_specs = [vmem_spec, smem_spec] + [vmem_spec] * len(flat)

    out = pl.pallas_call(
        kernel,
        out_shape=jax.ShapeDtypeStruct((b, out_dim), jnp.float32),
        in_specs=in_specs,
        out_specs=vmem_spec,
        compiler_params=pltpu.CompilerParams(
            # explicit (generous) VMEM budget; total resident weights < 1 MiB
            vmem_limit_bytes=32 * 1024 * 1024,
        ),
    )(x2, t.astype(jnp.int32), *flat)

    return out.reshape(b, -1, h, w)


# ----------------------------------------------------------------------------
if __name__ == "__main__":
    # small shapes consistent with the module defaults
    B, IN_CH, OUT_CH = 2, 3, 2
    IM_SIZE = 4
    TIMESTEPS = 16
    TIME_EMB_DIM = 8
    BOTTLENECK_DIM = 32
    N_LAYERS = 2

    key = jax.random.PRNGKey(0)
    kp, kx, kt = jax.random.split(key, 3)

    params = init_fc_params(kp, IM_SIZE, TIMESTEPS, TIME_EMB_DIM,
                            in_channels=IN_CH, out_channels=OUT_CH,
                            bottleneck_dim=BOTTLENECK_DIM, n_layers=N_LAYERS)

    x = jax.random.normal(kx, (B, IN_CH, IM_SIZE, IM_SIZE), jnp.float32)
    t = jax.random.randint(kt, (B,), 0, TIMESTEPS)

    fwd = jax.jit(functools.partial(fc_forward, params))
    out = fwd(x, t)
    jax.block_until_ready(out)

    assert out.shape == (B, OUT_CH, IM_SIZE, IM_SIZE), out.shape
    assert jnp.all(jnp.isfinite(out))
    print("KERNEL_OK")
</pallas_src>

<mosaic_0001>
module attributes {stable_mosaic.version = 11 : i64} {
  func.func @kernel(%arg0: memref<2x48xf32, #tpu.memory_space<vmem>>, %arg1: memref<2xi32, #tpu.memory_space<smem>>, %arg2: memref<48x128xf32, #tpu.memory_space<vmem>>, %arg3: memref<1x128xf32, #tpu.memory_space<vmem>>, %arg4: memref<16x8xf32, #tpu.memory_space<vmem>>, %arg5: memref<128x32xf32, #tpu.memory_space<vmem>>, %arg6: memref<1x32xf32, #tpu.memory_space<vmem>>, %arg7: memref<8x64xf32, #tpu.memory_space<vmem>>, %arg8: memref<1x64xf32, #tpu.memory_space<vmem>>, %arg9: memref<64x32xf32, #tpu.memory_space<vmem>>, %arg10: memref<1x32xf32, #tpu.memory_space<vmem>>, %arg11: memref<32x64xf32, #tpu.memory_space<vmem>>, %arg12: memref<1x64xf32, #tpu.memory_space<vmem>>, %arg13: memref<64x16xf32, #tpu.memory_space<vmem>>, %arg14: memref<1x16xf32, #tpu.memory_space<vmem>>, %arg15: memref<8x32xf32, #tpu.memory_space<vmem>>, %arg16: memref<1x32xf32, #tpu.memory_space<vmem>>, %arg17: memref<32x16xf32, #tpu.memory_space<vmem>>, %arg18: memref<1x16xf32, #tpu.memory_space<vmem>>, %arg19: memref<16x32xf32, #tpu.memory_space<vmem>>, %arg20: memref<1x32xf32, #tpu.memory_space<vmem>>, %arg21: memref<32x16xf32, #tpu.memory_space<vmem>>, %arg22: memref<1x16xf32, #tpu.memory_space<vmem>>, %arg23: memref<32x16xf32, #tpu.memory_space<vmem>>, %arg24: memref<1x16xf32, #tpu.memory_space<vmem>>, %arg25: memref<8x32xf32, #tpu.memory_space<vmem>>, %arg26: memref<1x32xf32, #tpu.memory_space<vmem>>, %arg27: memref<32x16xf32, #tpu.memory_space<vmem>>, %arg28: memref<1x16xf32, #tpu.memory_space<vmem>>, %arg29: memref<16x32xf32, #tpu.memory_space<vmem>>, %arg30: memref<1x32xf32, #tpu.memory_space<vmem>>, %arg31: memref<64x32xf32, #tpu.memory_space<vmem>>, %arg32: memref<1x32xf32, #tpu.memory_space<vmem>>, %arg33: memref<8x64xf32, #tpu.memory_space<vmem>>, %arg34: memref<1x64xf32, #tpu.memory_space<vmem>>, %arg35: memref<64x32xf32, #tpu.memory_space<vmem>>, %arg36: memref<1x32xf32, #tpu.memory_space<vmem>>, %arg37: memref<32x64xf32, #tpu.memory_space<vmem>>, %arg38: memref<1x64xf32, #tpu.memory_space<vmem>>, %arg39: memref<64x32xf32, #tpu.memory_space<vmem>>, %arg40: memref<1x32xf32, #tpu.memory_space<vmem>>, %arg41: memref<2x32xf32, #tpu.memory_space<vmem>>) attributes {dimension_semantics = [], scalar_prefetch = 0 : i64, scratch_operands = 0 : i64, tpu.core_type = #tpu.core_type<tc>} {
    %0 = tpu.iota {dimensions = array<i32: 1>} : vector<2x16xi32>
    %1 = tpu.iota {dimensions = array<i32: 0>} : vector<2x16xi32>
    %cst = arith.constant 0.000000e+00 : f32
    %2 = vector.broadcast %cst : f32 to vector<2x16xf32>
    %c0 = arith.constant 0 : index
    %3 = memref.load %arg1[%c0] : memref<2xi32, #tpu.memory_space<smem>>
    %c0_i32 = arith.constant 0 : i32
    %4 = vector.broadcast %c0_i32 : i32 to vector<2x16xi32>
    %5 = arith.cmpi eq, %1, %4 : vector<2x16xi32>
    %6 = vector.broadcast %3 : i32 to vector<2x16xi32>
    %7 = arith.cmpi eq, %0, %6 : vector<2x16xi32>
    %8 = arith.andi %5, %7 : vector<2x16xi1>
    %cst_0 = arith.constant 1.000000e+00 : f32
    %9 = vector.broadcast %cst_0 : f32 to vector<2x16xf32>
    %10 = arith.select %8, %9, %2 : vector<2x16xi1>, vector<2x16xf32>
    %c1 = arith.constant 1 : index
    %11 = memref.load %arg1[%c1] : memref<2xi32, #tpu.memory_space<smem>>
    %c1_i32 = arith.constant 1 : i32
    %12 = vector.broadcast %c1_i32 : i32 to vector<2x16xi32>
    %13 = arith.cmpi eq, %1, %12 : vector<2x16xi32>
    %14 = vector.broadcast %11 : i32 to vector<2x16xi32>
    %15 = arith.cmpi eq, %0, %14 : vector<2x16xi32>
    %16 = arith.andi %13, %15 : vector<2x16xi1>
    %cst_1 = arith.constant 1.000000e+00 : f32
    %17 = vector.broadcast %cst_1 : f32 to vector<2x16xf32>
    %18 = arith.select %16, %17, %10 : vector<2x16xi1>, vector<2x16xf32>
    %c0_2 = arith.constant 0 : index
    %c0_3 = arith.constant 0 : index
    %19 = vector.load %arg4[%c0_2, %c0_3] : memref<16x8xf32, #tpu.memory_space<vmem>>, vector<16x8xf32>
    %cst_4 = arith.constant dense<0.000000e+00> : vector<2x8xf32>
    %20 = tpu.matmul %18, %19, %cst_4 {dimension_numbers = #tpu.dot_dimension_numbers<[1], [0], [0], [1], [0, 0, 1, 1], [], []>} : vector<2x16xf32>, vector<16x8xf32>, vector<2x8xf32> -> vector<2x8xf32>
    %c0_5 = arith.constant 0 : index
    %c0_6 = arith.constant 0 : index
    %21 = vector.load %arg0[%c0_5, %c0_6] : memref<2x48xf32, #tpu.memory_space<vmem>>, vector<2x48xf32>
    %c0_7 = arith.constant 0 : index
    %c0_8 = arith.constant 0 : index
    %22 = vector.load %arg2[%c0_7, %c0_8] : memref<48x128xf32, #tpu.memory_space<vmem>>, vector<48x128xf32>
    %cst_9 = arith.constant dense<0.000000e+00> : vector<2x128xf32>
    %23 = tpu.matmul %21, %22, %cst_9 {dimension_numbers = #tpu.dot_dimension_numbers<[1], [0], [0], [1], [0, 0, 1, 1], [], []>} : vector<2x48xf32>, vector<48x128xf32>, vector<2x128xf32> -> vector<2x128xf32>
    %c0_10 = arith.constant 0 : index
    %c0_11 = arith.constant 0 : index
    %24 = vector.load %arg3[%c0_10, %c0_11] : memref<1x128xf32, #tpu.memory_space<vmem>>, vector<1x128xf32>
    %25 = vector.broadcast %24 : vector<1x128xf32> to vector<2x128xf32>
    %26 = arith.addf %23, %25 : vector<2x128xf32>
    %cst_12 = arith.constant dense<0.000000e+00> : vector<2xf32>
    %27 = vector.multi_reduction <add>, %26, %cst_12 [1] : vector<2x128xf32> to vector<2xf32>
    %28 = vector.shape_cast %27 : vector<2xf32> to vector<2x1xf32>
    %cst_13 = arith.constant 1.280000e+02 : f32
    %29 = vector.broadcast %cst_13 : f32 to vector<2x1xf32>
    %30 = arith.divf %28, %29 : vector<2x1xf32>
    %31 = vector.broadcast %30 : vector<2x1xf32> to vector<2x128xf32>
    %32 = arith.subf %26, %31 : vector<2x128xf32>
    %33 = arith.mulf %32, %32 : vector<2x128xf32>
    %cst_14 = arith.constant dense<0.000000e+00> : vector<2xf32>
    %34 = vector.multi_reduction <add>, %33, %cst_14 [1] : vector<2x128xf32> to vector<2xf32>
    %35 = vector.shape_cast %34 : vector<2xf32> to vector<2x1xf32>
    %cst_15 = arith.constant 1.280000e+02 : f32
    %36 = vector.broadcast %cst_15 : f32 to vector<2x1xf32>
    %37 = arith.divf %35, %36 : vector<2x1xf32>
    %cst_16 = arith.constant 9.99999974E-6 : f32
    %38 = vector.broadcast %cst_16 : f32 to vector<2x1xf32>
    %39 = arith.addf %37, %38 : vector<2x1xf32>
    %40 = math.rsqrt %39 : vector<2x1xf32>
    %41 = vector.broadcast %40 : vector<2x1xf32> to vector<2x128xf32>
    %42 = arith.mulf %32, %41 : vector<2x128xf32>
    %cst_17 = arith.constant 2.000000e-01 : f32
    %43 = vector.broadcast %cst_17 : f32 to vector<2x128xf32>
    %44 = arith.mulf %43, %42 : vector<2x128xf32>
    %45 = arith.maximumf %42, %44 : vector<2x128xf32>
    %c0_18 = arith.constant 0 : index
    %c0_19 = arith.constant 0 : index
    %46 = vector.load %arg5[%c0_18, %c0_19] : memref<128x32xf32, #tpu.memory_space<vmem>>, vector<128x32xf32>
    %cst_20 = arith.constant dense<0.000000e+00> : vector<2x32xf32>
    %47 = tpu.matmul %45, %46, %cst_20 {dimension_numbers = #tpu.dot_dimension_numbers<[1], [0], [0], [1], [0, 0, 1, 1], [], []>} : vector<2x128xf32>, vector<128x32xf32>, vector<2x32xf32> -> vector<2x32xf32>
    %c0_21 = arith.constant 0 : index
    %c0_22 = arith.constant 0 : index
    %48 = vector.load %arg6[%c0_21, %c0_22] : memref<1x32xf32, #tpu.memory_space<vmem>>, vector<1x32xf32>
    %49 = vector.broadcast %48 : vector<1x32xf32> to vector<2x32xf32>
    %50 = arith.addf %47, %49 : vector<2x32xf32>
    %cst_23 = arith.constant dense<0.000000e+00> : vector<2xf32>
    %51 = vector.multi_reduction <add>, %50, %cst_23 [1] : vector<2x32xf32> to vector<2xf32>
    %52 = vector.shape_cast %51 : vector<2xf32> to vector<2x1xf32>
    %cst_24 = arith.constant 3.200000e+01 : f32
    %53 = vector.broadcast %cst_24 : f32 to vector<2x1xf32>
    %54 = arith.divf %52, %53 : vector<2x1xf32>
    %55 = vector.broadcast %54 : vector<2x1xf32> to vector<2x32xf32>
    %56 = arith.subf %50, %55 : vector<2x32xf32>
    %57 = arith.mulf %56, %56 : vector<2x32xf32>
    %cst_25 = arith.constant dense<0.000000e+00> : vector<2xf32>
    %58 = vector.multi_reduction <add>, %57, %cst_25 [1] : vector<2x32xf32> to vector<2xf32>
    %59 = vector.shape_cast %58 : vector<2xf32> to vector<2x1xf32>
    %cst_26 = arith.constant 3.200000e+01 : f32
    %60 = vector.broadcast %cst_26 : f32 to vector<2x1xf32>
    %61 = arith.divf %59, %60 : vector<2x1xf32>
    %cst_27 = arith.constant 9.99999974E-6 : f32
    %62 = vector.broadcast %cst_27 : f32 to vector<2x1xf32>
    %63 = arith.addf %61, %62 : vector<2x1xf32>
    %64 = math.rsqrt %63 : vector<2x1xf32>
    %65 = vector.broadcast %64 : vector<2x1xf32> to vector<2x32xf32>
    %66 = arith.mulf %56, %65 : vector<2x32xf32>
    %cst_28 = arith.constant 2.000000e-01 : f32
    %67 = vector.broadcast %cst_28 : f32 to vector<2x32xf32>
    %68 = arith.mulf %67, %66 : vector<2x32xf32>
    %69 = arith.maximumf %66, %68 : vector<2x32xf32>
    %c0_29 = arith.constant 0 : index
    %c0_30 = arith.constant 0 : index
    %70 = vector.load %arg7[%c0_29, %c0_30] : memref<8x64xf32, #tpu.memory_space<vmem>>, vector<8x64xf32>
    %cst_31 = arith.constant dense<0.000000e+00> : vector<2x64xf32>
    %71 = tpu.matmul %20, %70, %cst_31 {dimension_numbers = #tpu.dot_dimension_numbers<[1], [0], [0], [1], [0, 0, 1, 1], [], []>} : vector<2x8xf32>, vector<8x64xf32>, vector<2x64xf32> -> vector<2x64xf32>
    %c0_32 = arith.constant 0 : index
    %c0_33 = arith.constant 0 : index
    %72 = vector.load %arg8[%c0_32, %c0_33] : memref<1x64xf32, #tpu.memory_space<vmem>>, vector<1x64xf32>
    %73 = vector.broadcast %72 : vector<1x64xf32> to vector<2x64xf32>
    %74 = arith.addf %71, %73 : vector<2x64xf32>
    %75 = arith.negf %74 : vector<2x64xf32>
    %76 = math.exp %75 : vector<2x64xf32>
    %cst_34 = arith.constant 1.000000e+00 : f32
    %77 = vector.broadcast %cst_34 : f32 to vector<2x64xf32>
    %78 = arith.addf %77, %76 : vector<2x64xf32>
    %79 = arith.divf %77, %78 : vector<2x64xf32>
    %80 = arith.mulf %74, %79 : vector<2x64xf32>
    %c0_35 = arith.constant 0 : index
    %c0_36 = arith.constant 0 : index
    %81 = vector.load %arg9[%c0_35, %c0_36] : memref<64x32xf32, #tpu.memory_space<vmem>>, vector<64x32xf32>
    %cst_37 = arith.constant dense<0.000000e+00> : vector<2x32xf32>
    %82 = tpu.matmul %80, %81, %cst_37 {dimension_numbers = #tpu.dot_dimension_numbers<[1], [0], [0], [1], [0, 0, 1, 1], [], []>} : vector<2x64xf32>, vector<64x32xf32>, vector<2x32xf32> -> vector<2x32xf32>
    %c0_38 = arith.constant 0 : index
    %c0_39 = arith.constant 0 : index
    %83 = vector.load %arg10[%c0_38, %c0_39] : memref<1x32xf32, #tpu.memory_space<vmem>>, vector<1x32xf32>
    %84 = vector.broadcast %83 : vector<1x32xf32> to vector<2x32xf32>
    %85 = arith.addf %82, %84 : vector<2x32xf32>
    %86 = arith.addf %69, %85 : vector<2x32xf32>
    %87 = arith.negf %86 : vector<2x32xf32>
    %88 = math.exp %87 : vector<2x32xf32>
    %cst_40 = arith.constant 1.000000e+00 : f32
    %89 = vector.broadcast %cst_40 : f32 to vector<2x32xf32>
    %90 = arith.addf %89, %88 : vector<2x32xf32>
    %91 = arith.divf %89, %90 : vector<2x32xf32>
    %92 = arith.mulf %86, %91 : vector<2x32xf32>
    %c0_41 = arith.constant 0 : index
    %c0_42 = arith.constant 0 : index
    %93 = vector.load %arg11[%c0_41, %c0_42] : memref<32x64xf32, #tpu.memory_space<vmem>>, vector<32x64xf32>
    %cst_43 = arith.constant dense<0.000000e+00> : vector<2x64xf32>
    %94 = tpu.matmul %92, %93, %cst_43 {dimension_numbers = #tpu.dot_dimension_numbers<[1], [0], [0], [1], [0, 0, 1, 1], [], []>} : vector<2x32xf32>, vector<32x64xf32>, vector<2x64xf32> -> vector<2x64xf32>
    %c0_44 = arith.constant 0 : index
    %c0_45 = arith.constant 0 : index
    %95 = vector.load %arg12[%c0_44, %c0_45] : memref<1x64xf32, #tpu.memory_space<vmem>>, vector<1x64xf32>
    %96 = vector.broadcast %95 : vector<1x64xf32> to vector<2x64xf32>
    %97 = arith.addf %94, %96 : vector<2x64xf32>
    %cst_46 = arith.constant dense<0.000000e+00> : vector<2xf32>
    %98 = vector.multi_reduction <add>, %97, %cst_46 [1] : vector<2x64xf32> to vector<2xf32>
    %99 = vector.shape_cast %98 : vector<2xf32> to vector<2x1xf32>
    %cst_47 = arith.constant 6.400000e+01 : f32
    %100 = vector.broadcast %cst_47 : f32 to vector<2x1xf32>
    %101 = arith.divf %99, %100 : vector<2x1xf32>
    %102 = vector.broadcast %101 : vector<2x1xf32> to vector<2x64xf32>
    %103 = arith.subf %97, %102 : vector<2x64xf32>
    %104 = arith.mulf %103, %103 : vector<2x64xf32>
    %cst_48 = arith.constant dense<0.000000e+00> : vector<2xf32>
    %105 = vector.multi_reduction <add>, %104, %cst_48 [1] : vector<2x64xf32> to vector<2xf32>
    %106 = vector.shape_cast %105 : vector<2xf32> to vector<2x1xf32>
    %cst_49 = arith.constant 6.400000e+01 : f32
    %107 = vector.broadcast %cst_49 : f32 to vector<2x1xf32>
    %108 = arith.divf %106, %107 : vector<2x1xf32>
    %cst_50 = arith.constant 9.99999974E-6 : f32
    %109 = vector.broadcast %cst_50 : f32 to vector<2x1xf32>
    %110 = arith.addf %108, %109 : vector<2x1xf32>
    %111 = math.rsqrt %110 : vector<2x1xf32>
    %112 = vector.broadcast %111 : vector<2x1xf32> to vector<2x64xf32>
    %113 = arith.mulf %103, %112 : vector<2x64xf32>
    %cst_51 = arith.constant 2.000000e-01 : f32
    %114 = vector.broadcast %cst_51 : f32 to vector<2x64xf32>
    %115 = arith.mulf %114, %113 : vector<2x64xf32>
    %116 = arith.maximumf %113, %115 : vector<2x64xf32>
    %c0_52 = arith.constant 0 : index
    %c0_53 = arith.constant 0 : index
    %117 = vector.load %arg13[%c0_52, %c0_53] : memref<64x16xf32, #tpu.memory_space<vmem>>, vector<64x16xf32>
    %cst_54 = arith.constant dense<0.000000e+00> : vector<2x16xf32>
    %118 = tpu.matmul %116, %117, %cst_54 {dimension_numbers = #tpu.dot_dimension_numbers<[1], [0], [0], [1], [0, 0, 1, 1], [], []>} : vector<2x64xf32>, vector<64x16xf32>, vector<2x16xf32> -> vector<2x16xf32>
    %c0_55 = arith.constant 0 : index
    %c0_56 = arith.constant 0 : index
    %119 = vector.load %arg14[%c0_55, %c0_56] : memref<1x16xf32, #tpu.memory_space<vmem>>, vector<1x16xf32>
    %120 = vector.broadcast %119 : vector<1x16xf32> to vector<2x16xf32>
    %121 = arith.addf %118, %120 : vector<2x16xf32>
    %cst_57 = arith.constant dense<0.000000e+00> : vector<2xf32>
    %122 = vector.multi_reduction <add>, %121, %cst_57 [1] : vector<2x16xf32> to vector<2xf32>
    %123 = vector.shape_cast %122 : vector<2xf32> to vector<2x1xf32>
    %cst_58 = arith.constant 1.600000e+01 : f32
    %124 = vector.broadcast %cst_58 : f32 to vector<2x1xf32>
    %125 = arith.divf %123, %124 : vector<2x1xf32>
    %126 = vector.broadcast %125 : vector<2x1xf32> to vector<2x16xf32>
    %127 = arith.subf %121, %126 : vector<2x16xf32>
    %128 = arith.mulf %127, %127 : vector<2x16xf32>
    %cst_59 = arith.constant dense<0.000000e+00> : vector<2xf32>
    %129 = vector.multi_reduction <add>, %128, %cst_59 [1] : vector<2x16xf32> to vector<2xf32>
    %130 = vector.shape_cast %129 : vector<2xf32> to vector<2x1xf32>
    %cst_60 = arith.constant 1.600000e+01 : f32
    %131 = vector.broadcast %cst_60 : f32 to vector<2x1xf32>
    %132 = arith.divf %130, %131 : vector<2x1xf32>
    %cst_61 = arith.constant 9.99999974E-6 : f32
    %133 = vector.broadcast %cst_61 : f32 to vector<2x1xf32>
    %134 = arith.addf %132, %133 : vector<2x1xf32>
    %135 = math.rsqrt %134 : vector<2x1xf32>
    %136 = vector.broadcast %135 : vector<2x1xf32> to vector<2x16xf32>
    %137 = arith.mulf %127, %136 : vector<2x16xf32>
    %cst_62 = arith.constant 2.000000e-01 : f32
    %138 = vector.broadcast %cst_62 : f32 to vector<2x16xf32>
    %139 = arith.mulf %138, %137 : vector<2x16xf32>
    %140 = arith.maximumf %137, %139 : vector<2x16xf32>
    %c0_63 = arith.constant 0 : index
    %c0_64 = arith.constant 0 : index
    %141 = vector.load %arg15[%c0_63, %c0_64] : memref<8x32xf32, #tpu.memory_space<vmem>>, vector<8x32xf32>
    %cst_65 = arith.constant dense<0.000000e+00> : vector<2x32xf32>
    %142 = tpu.matmul %20, %141, %cst_65 {dimension_numbers = #tpu.dot_dimension_numbers<[1], [0], [0], [1], [0, 0, 1, 1], [], []>} : vector<2x8xf32>, vector<8x32xf32>, vector<2x32xf32> -> vector<2x32xf32>
    %c0_66 = arith.constant 0 : index
    %c0_67 = arith.constant 0 : index
    %143 = vector.load %arg16[%c0_66, %c0_67] : memref<1x32xf32, #tpu.memory_space<vmem>>, vector<1x32xf32>
    %144 = vector.broadcast %143 : vector<1x32xf32> to vector<2x32xf32>
    %145 = arith.addf %142, %144 : vector<2x32xf32>
    %146 = arith.negf %145 : vector<2x32xf32>
    %147 = math.exp %146 : vector<2x32xf32>
    %cst_68 = arith.constant 1.000000e+00 : f32
    %148 = vector.broadcast %cst_68 : f32 to vector<2x32xf32>
    %149 = arith.addf %148, %147 : vector<2x32xf32>
    %150 = arith.divf %148, %149 : vector<2x32xf32>
    %151 = arith.mulf %145, %150 : vector<2x32xf32>
    %c0_69 = arith.constant 0 : index
    %c0_70 = arith.constant 0 : index
    %152 = vector.load %arg17[%c0_69, %c0_70] : memref<32x16xf32, #tpu.memory_space<vmem>>, vector<32x16xf32>
    %cst_71 = arith.constant dense<0.000000e+00> : vector<2x16xf32>
    %153 = tpu.matmul %151, %152, %cst_71 {dimension_numbers = #tpu.dot_dimension_numbers<[1], [0], [0], [1], [0, 0, 1, 1], [], []>} : vector<2x32xf32>, vector<32x16xf32>, vector<2x16xf32> -> vector<2x16xf32>
    %c0_72 = arith.constant 0 : index
    %c0_73 = arith.constant 0 : index
    %154 = vector.load %arg18[%c0_72, %c0_73] : memref<1x16xf32, #tpu.memory_space<vmem>>, vector<1x16xf32>
    %155 = vector.broadcast %154 : vector<1x16xf32> to vector<2x16xf32>
    %156 = arith.addf %153, %155 : vector<2x16xf32>
    %157 = arith.addf %140, %156 : vector<2x16xf32>
    %158 = arith.negf %157 : vector<2x16xf32>
    %159 = math.exp %158 : vector<2x16xf32>
    %cst_74 = arith.constant 1.000000e+00 : f32
    %160 = vector.broadcast %cst_74 : f32 to vector<2x16xf32>
    %161 = arith.addf %160, %159 : vector<2x16xf32>
    %162 = arith.divf %160, %161 : vector<2x16xf32>
    %163 = arith.mulf %157, %162 : vector<2x16xf32>
    %c0_75 = arith.constant 0 : index
    %c0_76 = arith.constant 0 : index
    %164 = vector.load %arg19[%c0_75, %c0_76] : memref<16x32xf32, #tpu.memory_space<vmem>>, vector<16x32xf32>
    %cst_77 = arith.constant dense<0.000000e+00> : vector<2x32xf32>
    %165 = tpu.matmul %163, %164, %cst_77 {dimension_numbers = #tpu.dot_dimension_numbers<[1], [0], [0], [1], [0, 0, 1, 1], [], []>} : vector<2x16xf32>, vector<16x32xf32>, vector<2x32xf32> -> vector<2x32xf32>
    %c0_78 = arith.constant 0 : index
    %c0_79 = arith.constant 0 : index
    %166 = vector.load %arg20[%c0_78, %c0_79] : memref<1x32xf32, #tpu.memory_space<vmem>>, vector<1x32xf32>
    %167 = vector.broadcast %166 : vector<1x32xf32> to vector<2x32xf32>
    %168 = arith.addf %165, %167 : vector<2x32xf32>
    %cst_80 = arith.constant dense<0.000000e+00> : vector<2xf32>
    %169 = vector.multi_reduction <add>, %168, %cst_80 [1] : vector<2x32xf32> to vector<2xf32>
    %170 = vector.shape_cast %169 : vector<2xf32> to vector<2x1xf32>
    %cst_81 = arith.constant 3.200000e+01 : f32
    %171 = vector.broadcast %cst_81 : f32 to vector<2x1xf32>
    %172 = arith.divf %170, %171 : vector<2x1xf32>
    %173 = vector.broadcast %172 : vector<2x1xf32> to vector<2x32xf32>
    %174 = arith.subf %168, %173 : vector<2x32xf32>
    %175 = arith.mulf %174, %174 : vector<2x32xf32>
    %cst_82 = arith.constant dense<0.000000e+00> : vector<2xf32>
    %176 = vector.multi_reduction <add>, %175, %cst_82 [1] : vector<2x32xf32> to vector<2xf32>
    %177 = vector.shape_cast %176 : vector<2xf32> to vector<2x1xf32>
    %cst_83 = arith.constant 3.200000e+01 : f32
    %178 = vector.broadcast %cst_83 : f32 to vector<2x1xf32>
    %179 = arith.divf %177, %178 : vector<2x1xf32>
    %cst_84 = arith.constant 9.99999974E-6 : f32
    %180 = vector.broadcast %cst_84 : f32 to vector<2x1xf32>
    %181 = arith.addf %179, %180 : vector<2x1xf32>
    %182 = math.rsqrt %181 : vector<2x1xf32>
    %183 = vector.broadcast %182 : vector<2x1xf32> to vector<2x32xf32>
    %184 = arith.mulf %174, %183 : vector<2x32xf32>
    %cst_85 = arith.constant 2.000000e-01 : f32
    %185 = vector.broadcast %cst_85 : f32 to vector<2x32xf32>
    %186 = arith.mulf %185, %184 : vector<2x32xf32>
    %187 = arith.maximumf %184, %186 : vector<2x32xf32>
    %c0_86 = arith.constant 0 : index
    %c0_87 = arith.constant 0 : index
    %188 = vector.load %arg21[%c0_86, %c0_87] : memref<32x16xf32, #tpu.memory_space<vmem>>, vector<32x16xf32>
    %cst_88 = arith.constant dense<0.000000e+00> : vector<2x16xf32>
    %189 = tpu.matmul %187, %188, %cst_88 {dimension_numbers = #tpu.dot_dimension_numbers<[1], [0], [0], [1], [0, 0, 1, 1], [], []>} : vector<2x32xf32>, vector<32x16xf32>, vector<2x16xf32> -> vector<2x16xf32>
    %c0_89 = arith.constant 0 : index
    %c0_90 = arith.constant 0 : index
    %190 = vector.load %arg22[%c0_89, %c0_90] : memref<1x16xf32, #tpu.memory_space<vmem>>, vector<1x16xf32>
    %191 = vector.broadcast %190 : vector<1x16xf32> to vector<2x16xf32>
    %192 = arith.addf %189, %191 : vector<2x16xf32>
    %cst_91 = arith.constant dense<0.000000e+00> : vector<2xf32>
    %193 = vector.multi_reduction <add>, %192, %cst_91 [1] : vector<2x16xf32> to vector<2xf32>
    %194 = vector.shape_cast %193 : vector<2xf32> to vector<2x1xf32>
    %cst_92 = arith.constant 1.600000e+01 : f32
    %195 = vector.broadcast %cst_92 : f32 to vector<2x1xf32>
    %196 = arith.divf %194, %195 : vector<2x1xf32>
    %197 = vector.broadcast %196 : vector<2x1xf32> to vector<2x16xf32>
    %198 = arith.subf %192, %197 : vector<2x16xf32>
    %199 = arith.mulf %198, %198 : vector<2x16xf32>
    %cst_93 = arith.constant dense<0.000000e+00> : vector<2xf32>
    %200 = vector.multi_reduction <add>, %199, %cst_93 [1] : vector<2x16xf32> to vector<2xf32>
    %201 = vector.shape_cast %200 : vector<2xf32> to vector<2x1xf32>
    %cst_94 = arith.constant 1.600000e+01 : f32
    %202 = vector.broadcast %cst_94 : f32 to vector<2x1xf32>
    %203 = arith.divf %201, %202 : vector<2x1xf32>
    %cst_95 = arith.constant 9.99999974E-6 : f32
    %204 = vector.broadcast %cst_95 : f32 to vector<2x1xf32>
    %205 = arith.addf %203, %204 : vector<2x1xf32>
    %206 = math.rsqrt %205 : vector<2x1xf32>
    %207 = vector.broadcast %206 : vector<2x1xf32> to vector<2x16xf32>
    %208 = arith.mulf %198, %207 : vector<2x16xf32>
    %cst_96 = arith.constant 2.000000e-01 : f32
    %209 = vector.broadcast %cst_96 : f32 to vector<2x16xf32>
    %210 = arith.mulf %209, %208 : vector<2x16xf32>
    %211 = arith.maximumf %208, %210 : vector<2x16xf32>
    %c0_97 = arith.constant 0 : index
    %c0_98 = arith.constant 0 : index
    %212 = vector.load %arg23[%c0_97, %c0_98] : memref<32x16xf32, #tpu.memory_space<vmem>>, vector<16x16xf32>
    %cst_99 = arith.constant dense<0.000000e+00> : vector<2x16xf32>
    %213 = tpu.matmul %211, %212, %cst_99 {dimension_numbers = #tpu.dot_dimension_numbers<[1], [0], [0], [1], [0, 0, 1, 1], [], []>} : vector<2x16xf32>, vector<16x16xf32>, vector<2x16xf32> -> vector<2x16xf32>
    %c16 = arith.constant 16 : index
    %c0_100 = arith.constant 0 : index
    %214 = vector.load %arg23[%c16, %c0_100] : memref<32x16xf32, #tpu.memory_space<vmem>>, vector<16x16xf32>
    %cst_101 = arith.constant dense<0.000000e+00> : vector<2x16xf32>
    %215 = tpu.matmul %140, %214, %cst_101 {dimension_numbers = #tpu.dot_dimension_numbers<[1], [0], [0], [1], [0, 0, 1, 1], [], []>} : vector<2x16xf32>, vector<16x16xf32>, vector<2x16xf32> -> vector<2x16xf32>
    %216 = arith.addf %213, %215 : vector<2x16xf32>
    %c0_102 = arith.constant 0 : index
    %c0_103 = arith.constant 0 : index
    %217 = vector.load %arg24[%c0_102, %c0_103] : memref<1x16xf32, #tpu.memory_space<vmem>>, vector<1x16xf32>
    %218 = vector.broadcast %217 : vector<1x16xf32> to vector<2x16xf32>
    %219 = arith.addf %216, %218 : vector<2x16xf32>
    %cst_104 = arith.constant dense<0.000000e+00> : vector<2xf32>
    %220 = vector.multi_reduction <add>, %219, %cst_104 [1] : vector<2x16xf32> to vector<2xf32>
    %221 = vector.shape_cast %220 : vector<2xf32> to vector<2x1xf32>
    %cst_105 = arith.constant 1.600000e+01 : f32
    %222 = vector.broadcast %cst_105 : f32 to vector<2x1xf32>
    %223 = arith.divf %221, %222 : vector<2x1xf32>
    %224 = vector.broadcast %223 : vector<2x1xf32> to vector<2x16xf32>
    %225 = arith.subf %219, %224 : vector<2x16xf32>
    %226 = arith.mulf %225, %225 : vector<2x16xf32>
    %cst_106 = arith.constant dense<0.000000e+00> : vector<2xf32>
    %227 = vector.multi_reduction <add>, %226, %cst_106 [1] : vector<2x16xf32> to vector<2xf32>
    %228 = vector.shape_cast %227 : vector<2xf32> to vector<2x1xf32>
    %cst_107 = arith.constant 1.600000e+01 : f32
    %229 = vector.broadcast %cst_107 : f32 to vector<2x1xf32>
    %230 = arith.divf %228, %229 : vector<2x1xf32>
    %cst_108 = arith.constant 9.99999974E-6 : f32
    %231 = vector.broadcast %cst_108 : f32 to vector<2x1xf32>
    %232 = arith.addf %230, %231 : vector<2x1xf32>
    %233 = math.rsqrt %232 : vector<2x1xf32>
    %234 = vector.broadcast %233 : vector<2x1xf32> to vector<2x16xf32>
    %235 = arith.mulf %225, %234 : vector<2x16xf32>
    %cst_109 = arith.constant 2.000000e-01 : f32
    %236 = vector.broadcast %cst_109 : f32 to vector<2x16xf32>
    %237 = arith.mulf %236, %235 : vector<2x16xf32>
    %238 = arith.maximumf %235, %237 : vector<2x16xf32>
    %c0_110 = arith.constant 0 : index
    %c0_111 = arith.constant 0 : index
    %239 = vector.load %arg25[%c0_110, %c0_111] : memref<8x32xf32, #tpu.memory_space<vmem>>, vector<8x32xf32>
    %cst_112 = arith.constant dense<0.000000e+00> : vector<2x32xf32>
    %240 = tpu.matmul %20, %239, %cst_112 {dimension_numbers = #tpu.dot_dimension_numbers<[1], [0], [0], [1], [0, 0, 1, 1], [], []>} : vector<2x8xf32>, vector<8x32xf32>, vector<2x32xf32> -> vector<2x32xf32>
    %c0_113 = arith.constant 0 : index
    %c0_114 = arith.constant 0 : index
    %241 = vector.load %arg26[%c0_113, %c0_114] : memref<1x32xf32, #tpu.memory_space<vmem>>, vector<1x32xf32>
    %242 = vector.broadcast %241 : vector<1x32xf32> to vector<2x32xf32>
    %243 = arith.addf %240, %242 : vector<2x32xf32>
    %244 = arith.negf %243 : vector<2x32xf32>
    %245 = math.exp %244 : vector<2x32xf32>
    %cst_115 = arith.constant 1.000000e+00 : f32
    %246 = vector.broadcast %cst_115 : f32 to vector<2x32xf32>
    %247 = arith.addf %246, %245 : vector<2x32xf32>
    %248 = arith.divf %246, %247 : vector<2x32xf32>
    %249 = arith.mulf %243, %248 : vector<2x32xf32>
    %c0_116 = arith.constant 0 : index
    %c0_117 = arith.constant 0 : index
    %250 = vector.load %arg27[%c0_116, %c0_117] : memref<32x16xf32, #tpu.memory_space<vmem>>, vector<32x16xf32>
    %cst_118 = arith.constant dense<0.000000e+00> : vector<2x16xf32>
    %251 = tpu.matmul %249, %250, %cst_118 {dimension_numbers = #tpu.dot_dimension_numbers<[1], [0], [0], [1], [0, 0, 1, 1], [], []>} : vector<2x32xf32>, vector<32x16xf32>, vector<2x16xf32> -> vector<2x16xf32>
    %c0_119 = arith.constant 0 : index
    %c0_120 = arith.constant 0 : index
    %252 = vector.load %arg28[%c0_119, %c0_120] : memref<1x16xf32, #tpu.memory_space<vmem>>, vector<1x16xf32>
    %253 = vector.broadcast %252 : vector<1x16xf32> to vector<2x16xf32>
    %254 = arith.addf %251, %253 : vector<2x16xf32>
    %255 = arith.addf %238, %254 : vector<2x16xf32>
    %256 = arith.negf %255 : vector<2x16xf32>
    %257 = math.exp %256 : vector<2x16xf32>
    %cst_121 = arith.constant 1.000000e+00 : f32
    %258 = vector.broadcast %cst_121 : f32 to vector<2x16xf32>
    %259 = arith.addf %258, %257 : vector<2x16xf32>
    %260 = arith.divf %258, %259 : vector<2x16xf32>
    %261 = arith.mulf %255, %260 : vector<2x16xf32>
    %c0_122 = arith.constant 0 : index
    %c0_123 = arith.constant 0 : index
    %262 = vector.load %arg29[%c0_122, %c0_123] : memref<16x32xf32, #tpu.memory_space<vmem>>, vector<16x32xf32>
    %cst_124 = arith.constant dense<0.000000e+00> : vector<2x32xf32>
    %263 = tpu.matmul %261, %262, %cst_124 {dimension_numbers = #tpu.dot_dimension_numbers<[1], [0], [0], [1], [0, 0, 1, 1], [], []>} : vector<2x16xf32>, vector<16x32xf32>, vector<2x32xf32> -> vector<2x32xf32>
    %c0_125 = arith.constant 0 : index
    %c0_126 = arith.constant 0 : index
    %264 = vector.load %arg30[%c0_125, %c0_126] : memref<1x32xf32, #tpu.memory_space<vmem>>, vector<1x32xf32>
    %265 = vector.broadcast %264 : vector<1x32xf32> to vector<2x32xf32>
    %266 = arith.addf %263, %265 : vector<2x32xf32>
    %cst_127 = arith.constant dense<0.000000e+00> : vector<2xf32>
    %267 = vector.multi_reduction <add>, %266, %cst_127 [1] : vector<2x32xf32> to vector<2xf32>
    %268 = vector.shape_cast %267 : vector<2xf32> to vector<2x1xf32>
    %cst_128 = arith.constant 3.200000e+01 : f32
    %269 = vector.broadcast %cst_128 : f32 to vector<2x1xf32>
    %270 = arith.divf %268, %269 : vector<2x1xf32>
    %271 = vector.broadcast %270 : vector<2x1xf32> to vector<2x32xf32>
    %272 = arith.subf %266, %271 : vector<2x32xf32>
    %273 = arith.mulf %272, %272 : vector<2x32xf32>
    %cst_129 = arith.constant dense<0.000000e+00> : vector<2xf32>
    %274 = vector.multi_reduction <add>, %273, %cst_129 [1] : vector<2x32xf32> to vector<2xf32>
    %275 = vector.shape_cast %274 : vector<2xf32> to vector<2x1xf32>
    %cst_130 = arith.constant 3.200000e+01 : f32
    %276 = vector.broadcast %cst_130 : f32 to vector<2x1xf32>
    %277 = arith.divf %275, %276 : vector<2x1xf32>
    %cst_131 = arith.constant 9.99999974E-6 : f32
    %278 = vector.broadcast %cst_131 : f32 to vector<2x1xf32>
    %279 = arith.addf %277, %278 : vector<2x1xf32>
    %280 = math.rsqrt %279 : vector<2x1xf32>
    %281 = vector.broadcast %280 : vector<2x1xf32> to vector<2x32xf32>
    %282 = arith.mulf %272, %281 : vector<2x32xf32>
    %cst_132 = arith.constant 2.000000e-01 : f32
    %283 = vector.broadcast %cst_132 : f32 to vector<2x32xf32>
    %284 = arith.mulf %283, %282 : vector<2x32xf32>
    %285 = arith.maximumf %282, %284 : vector<2x32xf32>
    %c0_133 = arith.constant 0 : index
    %c0_134 = arith.constant 0 : index
    %286 = vector.load %arg31[%c0_133, %c0_134] : memref<64x32xf32, #tpu.memory_space<vmem>>, vector<32x32xf32>
    %cst_135 = arith.constant dense<0.000000e+00> : vector<2x32xf32>
    %287 = tpu.matmul %285, %286, %cst_135 {dimension_numbers = #tpu.dot_dimension_numbers<[1], [0], [0], [1], [0, 0, 1, 1], [], []>} : vector<2x32xf32>, vector<32x32xf32>, vector<2x32xf32> -> vector<2x32xf32>
    %c32 = arith.constant 32 : index
    %c0_136 = arith.constant 0 : index
    %288 = vector.load %arg31[%c32, %c0_136] : memref<64x32xf32, #tpu.memory_space<vmem>>, vector<32x32xf32>
    %cst_137 = arith.constant dense<0.000000e+00> : vector<2x32xf32>
    %289 = tpu.matmul %69, %288, %cst_137 {dimension_numbers = #tpu.dot_dimension_numbers<[1], [0], [0], [1], [0, 0, 1, 1], [], []>} : vector<2x32xf32>, vector<32x32xf32>, vector<2x32xf32> -> vector<2x32xf32>
    %290 = arith.addf %287, %289 : vector<2x32xf32>
    %c0_138 = arith.constant 0 : index
    %c0_139 = arith.constant 0 : index
    %291 = vector.load %arg32[%c0_138, %c0_139] : memref<1x32xf32, #tpu.memory_space<vmem>>, vector<1x32xf32>
    %292 = vector.broadcast %291 : vector<1x32xf32> to vector<2x32xf32>
    %293 = arith.addf %290, %292 : vector<2x32xf32>
    %cst_140 = arith.constant dense<0.000000e+00> : vector<2xf32>
    %294 = vector.multi_reduction <add>, %293, %cst_140 [1] : vector<2x32xf32> to vector<2xf32>
    %295 = vector.shape_cast %294 : vector<2xf32> to vector<2x1xf32>
    %cst_141 = arith.constant 3.200000e+01 : f32
    %296 = vector.broadcast %cst_141 : f32 to vector<2x1xf32>
    %297 = arith.divf %295, %296 : vector<2x1xf32>
    %298 = vector.broadcast %297 : vector<2x1xf32> to vector<2x32xf32>
    %299 = arith.subf %293, %298 : vector<2x32xf32>
    %300 = arith.mulf %299, %299 : vector<2x32xf32>
    %cst_142 = arith.constant dense<0.000000e+00> : vector<2xf32>
    %301 = vector.multi_reduction <add>, %300, %cst_142 [1] : vector<2x32xf32> to vector<2xf32>
    %302 = vector.shape_cast %301 : vector<2xf32> to vector<2x1xf32>
    %cst_143 = arith.constant 3.200000e+01 : f32
    %303 = vector.broadcast %cst_143 : f32 to vector<2x1xf32>
    %304 = arith.divf %302, %303 : vector<2x1xf32>
    %cst_144 = arith.constant 9.99999974E-6 : f32
    %305 = vector.broadcast %cst_144 : f32 to vector<2x1xf32>
    %306 = arith.addf %304, %305 : vector<2x1xf32>
    %307 = math.rsqrt %306 : vector<2x1xf32>
    %308 = vector.broadcast %307 : vector<2x1xf32> to vector<2x32xf32>
    %309 = arith.mulf %299, %308 : vector<2x32xf32>
    %cst_145 = arith.constant 2.000000e-01 : f32
    %310 = vector.broadcast %cst_145 : f32 to vector<2x32xf32>
    %311 = arith.mulf %310, %309 : vector<2x32xf32>
    %312 = arith.maximumf %309, %311 : vector<2x32xf32>
    %c0_146 = arith.constant 0 : index
    %c0_147 = arith.constant 0 : index
    %313 = vector.load %arg33[%c0_146, %c0_147] : memref<8x64xf32, #tpu.memory_space<vmem>>, vector<8x64xf32>
    %cst_148 = arith.constant dense<0.000000e+00> : vector<2x64xf32>
    %314 = tpu.matmul %20, %313, %cst_148 {dimension_numbers = #tpu.dot_dimension_numbers<[1], [0], [0], [1], [0, 0, 1, 1], [], []>} : vector<2x8xf32>, vector<8x64xf32>, vector<2x64xf32> -> vector<2x64xf32>
    %c0_149 = arith.constant 0 : index
    %c0_150 = arith.constant 0 : index
    %315 = vector.load %arg34[%c0_149, %c0_150] : memref<1x64xf32, #tpu.memory_space<vmem>>, vector<1x64xf32>
    %316 = vector.broadcast %315 : vector<1x64xf32> to vector<2x64xf32>
    %317 = arith.addf %314, %316 : vector<2x64xf32>
    %318 = arith.negf %317 : vector<2x64xf32>
    %319 = math.exp %318 : vector<2x64xf32>
    %cst_151 = arith.constant 1.000000e+00 : f32
    %320 = vector.broadcast %cst_151 : f32 to vector<2x64xf32>
    %321 = arith.addf %320, %319 : vector<2x64xf32>
    %322 = arith.divf %320, %321 : vector<2x64xf32>
    %323 = arith.mulf %317, %322 : vector<2x64xf32>
    %c0_152 = arith.constant 0 : index
    %c0_153 = arith.constant 0 : index
    %324 = vector.load %arg35[%c0_152, %c0_153] : memref<64x32xf32, #tpu.memory_space<vmem>>, vector<64x32xf32>
    %cst_154 = arith.constant dense<0.000000e+00> : vector<2x32xf32>
    %325 = tpu.matmul %323, %324, %cst_154 {dimension_numbers = #tpu.dot_dimension_numbers<[1], [0], [0], [1], [0, 0, 1, 1], [], []>} : vector<2x64xf32>, vector<64x32xf32>, vector<2x32xf32> -> vector<2x32xf32>
    %c0_155 = arith.constant 0 : index
    %c0_156 = arith.constant 0 : index
    %326 = vector.load %arg36[%c0_155, %c0_156] : memref<1x32xf32, #tpu.memory_space<vmem>>, vector<1x32xf32>
    %327 = vector.broadcast %326 : vector<1x32xf32> to vector<2x32xf32>
    %328 = arith.addf %325, %327 : vector<2x32xf32>
    %329 = arith.addf %312, %328 : vector<2x32xf32>
    %330 = arith.negf %329 : vector<2x32xf32>
    %331 = math.exp %330 : vector<2x32xf32>
    %cst_157 = arith.constant 1.000000e+00 : f32
    %332 = vector.broadcast %cst_157 : f32 to vector<2x32xf32>
    %333 = arith.addf %332, %331 : vector<2x32xf32>
    %334 = arith.divf %332, %333 : vector<2x32xf32>
    %335 = arith.mulf %329, %334 : vector<2x32xf32>
    %c0_158 = arith.constant 0 : index
    %c0_159 = arith.constant 0 : index
    %336 = vector.load %arg37[%c0_158, %c0_159] : memref<32x64xf32, #tpu.memory_space<vmem>>, vector<32x64xf32>
    %cst_160 = arith.constant dense<0.000000e+00> : vector<2x64xf32>
    %337 = tpu.matmul %335, %336, %cst_160 {dimension_numbers = #tpu.dot_dimension_numbers<[1], [0], [0], [1], [0, 0, 1, 1], [], []>} : vector<2x32xf32>, vector<32x64xf32>, vector<2x64xf32> -> vector<2x64xf32>
    %c0_161 = arith.constant 0 : index
    %c0_162 = arith.constant 0 : index
    %338 = vector.load %arg38[%c0_161, %c0_162] : memref<1x64xf32, #tpu.memory_space<vmem>>, vector<1x64xf32>
    %339 = vector.broadcast %338 : vector<1x64xf32> to vector<2x64xf32>
    %340 = arith.addf %337, %339 : vector<2x64xf32>
    %cst_163 = arith.constant dense<0.000000e+00> : vector<2xf32>
    %341 = vector.multi_reduction <add>, %340, %cst_163 [1] : vector<2x64xf32> to vector<2xf32>
    %342 = vector.shape_cast %341 : vector<2xf32> to vector<2x1xf32>
    %cst_164 = arith.constant 6.400000e+01 : f32
    %343 = vector.broadcast %cst_164 : f32 to vector<2x1xf32>
    %344 = arith.divf %342, %343 : vector<2x1xf32>
    %345 = vector.broadcast %344 : vector<2x1xf32> to vector<2x64xf32>
    %346 = arith.subf %340, %345 : vector<2x64xf32>
    %347 = arith.mulf %346, %346 : vector<2x64xf32>
    %cst_165 = arith.constant dense<0.000000e+00> : vector<2xf32>
    %348 = vector.multi_reduction <add>, %347, %cst_165 [1] : vector<2x64xf32> to vector<2xf32>
    %349 = vector.shape_cast %348 : vector<2xf32> to vector<2x1xf32>
    %cst_166 = arith.constant 6.400000e+01 : f32
    %350 = vector.broadcast %cst_166 : f32 to vector<2x1xf32>
    %351 = arith.divf %349, %350 : vector<2x1xf32>
    %cst_167 = arith.constant 9.99999974E-6 : f32
    %352 = vector.broadcast %cst_167 : f32 to vector<2x1xf32>
    %353 = arith.addf %351, %352 : vector<2x1xf32>
    %354 = math.rsqrt %353 : vector<2x1xf32>
    %355 = vector.broadcast %354 : vector<2x1xf32> to vector<2x64xf32>
    %356 = arith.mulf %346, %355 : vector<2x64xf32>
    %cst_168 = arith.constant 2.000000e-01 : f32
    %357 = vector.broadcast %cst_168 : f32 to vector<2x64xf32>
    %358 = arith.mulf %357, %356 : vector<2x64xf32>
    %359 = arith.maximumf %356, %358 : vector<2x64xf32>
    %c0_169 = arith.constant 0 : index
    %c0_170 = arith.constant 0 : index
    %360 = vector.load %arg39[%c0_169, %c0_170] : memref<64x32xf32, #tpu.memory_space<vmem>>, vector<64x32xf32>
    %cst_171 = arith.constant dense<0.000000e+00> : vector<2x32xf32>
    %361 = tpu.matmul %359, %360, %cst_171 {dimension_numbers = #tpu.dot_dimension_numbers<[1], [0], [0], [1], [0, 0, 1, 1], [], []>} : vector<2x64xf32>, vector<64x32xf32>, vector<2x32xf32> -> vector<2x32xf32>
    %c0_172 = arith.constant 0 : index
    %c0_173 = arith.constant 0 : index
    %362 = vector.load %arg40[%c0_172, %c0_173] : memref<1x32xf32, #tpu.memory_space<vmem>>, vector<1x32xf32>
    %363 = vector.broadcast %362 : vector<1x32xf32> to vector<2x32xf32>
    %364 = arith.addf %361, %363 : vector<2x32xf32>
    %cst_174 = arith.constant dense<0.000000e+00> : vector<2xf32>
    %365 = vector.multi_reduction <add>, %364, %cst_174 [1] : vector<2x32xf32> to vector<2xf32>
    %366 = vector.shape_cast %365 : vector<2xf32> to vector<2x1xf32>
    %cst_175 = arith.constant 3.200000e+01 : f32
    %367 = vector.broadcast %cst_175 : f32 to vector<2x1xf32>
    %368 = arith.divf %366, %367 : vector<2x1xf32>
    %369 = vector.broadcast %368 : vector<2x1xf32> to vector<2x32xf32>
    %370 = arith.subf %364, %369 : vector<2x32xf32>
    %371 = arith.mulf %370, %370 : vector<2x32xf32>
    %cst_176 = arith.constant dense<0.000000e+00> : vector<2xf32>
    %372 = vector.multi_reduction <add>, %371, %cst_176 [1] : vector<2x32xf32> to vector<2xf32>
    %373 = vector.shape_cast %372 : vector<2xf32> to vector<2x1xf32>
    %cst_177 = arith.constant 3.200000e+01 : f32
    %374 = vector.broadcast %cst_177 : f32 to vector<2x1xf32>
    %375 = arith.divf %373, %374 : vector<2x1xf32>
    %cst_178 = arith.constant 9.99999974E-6 : f32
    %376 = vector.broadcast %cst_178 : f32 to vector<2x1xf32>
    %377 = arith.addf %375, %376 : vector<2x1xf32>
    %378 = math.rsqrt %377 : vector<2x1xf32>
    %379 = vector.broadcast %378 : vector<2x1xf32> to vector<2x32xf32>
    %380 = arith.mulf %370, %379 : vector<2x32xf32>
    %cst_179 = arith.constant 2.000000e-01 : f32
    %381 = vector.broadcast %cst_179 : f32 to vector<2x32xf32>
    %382 = arith.mulf %381, %380 : vector<2x32xf32>
    %383 = arith.maximumf %380, %382 : vector<2x32xf32>
    %c0_180 = arith.constant 0 : index
    %c0_181 = arith.constant 0 : index
    %384 = vector.load %arg41[%c0_180, %c0_181] : memref<2x32xf32, #tpu.memory_space<vmem>>, vector<2x32xf32>
    tpu.vector_store %arg41[%c0_180, %c0_181], %383 {strides = array<i32>} : memref<2x32xf32, #tpu.memory_space<vmem>>, vector<2x32xf32>,
    return
  }
}

</mosaic_0001>

<llo_original>
// kernel: fc_forward.1
$region0: #{fc_forward.1}
  #allocation0 [shape = 'u32[]', space=smem, size = 0x4, offset = 0x4, fixed_abs, tag = 'smem constant byte address 0x4 - core index']
  #allocation1 [shape = 'u32[144,128]{1,0:T(1,128)}', space=vmem, size = 0x12000, scoped, tag = 'internal scratch']
  %s0 = inlined_call_operand.smem [shape: u32[42], index: -1, kind: input, shape index: {}]
  %s1 = sld [smem:[%s0]]
  %s2 = scalar_lea.smem %s0, 1
  %s3 = sld [smem:[%s2]]
  %s4 = scalar_lea.smem %s0, 2
  %s5 = sld [smem:[%s4]]
  %s6 = scalar_lea.smem %s0, 3
  %s7 = sld [smem:[%s6]]
  %s8 = scalar_lea.smem %s0, 4
  %s9 = sld [smem:[%s8]]
  %s10 = scalar_lea.smem %s0, 5
  %s11 = sld [smem:[%s10]]
  %s12 = scalar_lea.smem %s0, 6
  %s13 = sld [smem:[%s12]]
  %s14 = scalar_lea.smem %s0, 7
  %s15 = sld [smem:[%s14]]
  %s16 = scalar_lea.smem %s0, 8
  %s17 = sld [smem:[%s16]]
  %s18 = scalar_lea.smem %s0, 9
  %s19 = sld [smem:[%s18]]
  %s20 = scalar_lea.smem %s0, 10
  %s21 = sld [smem:[%s20]]
  %s22 = scalar_lea.smem %s0, 11
  %s23 = sld [smem:[%s22]]
  %s24 = scalar_lea.smem %s0, 12
  %s25 = sld [smem:[%s24]]
  %s26 = scalar_lea.smem %s0, 13
  %s27 = sld [smem:[%s26]]
  %s28 = scalar_lea.smem %s0, 14
  %s29 = sld [smem:[%s28]]
  %s30 = scalar_lea.smem %s0, 15
  %s31 = sld [smem:[%s30]]
  %s32 = scalar_lea.smem %s0, 16
  %s33 = sld [smem:[%s32]]
  %s34 = scalar_lea.smem %s0, 17
  %s35 = sld [smem:[%s34]]
  %s36 = scalar_lea.smem %s0, 18
  %s37 = sld [smem:[%s36]]
  %s38 = scalar_lea.smem %s0, 19
  %s39 = sld [smem:[%s38]]
  %s40 = scalar_lea.smem %s0, 20
  %s41 = sld [smem:[%s40]]
  %s42 = scalar_lea.smem %s0, 21
  %s43 = sld [smem:[%s42]]
  %s44 = scalar_lea.smem %s0, 22
  %s45 = sld [smem:[%s44]]
  %s46 = scalar_lea.smem %s0, 23
  %s47 = sld [smem:[%s46]]
  %s48 = scalar_lea.smem %s0, 24
  %s49 = sld [smem:[%s48]]
  %s50 = scalar_lea.smem %s0, 25
  %s51 = sld [smem:[%s50]]
  %s52 = scalar_lea.smem %s0, 26
  %s53 = sld [smem:[%s52]]
  %s54 = scalar_lea.smem %s0, 27
  %s55 = sld [smem:[%s54]]
  %s56 = scalar_lea.smem %s0, 28
  %s57 = sld [smem:[%s56]]
  %s58 = scalar_lea.smem %s0, 29
  %s59 = sld [smem:[%s58]]
  %s60 = scalar_lea.smem %s0, 30
  %s61 = sld [smem:[%s60]]
  %s62 = scalar_lea.smem %s0, 31
  %s63 = sld [smem:[%s62]]
  %s64 = scalar_lea.smem %s0, 32
  %s65 = sld [smem:[%s64]]
  %s66 = scalar_lea.smem %s0, 33
  %s67 = sld [smem:[%s66]]
  %s68 = scalar_lea.smem %s0, 34
  %s69 = sld [smem:[%s68]]
  %s70 = scalar_lea.smem %s0, 35
  %s71 = sld [smem:[%s70]]
  %s72 = scalar_lea.smem %s0, 36
  %s73 = sld [smem:[%s72]]
  %s74 = scalar_lea.smem %s0, 37
  %s75 = sld [smem:[%s74]]
  %s76 = scalar_lea.smem %s0, 38
  %s77 = sld [smem:[%s76]]
  %s78 = scalar_lea.smem %s0, 39
  %s79 = sld [smem:[%s78]]
  %s80 = scalar_lea.smem %s0, 40
  %s81 = sld [smem:[%s80]]
  %s82 = scalar_lea.smem %s0, 41
  %s83 = sld [smem:[%s82]]
  %s84 = sld [smem:[#allocation0]]
  $region314: #{fc_forward.1} parent=0
    _
  %s86 = ssub.s32 1, %s84
  %s87 = scalar_select 0, %s86, %s84
  $region1: #{fc_forward.1} parent=0
    #allocation2 [shape = 'u8[512]{0}', space=smem, size = 0x200, scoped, tag = 'input window, operand 1, single buffered']
    #allocation3 [shape = 's32[1]{0}', space=sflag, size = 0x4, scoped, tag = 'scoped memory for fc_forward.1']
    #allocation4 [shape = 's32[1]{0}', space=sflag, size = 0x4, scoped, tag = 'scoped memory for fc_forward.1']
    #allocation5 [shape = 'u8[24576]{0}', space=vmem, size = 0x6000, scoped, tag = 'input window, operand 2, single buffered']
    #allocation6 [shape = 'u8[512]{0}', space=vmem, size = 0x400, scoped, tag = 'input window, operand 3, single buffered']
    #allocation7 [shape = 's32[1]{0}', space=sflag, size = 0x4, scoped, tag = 'scoped memory for fc_forward.1']
    #allocation8 [shape = 'u8[8192]{0}', space=vmem, size = 0x2000, scoped, tag = 'input window, operand 4, single buffered']
    #allocation9 [shape = 'u8[65536]{0}', space=vmem, size = 0x10000, scoped, tag = 'input window, operand 5, single buffered']
    #allocation10 [shape = 's32[1]{0}', space=sflag, size = 0x4, scoped, tag = 'scoped memory for fc_forward.1']
    #allocation11 [shape = 'u8[512]{0}', space=vmem, size = 0x400, scoped, tag = 'input window, operand 6, single buffered']
    #allocation12 [shape = 'u8[4096]{0}', space=vmem, size = 0x1000, scoped, tag = 'input window, operand 7, single buffered']
    #allocation13 [shape = 's32[1]{0}', space=sflag, size = 0x4, scoped, tag = 'scoped memory for fc_forward.1']
    #allocation14 [shape = 'u8[512]{0}', space=vmem, size = 0x400, scoped, tag = 'input window, operand 8, single buffered']
    #allocation15 [shape = 'u8[32768]{0}', space=vmem, size = 0x8000, scoped, tag = 'input window, operand 9, single buffered']
    #allocation16 [shape = 's32[1]{0}', space=sflag, size = 0x4, scoped, tag = 'scoped memory for fc_forward.1']
    #allocation17 [shape = 'u8[512]{0}', space=vmem, size = 0x400, scoped, tag = 'input window, operand 10, single buffered']
    #allocation18 [shape = 'u8[16384]{0}', space=vmem, size = 0x4000, scoped, tag = 'input window, operand 11, single buffered']
    #allocation19 [shape = 's32[1]{0}', space=sflag, size = 0x4, scoped, tag = 'scoped memory for fc_forward.1']
    #allocation20 [shape = 'u8[512]{0}', space=vmem, size = 0x400, scoped, tag = 'input window, operand 12, single buffered']
    #allocation21 [shape = 'u8[32768]{0}', space=vmem, size = 0x8000, scoped, tag = 'input window, operand 13, single buffered']
    #allocation22 [shape = 's32[1]{0}', space=sflag, size = 0x4, scoped, tag = 'scoped memory for fc_forward.1']
    #allocation23 [shape = 'u8[512]{0}', space=vmem, size = 0x400, scoped, tag = 'input window, operand 14, single buffered']
    #allocation24 [shape = 'u8[4096]{0}', space=vmem, size = 0x1000, scoped, tag = 'input window, operand 15, single buffered']
    #allocation25 [shape = 's32[1]{0}', space=sflag, size = 0x4, scoped, tag = 'scoped memory for fc_forward.1']
    #allocation26 [shape = 'u8[512]{0}', space=vmem, size = 0x400, scoped, tag = 'input window, operand 16, single buffered']
    #allocation27 [shape = 'u8[16384]{0}', space=vmem, size = 0x4000, scoped, tag = 'input window, operand 17, single buffered']
    #allocation28 [shape = 's32[1]{0}', space=sflag, size = 0x4, scoped, tag = 'scoped memory for fc_forward.1']
    #allocation29 [shape = 'u8[512]{0}', space=vmem, size = 0x400, scoped, tag = 'input window, operand 18, single buffered']
    #allocation30 [shape = 'u8[8192]{0}', space=vmem, size = 0x2000, scoped, tag = 'input window, operand 19, single buffered']
    #allocation31 [shape = 's32[1]{0}', space=sflag, size = 0x4, scoped, tag = 'scoped memory for fc_forward.1']
    #allocation32 [shape = 'u8[512]{0}', space=vmem, size = 0x400, scoped, tag = 'input window, operand 20, single buffered']
    #allocation33 [shape = 'u8[16384]{0}', space=vmem, size = 0x4000, scoped, tag = 'input window, operand 21, single buffered']
    #allocation34 [shape = 's32[1]{0}', space=sflag, size = 0x4, scoped, tag = 'scoped memory for fc_forward.1']
    #allocation35 [shape = 'u8[512]{0}', space=vmem, size = 0x400, scoped, tag = 'input window, operand 22, single buffered']
    #allocation36 [shape = 'u8[16384]{0}', space=vmem, size = 0x4000, scoped, tag = 'input window, operand 23, single buffered']
    #allocation37 [shape = 's32[1]{0}', space=sflag, size = 0x4, scoped, tag = 'scoped memory for fc_forward.1']
    #allocation38 [shape = 'u8[512]{0}', space=vmem, size = 0x400, scoped, tag = 'input window, operand 24, single buffered']
    #allocation39 [shape = 'u8[4096]{0}', space=vmem, size = 0x1000, scoped, tag = 'input window, operand 25, single buffered']
    #allocation40 [shape = 's32[1]{0}', space=sflag, size = 0x4, scoped, tag = 'scoped memory for fc_forward.1']
    #allocation41 [shape = 'u8[512]{0}', space=vmem, size = 0x400, scoped, tag = 'input window, operand 26, single buffered']
    #allocation42 [shape = 'u8[16384]{0}', space=vmem, size = 0x4000, scoped, tag = 'input window, operand 27, single buffered']
    #allocation43 [shape = 's32[1]{0}', space=sflag, size = 0x4, scoped, tag = 'scoped memory for fc_forward.1']
    #allocation44 [shape = 'u8[512]{0}', space=vmem, size = 0x400, scoped, tag = 'input window, operand 28, single buffered']
    #allocation45 [shape = 'u8[8192]{0}', space=vmem, size = 0x2000, scoped, tag = 'input window, operand 29, single buffered']
    #allocation46 [shape = 's32[1]{0}', space=sflag, size = 0x4, scoped, tag = 'scoped memory for fc_forward.1']
    #allocation47 [shape = 'u8[512]{0}', space=vmem, size = 0x400, scoped, tag = 'input window, operand 30, single buffered']
    #allocation48 [shape = 'u8[32768]{0}', space=vmem, size = 0x8000, scoped, tag = 'input window, operand 31, single buffered']
    #allocation49 [shape = 's32[1]{0}', space=sflag, size = 0x4, scoped, tag = 'scoped memory for fc_forward.1']
    #allocation50 [shape = 'u8[512]{0}', space=vmem, size = 0x400, scoped, tag = 'input window, operand 32, single buffered']
    #allocation51 [shape = 'u8[4096]{0}', space=vmem, size = 0x1000, scoped, tag = 'input window, operand 33, single buffered']
    #allocation52 [shape = 's32[1]{0}', space=sflag, size = 0x4, scoped, tag = 'scoped memory for fc_forward.1']
    #allocation53 [shape = 'u8[512]{0}', space=vmem, size = 0x400, scoped, tag = 'input window, operand 34, single buffered']
    #allocation54 [shape = 'u8[512]{0}', space=vmem, size = 0x400, scoped, tag = 'input window, operand 36, single buffered']
    #allocation55 [shape = 's32[1]{0}', space=sflag, size = 0x4, scoped, tag = 'scoped memory for fc_forward.1']
    %88 = vsyncpa [#allocation4], 0
    %89 = vsyncpa [#allocation3], 0
    %90 = vsyncpa [#allocation7], 0
    %91 = vsyncpa [#allocation10], 0
    %92 = vsyncpa [#allocation13], 0
    %93 = vsyncpa [#allocation16], 0
    %94 = vsyncpa [#allocation19], 0
    %95 = vsyncpa [#allocation22], 0
    %96 = vsyncpa [#allocation25], 0
    %97 = vsyncpa [#allocation28], 0
    %98 = vsyncpa [#allocation31], 0
    %99 = vsyncpa [#allocation34], 0
    %100 = vsyncpa [#allocation37], 0
    %101 = vsyncpa [#allocation40], 0
    %102 = vsyncpa [#allocation43], 0
    %103 = vsyncpa [#allocation46], 0
    %104 = vsyncpa [#allocation49], 0
    %105 = vsyncpa [#allocation52], 0
    %106 = vsyncpa [#allocation55], 0
    // Predicated region
    $region2: #{fc_forward.1} parent=1 // pred_check
      _
    $region3: #{fc_forward.1} parent=1 // pred_check_branch
      %108 = sbr.rel (0) target = $region5
    $region4: #{fc_forward.1} parent=1 // pred_region
      _
    $region5: #{fc_forward.1} parent=1 // pred_fallthru
      _
    // Predicated region
    $region6: #{fc_forward.1} parent=1 // pred_check
      _
    $region7: #{fc_forward.1} parent=1 // pred_check_branch
      %110 = sbr.rel (0) target = $region9
    $region8: #{fc_forward.1} parent=1 // pred_region
      %s112 = ssub.s32 16, 16
      %113 = vsyncadd [#allocation4], %s112
      %116 = dma.hbm_to_smem %s3, 16, [#allocation2], [#allocation4]
    $region9: #{fc_forward.1} parent=1 // pred_fallthru
      _
    // Predicated region
    $region10: #{fc_forward.1} parent=1 // pred_check
      _
    $region11: #{fc_forward.1} parent=1 // pred_check_branch
      %118 = sbr.rel (0) target = $region13
    $region12: #{fc_forward.1} parent=1 // pred_region
      %s120 = ssub.s32 768, 768
      %121 = vsyncadd [#allocation3], %s120
      %s122 = sshll.u32 [#allocation5], 4
      %s123 = int_to_ptr.vmem [resolvable:$true] %s122
      %128 = dma.hbm_to_vmem [thread:$0]  %s5, 768, %s123, [#allocation3], 128, 128, 8
    $region13: #{fc_forward.1} parent=1 // pred_fallthru
      _
    // Predicated region
    $region14: #{fc_forward.1} parent=1 // pred_check
      _
    $region15: #{fc_forward.1} parent=1 // pred_check_branch
      %130 = sbr.rel (0) target = $region17
    $region16: #{fc_forward.1} parent=1 // pred_region
      %s132 = ssub.s32 16, 16
      %133 = vsyncadd [#allocation7], %s132
      %s135 = sshll.u32 [#allocation6], 4
      %s136 = int_to_ptr.vmem [resolvable:$true] %s135
      %138 = dma.hbm_to_vmem [thread:$0]  %s7, 16, %s136, [#allocation7]
    $region17: #{fc_forward.1} parent=1 // pred_fallthru
      _
    // Predicated region
    $region18: #{fc_forward.1} parent=1 // pred_check
      _
    $region19: #{fc_forward.1} parent=1 // pred_check_branch
      %140 = sbr.rel (0) target = $region21
    $region20: #{fc_forward.1} parent=1 // pred_region
      %s142 = ssub.s32 256, 256
      %143 = vsyncadd [#allocation7], %s142
      %s144 = sshll.u32 [#allocation8], 4
      %s145 = int_to_ptr.vmem [resolvable:$true] %s144
      %150 = dma.hbm_to_vmem [thread:$0]  %s9, 256, %s145, [#allocation7], 128, 128, 8
    $region21: #{fc_forward.1} parent=1 // pred_fallthru
      _
    // Predicated region
    $region22: #{fc_forward.1} parent=1 // pred_check
      _
    $region23: #{fc_forward.1} parent=1 // pred_check_branch
      %152 = sbr.rel (0) target = $region25
    $region24: #{fc_forward.1} parent=1 // pred_region
      %s154 = ssub.s32 2048, 2048
      %155 = vsyncadd [#allocation10], %s154
      %s156 = sshll.u32 [#allocation9], 4
      %s157 = int_to_ptr.vmem [resolvable:$true] %s156
      %162 = dma.hbm_to_vmem [thread:$0]  %s11, 2048, %s157, [#allocation10], 128, 128, 8
    $region25: #{fc_forward.1} parent=1 // pred_fallthru
      _
    // Predicated region
    $region26: #{fc_forward.1} parent=1 // pred_check
      _
    $region27: #{fc_forward.1} parent=1 // pred_check_branch
      %164 = sbr.rel (0) target = $region29
    $region28: #{fc_forward.1} parent=1 // pred_region
      %s166 = ssub.s32 16, 16
      %167 = vsyncadd [#allocation10], %s166
      %s169 = sshll.u32 [#allocation11], 4
      %s170 = int_to_ptr.vmem [resolvable:$true] %s169
      %172 = dma.hbm_to_vmem [thread:$0]  %s13, 16, %s170, [#allocation10]
    $region29: #{fc_forward.1} parent=1 // pred_fallthru
      _
    // Predicated region
    $region30: #{fc_forward.1} parent=1 // pred_check
      _
    $region31: #{fc_forward.1} parent=1 // pred_check_branch
      %174 = sbr.rel (0) target = $region33
    $region32: #{fc_forward.1} parent=1 // pred_region
      %s176 = ssub.s32 128, 128
      %177 = vsyncadd [#allocation13], %s176
      %s179 = sshll.u32 [#allocation12], 4
      %s180 = int_to_ptr.vmem [resolvable:$true] %s179
      %182 = dma.hbm_to_vmem [thread:$0]  %s15, 128, %s180, [#allocation13]
    $region33: #{fc_forward.1} parent=1 // pred_fallthru
      _
    // Predicated region
    $region34: #{fc_forward.1} parent=1 // pred_check
      _
    $region35: #{fc_forward.1} parent=1 // pred_check_branch
      %184 = sbr.rel (0) target = $region37
    $region36: #{fc_forward.1} parent=1 // pred_region
      %s186 = ssub.s32 16, 16
      %187 = vsyncadd [#allocation13], %s186
      %s189 = sshll.u32 [#allocation14], 4
      %s190 = int_to_ptr.vmem [resolvable:$true] %s189
      %192 = dma.hbm_to_vmem [thread:$0]  %s17, 16, %s190, [#allocation13]
    $region37: #{fc_forward.1} parent=1 // pred_fallthru
      _
    // Predicated region
    $region38: #{fc_forward.1} parent=1 // pred_check
      _
    $region39: #{fc_forward.1} parent=1 // pred_check_branch
      %194 = sbr.rel (0) target = $region41
    $region40: #{fc_forward.1} parent=1 // pred_region
      %s196 = ssub.s32 1024, 1024
      %197 = vsyncadd [#allocation16], %s196
      %s198 = sshll.u32 [#allocation15], 4
      %s199 = int_to_ptr.vmem [resolvable:$true] %s198
      %204 = dma.hbm_to_vmem [thread:$0]  %s19, 1024, %s199, [#allocation16], 128, 128, 8
    $region41: #{fc_forward.1} parent=1 // pred_fallthru
      _
    // Predicated region
    $region42: #{fc_forward.1} parent=1 // pred_check
      _
    $region43: #{fc_forward.1} parent=1 // pred_check_branch
      %206 = sbr.rel (0) target = $region45
    $region44: #{fc_forward.1} parent=1 // pred_region
      %s208 = ssub.s32 16, 16
      %209 = vsyncadd [#allocation16], %s208
      %s211 = sshll.u32 [#allocation17], 4
      %s212 = int_to_ptr.vmem [resolvable:$true] %s211
      %214 = dma.hbm_to_vmem [thread:$0]  %s21, 16, %s212, [#allocation16]
    $region45: #{fc_forward.1} parent=1 // pred_fallthru
      _
    // Predicated region
    $region46: #{fc_forward.1} parent=1 // pred_check
      _
    $region47: #{fc_forward.1} parent=1 // pred_check_branch
      %216 = sbr.rel (0) target = $region49
    $region48: #{fc_forward.1} parent=1 // pred_region
      %s218 = ssub.s32 512, 512
      %219 = vsyncadd [#allocation19], %s218
      %s220 = sshll.u32 [#allocation18], 4
      %s221 = int_to_ptr.vmem [resolvable:$true] %s220
      %226 = dma.hbm_to_vmem [thread:$0]  %s23, 512, %s221, [#allocation19], 128, 128, 8
    $region49: #{fc_forward.1} parent=1 // pred_fallthru
      _
    // Predicated region
    $region50: #{fc_forward.1} parent=1 // pred_check
      _
    $region51: #{fc_forward.1} parent=1 // pred_check_branch
      %228 = sbr.rel (0) target = $region53
    $region52: #{fc_forward.1} parent=1 // pred_region
      %s230 = ssub.s32 16, 16
      %231 = vsyncadd [#allocation19], %s230
      %s233 = sshll.u32 [#allocation20], 4
      %s234 = int_to_ptr.vmem [resolvable:$true] %s233
      %236 = dma.hbm_to_vmem [thread:$0]  %s25, 16, %s234, [#allocation19]
    $region53: #{fc_forward.1} parent=1 // pred_fallthru
      _
    // Predicated region
    $region54: #{fc_forward.1} parent=1 // pred_check
      _
    $region55: #{fc_forward.1} parent=1 // pred_check_branch
      %238 = sbr.rel (0) target = $region57
    $region56: #{fc_forward.1} parent=1 // pred_region
      %s240 = ssub.s32 1024, 1024
      %241 = vsyncadd [#allocation22], %s240
      %s242 = sshll.u32 [#allocation21], 4
      %s243 = int_to_ptr.vmem [resolvable:$true] %s242
      %248 = dma.hbm_to_vmem [thread:$0]  %s27, 1024, %s243, [#allocation22], 128, 128, 8
    $region57: #{fc_forward.1} parent=1 // pred_fallthru
      _
    // Predicated region
    $region58: #{fc_forward.1} parent=1 // pred_check
      _
    $region59: #{fc_forward.1} parent=1 // pred_check_branch
      %250 = sbr.rel (0) target = $region61
    $region60: #{fc_forward.1} parent=1 // pred_region
      %s252 = ssub.s32 16, 16
      %253 = vsyncadd [#allocation22], %s252
      %s255 = sshll.u32 [#allocation23], 4
      %s256 = int_to_ptr.vmem [resolvable:$true] %s255
      %258 = dma.hbm_to_vmem [thread:$0]  %s29, 16, %s256, [#allocation22]
    $region61: #{fc_forward.1} parent=1 // pred_fallthru
      _
    // Predicated region
    $region62: #{fc_forward.1} parent=1 // pred_check
      _
    $region63: #{fc_forward.1} parent=1 // pred_check_branch
      %260 = sbr.rel (0) target = $region65
    $region64: #{fc_forward.1} parent=1 // pred_region
      %s262 = ssub.s32 128, 128
      %263 = vsyncadd [#allocation25], %s262
      %s265 = sshll.u32 [#allocation24], 4
      %s266 = int_to_ptr.vmem [resolvable:$true] %s265
      %268 = dma.hbm_to_vmem [thread:$0]  %s31, 128, %s266, [#allocation25]
    $region65: #{fc_forward.1} parent=1 // pred_fallthru
      _
    // Predicated region
    $region66: #{fc_forward.1} parent=1 // pred_check
      _
    $region67: #{fc_forward.1} parent=1 // pred_check_branch
      %270 = sbr.rel (0) target = $region69
    $region68: #{fc_forward.1} parent=1 // pred_region
      %s272 = ssub.s32 16, 16
      %273 = vsyncadd [#allocation25], %s272
      %s275 = sshll.u32 [#allocation26], 4
      %s276 = int_to_ptr.vmem [resolvable:$true] %s275
      %278 = dma.hbm_to_vmem [thread:$0]  %s33, 16, %s276, [#allocation25]
    $region69: #{fc_forward.1} parent=1 // pred_fallthru
      _
    // Predicated region
    $region70: #{fc_forward.1} parent=1 // pred_check
      _
    $region71: #{fc_forward.1} parent=1 // pred_check_branch
      %280 = sbr.rel (0) target = $region73
    $region72: #{fc_forward.1} parent=1 // pred_region
      %s282 = ssub.s32 512, 512
      %283 = vsyncadd [#allocation28], %s282
      %s284 = sshll.u32 [#allocation27], 4
      %s285 = int_to_ptr.vmem [resolvable:$true] %s284
      %290 = dma.hbm_to_vmem [thread:$0]  %s35, 512, %s285, [#allocation28], 128, 128, 8
    $region73: #{fc_forward.1} parent=1 // pred_fallthru
      _
    // Predicated region
    $region74: #{fc_forward.1} parent=1 // pred_check
      _
    $region75: #{fc_forward.1} parent=1 // pred_check_branch
      %292 = sbr.rel (0) target = $region77
    $region76: #{fc_forward.1} parent=1 // pred_region
      %s294 = ssub.s32 16, 16
      %295 = vsyncadd [#allocation28], %s294
      %s297 = sshll.u32 [#allocation29], 4
      %s298 = int_to_ptr.vmem [resolvable:$true] %s297
      %300 = dma.hbm_to_vmem [thread:$0]  %s37, 16, %s298, [#allocation28]
    $region77: #{fc_forward.1} parent=1 // pred_fallthru
      _
    // Predicated region
    $region78: #{fc_forward.1} parent=1 // pred_check
      _
    $region79: #{fc_forward.1} parent=1 // pred_check_branch
      %302 = sbr.rel (0) target = $region81
    $region80: #{fc_forward.1} parent=1 // pred_region
      %s304 = ssub.s32 256, 256
      %305 = vsyncadd [#allocation31], %s304
      %s306 = sshll.u32 [#allocation30], 4
      %s307 = int_to_ptr.vmem [resolvable:$true] %s306
      %312 = dma.hbm_to_vmem [thread:$0]  %s39, 256, %s307, [#allocation31], 128, 128, 8
    $region81: #{fc_forward.1} parent=1 // pred_fallthru
      _
    // Predicated region
    $region82: #{fc_forward.1} parent=1 // pred_check
      _
    $region83: #{fc_forward.1} parent=1 // pred_check_branch
      %314 = sbr.rel (0) target = $region85
    $region84: #{fc_forward.1} parent=1 // pred_region
      %s316 = ssub.s32 16, 16
      %317 = vsyncadd [#allocation31], %s316
      %s319 = sshll.u32 [#allocation32], 4
      %s320 = int_to_ptr.vmem [resolvable:$true] %s319
      %322 = dma.hbm_to_vmem [thread:$0]  %s41, 16, %s320, [#allocation31]
    $region85: #{fc_forward.1} parent=1 // pred_fallthru
      _
    // Predicated region
    $region86: #{fc_forward.1} parent=1 // pred_check
      _
    $region87: #{fc_forward.1} parent=1 // pred_check_branch
      %324 = sbr.rel (0) target = $region89
    $region88: #{fc_forward.1} parent=1 // pred_region
      %s326 = ssub.s32 512, 512
      %327 = vsyncadd [#allocation34], %s326
      %s328 = sshll.u32 [#allocation33], 4
      %s329 = int_to_ptr.vmem [resolvable:$true] %s328
      %334 = dma.hbm_to_vmem [thread:$0]  %s43, 512, %s329, [#allocation34], 128, 128, 8
    $region89: #{fc_forward.1} parent=1 // pred_fallthru
      _
    // Predicated region
    $region90: #{fc_forward.1} parent=1 // pred_check
      _
    $region91: #{fc_forward.1} parent=1 // pred_check_branch
      %336 = sbr.rel (0) target = $region93
    $region92: #{fc_forward.1} parent=1 // pred_region
      %s338 = ssub.s32 16, 16
      %339 = vsyncadd [#allocation34], %s338
      %s341 = sshll.u32 [#allocation35], 4
      %s342 = int_to_ptr.vmem [resolvable:$true] %s341
      %344 = dma.hbm_to_vmem [thread:$0]  %s45, 16, %s342, [#allocation34]
    $region93: #{fc_forward.1} parent=1 // pred_fallthru
      _
    // Predicated region
    $region94: #{fc_forward.1} parent=1 // pred_check
      _
    $region95: #{fc_forward.1} parent=1 // pred_check_branch
      %346 = sbr.rel (0) target = $region97
    $region96: #{fc_forward.1} parent=1 // pred_region
      %s348 = ssub.s32 512, 512
      %349 = vsyncadd [#allocation37], %s348
      %s350 = sshll.u32 [#allocation36], 4
      %s351 = int_to_ptr.vmem [resolvable:$true] %s350
      %356 = dma.hbm_to_vmem [thread:$0]  %s47, 512, %s351, [#allocation37], 128, 128, 8
    $region97: #{fc_forward.1} parent=1 // pred_fallthru
      _
    // Predicated region
    $region98: #{fc_forward.1} parent=1 // pred_check
      _
    $region99: #{fc_forward.1} parent=1 // pred_check_branch
      %358 = sbr.rel (0) target = $region101
    $region100: #{fc_forward.1} parent=1 // pred_region
      %s360 = ssub.s32 16, 16
      %361 = vsyncadd [#allocation37], %s360
      %s363 = sshll.u32 [#allocation38], 4
      %s364 = int_to_ptr.vmem [resolvable:$true] %s363
      %366 = dma.hbm_to_vmem [thread:$0]  %s49, 16, %s364, [#allocation37]
    $region101: #{fc_forward.1} parent=1 // pred_fallthru
      _
    // Predicated region
    $region102: #{fc_forward.1} parent=1 // pred_check
      _
    $region103: #{fc_forward.1} parent=1 // pred_check_branch
      %368 = sbr.rel (0) target = $region105
    $region104: #{fc_forward.1} parent=1 // pred_region
      %s370 = ssub.s32 128, 128
      %371 = vsyncadd [#allocation40], %s370
      %s373 = sshll.u32 [#allocation39], 4
      %s374 = int_to_ptr.vmem [resolvable:$true] %s373
      %376 = dma.hbm_to_vmem [thread:$0]  %s51, 128, %s374, [#allocation40]
    $region105: #{fc_forward.1} parent=1 // pred_fallthru
      _
    // Predicated region
    $region106: #{fc_forward.1} parent=1 // pred_check
      _
    $region107: #{fc_forward.1} parent=1 // pred_check_branch
      %378 = sbr.rel (0) target = $region109
    $region108: #{fc_forward.1} parent=1 // pred_region
      %s380 = ssub.s32 16, 16
      %381 = vsyncadd [#allocation40], %s380
      %s383 = sshll.u32 [#allocation41], 4
      %s384 = int_to_ptr.vmem [resolvable:$true] %s383
      %386 = dma.hbm_to_vmem [thread:$0]  %s53, 16, %s384, [#allocation40]
    $region109: #{fc_forward.1} parent=1 // pred_fallthru
      _
    // Predicated region
    $region110: #{fc_forward.1} parent=1 // pred_check
      _
    $region111: #{fc_forward.1} parent=1 // pred_check_branch
      %388 = sbr.rel (0) target = $region113
    $region112: #{fc_forward.1} parent=1 // pred_region
      %s390 = ssub.s32 512, 512
      %391 = vsyncadd [#allocation43], %s390
      %s392 = sshll.u32 [#allocation42], 4
      %s393 = int_to_ptr.vmem [resolvable:$true] %s392
      %398 = dma.hbm_to_vmem [thread:$0]  %s55, 512, %s393, [#allocation43], 128, 128, 8
    $region113: #{fc_forward.1} parent=1 // pred_fallthru
      _
    // Predicated region
    $region114: #{fc_forward.1} parent=1 // pred_check
      _
    $region115: #{fc_forward.1} parent=1 // pred_check_branch
      %400 = sbr.rel (0) target = $region117
    $region116: #{fc_forward.1} parent=1 // pred_region
      %s402 = ssub.s32 16, 16
      %403 = vsyncadd [#allocation43], %s402
      %s405 = sshll.u32 [#allocation44], 4
      %s406 = int_to_ptr.vmem [resolvable:$true] %s405
      %408 = dma.hbm_to_vmem [thread:$0]  %s57, 16, %s406, [#allocation43]
    $region117: #{fc_forward.1} parent=1 // pred_fallthru
      _
    // Predicated region
    $region118: #{fc_forward.1} parent=1 // pred_check
      _
    $region119: #{fc_forward.1} parent=1 // pred_check_branch
      %410 = sbr.rel (0) target = $region121
    $region120: #{fc_forward.1} parent=1 // pred_region
      %s412 = ssub.s32 256, 256
      %413 = vsyncadd [#allocation46], %s412
      %s414 = sshll.u32 [#allocation45], 4
      %s415 = int_to_ptr.vmem [resolvable:$true] %s414
      %420 = dma.hbm_to_vmem [thread:$0]  %s59, 256, %s415, [#allocation46], 128, 128, 8
    $region121: #{fc_forward.1} parent=1 // pred_fallthru
      _
    // Predicated region
    $region122: #{fc_forward.1} parent=1 // pred_check
      _
    $region123: #{fc_forward.1} parent=1 // pred_check_branch
      %422 = sbr.rel (0) target = $region125
    $region124: #{fc_forward.1} parent=1 // pred_region
      %s424 = ssub.s32 16, 16
      %425 = vsyncadd [#allocation46], %s424
      %s427 = sshll.u32 [#allocation47], 4
      %s428 = int_to_ptr.vmem [resolvable:$true] %s427
      %430 = dma.hbm_to_vmem [thread:$0]  %s61, 16, %s428, [#allocation46]
    $region125: #{fc_forward.1} parent=1 // pred_fallthru
      _
    // Predicated region
    $region126: #{fc_forward.1} parent=1 // pred_check
      _
    $region127: #{fc_forward.1} parent=1 // pred_check_branch
      %432 = sbr.rel (0) target = $region129
    $region128: #{fc_forward.1} parent=1 // pred_region
      %s434 = ssub.s32 1024, 1024
      %435 = vsyncadd [#allocation49], %s434
      %s436 = sshll.u32 [#allocation48], 4
      %s437 = int_to_ptr.vmem [resolvable:$true] %s436
      %442 = dma.hbm_to_vmem [thread:$0]  %s63, 1024, %s437, [#allocation49], 128, 128, 8
    $region129: #{fc_forward.1} parent=1 // pred_fallthru
      _
    // Predicated region
    $region130: #{fc_forward.1} parent=1 // pred_check
      _
    $region131: #{fc_forward.1} parent=1 // pred_check_branch
      %444 = sbr.rel (0) target = $region133
    $region132: #{fc_forward.1} parent=1 // pred_region
      %s446 = ssub.s32 16, 16
      %447 = vsyncadd [#allocation49], %s446
      %s449 = sshll.u32 [#allocation50], 4
      %s450 = int_to_ptr.vmem [resolvable:$true] %s449
      %452 = dma.hbm_to_vmem [thread:$0]  %s65, 16, %s450, [#allocation49]
    $region133: #{fc_forward.1} parent=1 // pred_fallthru
      _
    // Predicated region
    $region134: #{fc_forward.1} parent=1 // pred_check
      _
    $region135: #{fc_forward.1} parent=1 // pred_check_branch
      %454 = sbr.rel (0) target = $region137
    $region136: #{fc_forward.1} parent=1 // pred_region
      %s456 = ssub.s32 128, 128
      %457 = vsyncadd [#allocation52], %s456
      %s459 = sshll.u32 [#allocation51], 4
      %s460 = int_to_ptr.vmem [resolvable:$true] %s459
      %462 = dma.hbm_to_vmem [thread:$0]  %s67, 128, %s460, [#allocation52]
    $region137: #{fc_forward.1} parent=1 // pred_fallthru
      _
    // Predicated region
    $region138: #{fc_forward.1} parent=1 // pred_check
      _
    $region139: #{fc_forward.1} parent=1 // pred_check_branch
      %464 = sbr.rel (0) target = $region141
    $region140: #{fc_forward.1} parent=1 // pred_region
      %s466 = ssub.s32 16, 16
      %467 = vsyncadd [#allocation52], %s466
      %s469 = sshll.u32 [#allocation53], 4
      %s470 = int_to_ptr.vmem [resolvable:$true] %s469
      %472 = dma.hbm_to_vmem [thread:$0]  %s69, 16, %s470, [#allocation52]
    $region141: #{fc_forward.1} parent=1 // pred_fallthru
      _
    // Predicated region
    $region142: #{fc_forward.1} parent=1 // pred_check
      _
    $region143: #{fc_forward.1} parent=1 // pred_check_branch
      %474 = sbr.rel (0) target = $region145
    $region144: #{fc_forward.1} parent=1 // pred_region
      _
    $region145: #{fc_forward.1} parent=1 // pred_fallthru
      _
    // Predicated region
    $region146: #{fc_forward.1} parent=1 // pred_check
      _
    $region147: #{fc_forward.1} parent=1 // pred_check_branch
      %476 = sbr.rel (0) target = $region149
    $region148: #{fc_forward.1} parent=1 // pred_region
      %s478 = ssub.s32 16, 16
      %479 = vsyncadd [#allocation55], %s478
      %s481 = sshll.u32 [#allocation54], 4
      %s482 = int_to_ptr.vmem [resolvable:$true] %s481
      %484 = dma.hbm_to_vmem [thread:$0]  %s73, 16, %s482, [#allocation55]
    $region149: #{fc_forward.1} parent=1 // pred_fallthru
      _
    // Predicated region
    $region150: #{fc_forward.1} parent=1 // pred_check
      _
    $region151: #{fc_forward.1} parent=1 // pred_check_branch
      %486 = sbr.rel (0) target = $region153
    $region152: #{fc_forward.1} parent=1 // pred_region
      _
    $region153: #{fc_forward.1} parent=1 // pred_fallthru
      _
    // Predicated region
    $region154: #{fc_forward.1} parent=1 // pred_check
      _
    $region155: #{fc_forward.1} parent=1 // pred_check_branch
      %488 = sbr.rel (0) target = $region157
    $region156: #{fc_forward.1} parent=1 // pred_region
      _
    $region157: #{fc_forward.1} parent=1 // pred_fallthru
      _
    // Predicated region
    $region158: #{fc_forward.1} parent=1 // pred_check
      _
    $region159: #{fc_forward.1} parent=1 // pred_check_branch
      %490 = sbr.rel (0) target = $region161
    $region160: #{fc_forward.1} parent=1 // pred_region
      _
    $region161: #{fc_forward.1} parent=1 // pred_fallthru
      _
    // Predicated region
    $region162: #{fc_forward.1} parent=1 // pred_check
      _
    $region163: #{fc_forward.1} parent=1 // pred_check_branch
      %492 = sbr.rel (0) target = $region165
    $region164: #{fc_forward.1} parent=1 // pred_region
      _
    $region165: #{fc_forward.1} parent=1 // pred_fallthru
      _
    // Predicated region
    $region166: #{fc_forward.1} parent=1 // pred_check
      _
    $region167: #{fc_forward.1} parent=1 // pred_check_branch
      %494 = sbr.rel (0) target = $region169
    $region168: #{fc_forward.1} parent=1 // pred_region
      %495 = dma.done [#allocation4], 16
    $region169: #{fc_forward.1} parent=1 // pred_fallthru
      _
    // Predicated region
    $region170: #{fc_forward.1} parent=1 // pred_check
      _
    $region171: #{fc_forward.1} parent=1 // pred_check_branch
      %497 = sbr.rel (0) target = $region173
    $region172: #{fc_forward.1} parent=1 // pred_region
      %498 = dma.done [#allocation3], 768
    $region173: #{fc_forward.1} parent=1 // pred_fallthru
      _
    // Predicated region
    $region174: #{fc_forward.1} parent=1 // pred_check
      _
    $region175: #{fc_forward.1} parent=1 // pred_check_branch
      %500 = sbr.rel (0) target = $region177
    $region176: #{fc_forward.1} parent=1 // pred_region
      %501 = dma.done [#allocation7], 16
    $region177: #{fc_forward.1} parent=1 // pred_fallthru
      _
    // Predicated region
    $region178: #{fc_forward.1} parent=1 // pred_check
      _
    $region179: #{fc_forward.1} parent=1 // pred_check_branch
      %503 = sbr.rel (0) target = $region181
    $region180: #{fc_forward.1} parent=1 // pred_region
      %504 = dma.done [#allocation7], 256
    $region181: #{fc_forward.1} parent=1 // pred_fallthru
      _
    // Predicated region
    $region182: #{fc_forward.1} parent=1 // pred_check
      _
    $region183: #{fc_forward.1} parent=1 // pred_check_branch
      %506 = sbr.rel (0) target = $region185
    $region184: #{fc_forward.1} parent=1 // pred_region
      %507 = dma.done [#allocation10], 2048
    $region185: #{fc_forward.1} parent=1 // pred_fallthru
      _
    // Predicated region
    $region186: #{fc_forward.1} parent=1 // pred_check
      _
    $region187: #{fc_forward.1} parent=1 // pred_check_branch
      %509 = sbr.rel (0) target = $region189
    $region188: #{fc_forward.1} parent=1 // pred_region
      %510 = dma.done [#allocation10], 16
    $region189: #{fc_forward.1} parent=1 // pred_fallthru
      _
    // Predicated region
    $region190: #{fc_forward.1} parent=1 // pred_check
      _
    $region191: #{fc_forward.1} parent=1 // pred_check_branch
      %512 = sbr.rel (0) target = $region193
    $region192: #{fc_forward.1} parent=1 // pred_region
      %513 = dma.done [#allocation13], 128
    $region193: #{fc_forward.1} parent=1 // pred_fallthru
      _
    // Predicated region
    $region194: #{fc_forward.1} parent=1 // pred_check
      _
    $region195: #{fc_forward.1} parent=1 // pred_check_branch
      %515 = sbr.rel (0) target = $region197
    $region196: #{fc_forward.1} parent=1 // pred_region
      %516 = dma.done [#allocation13], 16
    $region197: #{fc_forward.1} parent=1 // pred_fallthru
      _
    // Predicated region
    $region198: #{fc_forward.1} parent=1 // pred_check
      _
    $region199: #{fc_forward.1} parent=1 // pred_check_branch
      %518 = sbr.rel (0) target = $region201
    $region200: #{fc_forward.1} parent=1 // pred_region
      %519 = dma.done [#allocation16], 1024
    $region201: #{fc_forward.1} parent=1 // pred_fallthru
      _
    // Predicated region
    $region202: #{fc_forward.1} parent=1 // pred_check
      _
    $region203: #{fc_forward.1} parent=1 // pred_check_branch
      %521 = sbr.rel (0) target = $region205
    $region204: #{fc_forward.1} parent=1 // pred_region
      %522 = dma.done [#allocation16], 16
    $region205: #{fc_forward.1} parent=1 // pred_fallthru
      _
    // Predicated region
    $region206: #{fc_forward.1} parent=1 // pred_check
      _
    $region207: #{fc_forward.1} parent=1 // pred_check_branch
      %524 = sbr.rel (0) target = $region209
    $region208: #{fc_forward.1} parent=1 // pred_region
      %525 = dma.done [#allocation19], 512
    $region209: #{fc_forward.1} parent=1 // pred_fallthru
      _
    // Predicated region
    $region210: #{fc_forward.1} parent=1 // pred_check
      _
    $region211: #{fc_forward.1} parent=1 // pred_check_branch
      %527 = sbr.rel (0) target = $region213
    $region212: #{fc_forward.1} parent=1 // pred_region
      %528 = dma.done [#allocation19], 16
    $region213: #{fc_forward.1} parent=1 // pred_fallthru
      _
    // Predicated region
    $region214: #{fc_forward.1} parent=1 // pred_check
      _
    $region215: #{fc_forward.1} parent=1 // pred_check_branch
      %530 = sbr.rel (0) target = $region217
    $region216: #{fc_forward.1} parent=1 // pred_region
      %531 = dma.done [#allocation22], 1024
    $region217: #{fc_forward.1} parent=1 // pred_fallthru
      _
    // Predicated region
    $region218: #{fc_forward.1} parent=1 // pred_check
      _
    $region219: #{fc_forward.1} parent=1 // pred_check_branch
      %533 = sbr.rel (0) target = $region221
    $region220: #{fc_forward.1} parent=1 // pred_region
      %534 = dma.done [#allocation22], 16
    $region221: #{fc_forward.1} parent=1 // pred_fallthru
      _
    // Predicated region
    $region222: #{fc_forward.1} parent=1 // pred_check
      _
    $region223: #{fc_forward.1} parent=1 // pred_check_branch
      %536 = sbr.rel (0) target = $region225
    $region224: #{fc_forward.1} parent=1 // pred_region
      %537 = dma.done [#allocation25], 128
    $region225: #{fc_forward.1} parent=1 // pred_fallthru
      _
    // Predicated region
    $region226: #{fc_forward.1} parent=1 // pred_check
      _
    $region227: #{fc_forward.1} parent=1 // pred_check_branch
      %539 = sbr.rel (0) target = $region229
    $region228: #{fc_forward.1} parent=1 // pred_region
      %540 = dma.done [#allocation25], 16
    $region229: #{fc_forward.1} parent=1 // pred_fallthru
      _
    // Predicated region
    $region230: #{fc_forward.1} parent=1 // pred_check
      _
    $region231: #{fc_forward.1} parent=1 // pred_check_branch
      %542 = sbr.rel (0) target = $region233
    $region232: #{fc_forward.1} parent=1 // pred_region
      %543 = dma.done [#allocation28], 512
    $region233: #{fc_forward.1} parent=1 // pred_fallthru
      _
    // Predicated region
    $region234: #{fc_forward.1} parent=1 // pred_check
      _
    $region235: #{fc_forward.1} parent=1 // pred_check_branch
      %545 = sbr.rel (0) target = $region237
    $region236: #{fc_forward.1} parent=1 // pred_region
      %546 = dma.done [#allocation28], 16
    $region237: #{fc_forward.1} parent=1 // pred_fallthru
      _
    // Predicated region
    $region238: #{fc_forward.1} parent=1 // pred_check
      _
    $region239: #{fc_forward.1} parent=1 // pred_check_branch
      %548 = sbr.rel (0) target = $region241
    $region240: #{fc_forward.1} parent=1 // pred_region
      %549 = dma.done [#allocation31], 256
    $region241: #{fc_forward.1} parent=1 // pred_fallthru
      _
    // Predicated region
    $region242: #{fc_forward.1} parent=1 // pred_check
      _
    $region243: #{fc_forward.1} parent=1 // pred_check_branch
      %551 = sbr.rel (0) target = $region245
    $region244: #{fc_forward.1} parent=1 // pred_region
      %552 = dma.done [#allocation31], 16
    $region245: #{fc_forward.1} parent=1 // pred_fallthru
      _
    // Predicated region
    $region246: #{fc_forward.1} parent=1 // pred_check
      _
    $region247: #{fc_forward.1} parent=1 // pred_check_branch
      %554 = sbr.rel (0) target = $region249
    $region248: #{fc_forward.1} parent=1 // pred_region
      %555 = dma.done [#allocation34], 512
    $region249: #{fc_forward.1} parent=1 // pred_fallthru
      _
    // Predicated region
    $region250: #{fc_forward.1} parent=1 // pred_check
      _
    $region251: #{fc_forward.1} parent=1 // pred_check_branch
      %557 = sbr.rel (0) target = $region253
    $region252: #{fc_forward.1} parent=1 // pred_region
      %558 = dma.done [#allocation34], 16
    $region253: #{fc_forward.1} parent=1 // pred_fallthru
      _
    // Predicated region
    $region254: #{fc_forward.1} parent=1 // pred_check
      _
    $region255: #{fc_forward.1} parent=1 // pred_check_branch
      %560 = sbr.rel (0) target = $region257
    $region256: #{fc_forward.1} parent=1 // pred_region
      %561 = dma.done [#allocation37], 512
    $region257: #{fc_forward.1} parent=1 // pred_fallthru
      _
    // Predicated region
    $region258: #{fc_forward.1} parent=1 // pred_check
      _
    $region259: #{fc_forward.1} parent=1 // pred_check_branch
      %563 = sbr.rel (0) target = $region261
    $region260: #{fc_forward.1} parent=1 // pred_region
      %564 = dma.done [#allocation37], 16
    $region261: #{fc_forward.1} parent=1 // pred_fallthru
      _
    // Predicated region
    $region262: #{fc_forward.1} parent=1 // pred_check
      _
    $region263: #{fc_forward.1} parent=1 // pred_check_branch
      %566 = sbr.rel (0) target = $region265
    $region264: #{fc_forward.1} parent=1 // pred_region
      %567 = dma.done [#allocation40], 128
    $region265: #{fc_forward.1} parent=1 // pred_fallthru
      _
    // Predicated region
    $region266: #{fc_forward.1} parent=1 // pred_check
      _
    $region267: #{fc_forward.1} parent=1 // pred_check_branch
      %569 = sbr.rel (0) target = $region269
    $region268: #{fc_forward.1} parent=1 // pred_region
      %570 = dma.done [#allocation40], 16
    $region269: #{fc_forward.1} parent=1 // pred_fallthru
      _
    // Predicated region
    $region270: #{fc_forward.1} parent=1 // pred_check
      _
    $region271: #{fc_forward.1} parent=1 // pred_check_branch
      %572 = sbr.rel (0) target = $region273
    $region272: #{fc_forward.1} parent=1 // pred_region
      %573 = dma.done [#allocation43], 512
    $region273: #{fc_forward.1} parent=1 // pred_fallthru
      _
    // Predicated region
    $region274: #{fc_forward.1} parent=1 // pred_check
      _
    $region275: #{fc_forward.1} parent=1 // pred_check_branch
      %575 = sbr.rel (0) target = $region277
    $region276: #{fc_forward.1} parent=1 // pred_region
      %576 = dma.done [#allocation43], 16
    $region277: #{fc_forward.1} parent=1 // pred_fallthru
      _
    // Predicated region
    $region278: #{fc_forward.1} parent=1 // pred_check
      _
    $region279: #{fc_forward.1} parent=1 // pred_check_branch
      %578 = sbr.rel (0) target = $region281
    $region280: #{fc_forward.1} parent=1 // pred_region
      %579 = dma.done [#allocation46], 256
    $region281: #{fc_forward.1} parent=1 // pred_fallthru
      _
    // Predicated region
    $region282: #{fc_forward.1} parent=1 // pred_check
      _
    $region283: #{fc_forward.1} parent=1 // pred_check_branch
      %581 = sbr.rel (0) target = $region285
    $region284: #{fc_forward.1} parent=1 // pred_region
      %582 = dma.done [#allocation46], 16
    $region285: #{fc_forward.1} parent=1 // pred_fallthru
      _
    // Predicated region
    $region286: #{fc_forward.1} parent=1 // pred_check
      _
    $region287: #{fc_forward.1} parent=1 // pred_check_branch
      %584 = sbr.rel (0) target = $region289
    $region288: #{fc_forward.1} parent=1 // pred_region
      %585 = dma.done [#allocation49], 1024
    $region289: #{fc_forward.1} parent=1 // pred_fallthru
      _
    // Predicated region
    $region290: #{fc_forward.1} parent=1 // pred_check
      _
    $region291: #{fc_forward.1} parent=1 // pred_check_branch
      %587 = sbr.rel (0) target = $region293
    $region292: #{fc_forward.1} parent=1 // pred_region
      %588 = dma.done [#allocation49], 16
    $region293: #{fc_forward.1} parent=1 // pred_fallthru
      _
    // Predicated region
    $region294: #{fc_forward.1} parent=1 // pred_check
      _
    $region295: #{fc_forward.1} parent=1 // pred_check_branch
      %590 = sbr.rel (0) target = $region297
    $region296: #{fc_forward.1} parent=1 // pred_region
      %591 = dma.done [#allocation52], 128
    $region297: #{fc_forward.1} parent=1 // pred_fallthru
      _
    // Predicated region
    $region298: #{fc_forward.1} parent=1 // pred_check
      _
    $region299: #{fc_forward.1} parent=1 // pred_check_branch
      %593 = sbr.rel (0) target = $region301
    $region300: #{fc_forward.1} parent=1 // pred_region
      %594 = dma.done [#allocation52], 16
    $region301: #{fc_forward.1} parent=1 // pred_fallthru
      _
    // Predicated region
    $region302: #{fc_forward.1} parent=1 // pred_check
      _
    $region303: #{fc_forward.1} parent=1 // pred_check_branch
      %596 = sbr.rel (0) target = $region305
    $region304: #{fc_forward.1} parent=1 // pred_region
      %597 = dma.done [#allocation55], 16
    $region305: #{fc_forward.1} parent=1 // pred_fallthru
      _
    %598 = sfence
    %v599 = vlaneseq
    %v600 = vand.u32 %v599, 127
    %v601 = vlaneseq
    %v602 = vshrl.u32 %v601, 7
    %s603 = sld [smem:[#allocation2]]
    %vm604 = vcmp.eq.s32.totalorder %v602, 0
    %v605 = vstv %s603
    %vm606 = vcmp.eq.s32.totalorder %v600, %v605
    %vm607 = vmand %vm604, %vm606
    %v608 = vsel %vm607, 1.0, 0.0
    %s609 = sld [smem:[#allocation2 + $0x1]]
    %vm610 = vcmp.eq.s32.totalorder %v602, 1
    %v611 = vstv %s609
    %vm612 = vcmp.eq.s32.totalorder %v600, %v611
    %vm613 = vmand %vm610, %vm612
    %v614 = vsel %vm613, 1.0, %v608
    %v615 = vld [vmem:[#allocation8] sm:$0xff]
    %v616 = vld [vmem:[#allocation8 + $0x8] sm:$0xff]
    %vm617 = vcmask 130048
    %v619 = vsel %vm617, %v614, 0
    %621 = vmatprep.subr.mxu0 0.0
    %622 = vmatpush1.msra.mxu0 %v615
    %623 = vmatprep.subr.mxu0 0.0
    %624 = vmatpush1.msra.mxu0 %v616
    %625 = vmatprep.subr.mxu0 0.0
    %626 = vmatpush1.msra.mxu0 0.0
    %627 = vmatprep.subr.mxu0 0.0
    %628 = vmatpush1.msra.mxu0 0.0
    %629 = vmatprep.subr.mxu0 0.0
    %630 = vmatpush1.msra.mxu0 0.0
    %631 = vmatprep.subr.mxu0 0.0
    %632 = vmatpush1.msra.mxu0 0.0
    %633 = vmatprep.subr.mxu0 0.0
    %634 = vmatpush1.msra.mxu0 0.0
    %635 = vmatprep.subr.mxu0 0.0
    %636 = vmatpush1.msra.mxu0 0.0
    %637 = vmatprep.subr.mxu0 0.0
    %638 = vmatpush1.msra.mxu0 0.0
    %639 = vmatprep.subr.mxu0 0.0
    %640 = vmatpush1.msra.mxu0 0.0
    %641 = vmatprep.subr.mxu0 0.0
    %642 = vmatpush1.msra.mxu0 0.0
    %643 = vmatprep.subr.mxu0 0.0
    %644 = vmatpush1.msra.mxu0 0.0
    %645 = vmatprep.subr.mxu0 0.0
    %646 = vmatpush1.msra.mxu0 0.0
    %647 = vmatprep.subr.mxu0 0.0
    %648 = vmatpush1.msra.mxu0 0.0
    %649 = vmatprep.subr.mxu0 0.0
    %650 = vmatpush1.msra.mxu0 0.0
    %651 = vmatprep.subr.mxu0 0.0
    %652 = vmatpush1.msra.mxu0 0.0
    %653 = vmatprep.subr.mxu0 0.0
    %654 = vmatpush1.msra.mxu0 0.0
    %655 = vmatprep.subr.mxu0 0.0
    %656 = vmatpush1.msra.mxu0 0.0
    %657 = vmatprep.subr.mxu0 0.0
    %658 = vmatpush1.msra.mxu0 0.0
    %659 = vmatprep.subr.mxu0 0.0
    %660 = vmatpush1.msra.mxu0 0.0
    %661 = vmatprep.subr.mxu0 0.0
    %662 = vmatpush1.msra.mxu0 0.0
    %663 = vmatprep.subr.mxu0 0.0
    %664 = vmatpush1.msra.mxu0 0.0
    %665 = vmatprep.subr.mxu0 0.0
    %666 = vmatpush1.msra.mxu0 0.0
    %667 = vmatprep.subr.mxu0 0.0
    %668 = vmatpush1.msra.mxu0 0.0
    %669 = vmatprep.subr.mxu0 0.0
    %670 = vmatpush1.msra.mxu0 0.0
    %671 = vmatprep.subr.mxu0 0.0
    %672 = vmatpush1.msra.mxu0 0.0
    %673 = vmatprep.subr.mxu0 0.0
    %674 = vmatpush1.msra.mxu0 0.0
    %675 = vmatprep.subr.mxu0 0.0
    %676 = vmatpush1.msra.mxu0 0.0
    %677 = vmatprep.subr.mxu0 0.0
    %678 = vmatpush1.msra.mxu0 0.0
    %679 = vmatprep.subr.mxu0 0.0
    %680 = vmatpush1.msra.mxu0 0.0
    %681 = vmatprep.subr.mxu0 0.0
    %682 = vmatpush1.msra.mxu0 0.0
    %683 = vmatprep.subr.mxu0 0.0
    %684 = vmatpush1.msra.mxu0 0.0
    %685 = vmatprep.mubr.f32.mxu0 0.0
    %686 = vmatmul.mubr.f32.gmra.mrb[0].mxu0 %v619
    %v687 = vpop.f32.mrb[0].mxu0
    %v688 = vadd.f32 0.0, %v687
    %v689 = vpop.f32.mrb[0].mxu0
    %690 = vdwg.mxu0
    %v691 = vld [vmem:[%s1] sm:$0x3]
    %v692 = vld [vmem:[#allocation5] sm:$0xff]
    %v693 = vld [vmem:[#allocation5 + $0x8] sm:$0xff]
    %v694 = vld [vmem:[#allocation5 + $0x10] sm:$0xff]
    %v695 = vld [vmem:[#allocation5 + $0x18] sm:$0xff]
    %v696 = vld [vmem:[#allocation5 + $0x20] sm:$0xff]
    %v697 = vld [vmem:[#allocation5 + $0x28] sm:$0xff]
    %v698 = vld [vmem:[#allocation6] sm:$0x1]
    %v700 = vlaneseq
    %v701 = vshrl.u32 %v700, 7
    %v702 = vsub.s32 0, %v701
    %v703 = vrot.slane %v698, %v702
    %vm705 = vcmask 392192
    %v707 = vsel %vm705, %v691, 0
    %709 = vmatprep.subr.mxu0 0.0
    %710 = vmatpush1.msra.mxu0 %v692
    %711 = vmatprep.subr.mxu0 0.0
    %712 = vmatpush1.msra.mxu0 %v693
    %713 = vmatprep.subr.mxu0 0.0
    %714 = vmatpush1.msra.mxu0 %v694
    %715 = vmatprep.subr.mxu0 0.0
    %716 = vmatpush1.msra.mxu0 %v695
    %717 = vmatprep.subr.mxu0 0.0
    %718 = vmatpush1.msra.mxu0 %v696
    %719 = vmatprep.subr.mxu0 0.0
    %720 = vmatpush1.msra.mxu0 %v697
    %721 = vmatprep.subr.mxu0 0.0
    %722 = vmatpush1.msra.mxu0 0.0
    %723 = vmatprep.subr.mxu0 0.0
    %724 = vmatpush1.msra.mxu0 0.0
    %725 = vmatprep.subr.mxu0 0.0
    %726 = vmatpush1.msra.mxu0 0.0
    %727 = vmatprep.subr.mxu0 0.0
    %728 = vmatpush1.msra.mxu0 0.0
    %729 = vmatprep.subr.mxu0 0.0
    %730 = vmatpush1.msra.mxu0 0.0
    %731 = vmatprep.subr.mxu0 0.0
    %732 = vmatpush1.msra.mxu0 0.0
    %733 = vmatprep.subr.mxu0 0.0
    %734 = vmatpush1.msra.mxu0 0.0
    %735 = vmatprep.subr.mxu0 0.0
    %736 = vmatpush1.msra.mxu0 0.0
    %737 = vmatprep.subr.mxu0 0.0
    %738 = vmatpush1.msra.mxu0 0.0
    %739 = vmatprep.subr.mxu0 0.0
    %740 = vmatpush1.msra.mxu0 0.0
    %741 = vmatprep.subr.mxu0 0.0
    %742 = vmatpush1.msra.mxu0 0.0
    %743 = vmatprep.subr.mxu0 0.0
    %744 = vmatpush1.msra.mxu0 0.0
    %745 = vmatprep.subr.mxu0 0.0
    %746 = vmatpush1.msra.mxu0 0.0
    %747 = vmatprep.subr.mxu0 0.0
    %748 = vmatpush1.msra.mxu0 0.0
    %749 = vmatprep.subr.mxu0 0.0
    %750 = vmatpush1.msra.mxu0 0.0
    %751 = vmatprep.subr.mxu0 0.0
    %752 = vmatpush1.msra.mxu0 0.0
    %753 = vmatprep.subr.mxu0 0.0
    %754 = vmatpush1.msra.mxu0 0.0
    %755 = vmatprep.subr.mxu0 0.0
    %756 = vmatpush1.msra.mxu0 0.0
    %757 = vmatprep.subr.mxu0 0.0
    %758 = vmatpush1.msra.mxu0 0.0
    %759 = vmatprep.subr.mxu0 0.0
    %760 = vmatpush1.msra.mxu0 0.0
    %761 = vmatprep.subr.mxu0 0.0
    %762 = vmatpush1.msra.mxu0 0.0
    %763 = vmatprep.subr.mxu0 0.0
    %764 = vmatpush1.msra.mxu0 0.0
    %765 = vmatprep.subr.mxu0 0.0
    %766 = vmatpush1.msra.mxu0 0.0
    %767 = vmatprep.subr.mxu0 0.0
    %768 = vmatpush1.msra.mxu0 0.0
    %769 = vmatprep.subr.mxu0 0.0
    %770 = vmatpush1.msra.mxu0 0.0
    %771 = vmatprep.subr.mxu0 0.0
    %772 = vmatpush1.msra.mxu0 0.0
    %773 = vmatprep.mubr.f32.mxu0 0.0
    %774 = vmatmul.mubr.f32.gmra.mrb[0].mxu0 %v707
    %v775 = vpop.f32.mrb[0].mxu0
    %v776 = vadd.f32 %v703, %v775
    %v777 = vpop.f32.mrb[0].mxu0
    %778 = vdwg.mxu0
    %vm779 = vcmask 1041408
    %v780 = vsel %vm779, %v776, 0.0
    %781 = vadd.xlane.f32.xlu0 %v780
    %v782 = vpop.xlane.xlu0 %781
    %v783 = vrcp.pop 128.0
    %v784 = vmul.f32 %v782, %v783
    %v785 = vsub.f32 %v776, %v784
    %v786 = vmul.f32 %v785, %v785
    %v787 = vsel %vm779, %v786, 0.0
    %788 = vadd.xlane.f32.xlu0 %v787
    %v789 = vpop.xlane.xlu0 %788
    %v790 = vmul.f32 %v789, %v783
    %v791 = vadd.f32 %v790, 1e-05
    %v792 = vrsqrt.pop %v791
    %v793 = vmul.f32 %v785, %v792
    %v794 = vmul.f32 %v793, 0.2
    %v795 = vmax.f32 %v793, %v794
    %v796 = vld [vmem:[#allocation9] sm:$0xff]
    %v797 = vld [vmem:[#allocation9 + $0x8] sm:$0xff]
    %v798 = vld [vmem:[#allocation9 + $0x10] sm:$0xff]
    %v799 = vld [vmem:[#allocation9 + $0x18] sm:$0xff]
    %v800 = vld [vmem:[#allocation9 + $0x20] sm:$0xff]
    %v801 = vld [vmem:[#allocation9 + $0x28] sm:$0xff]
    %v802 = vld [vmem:[#allocation9 + $0x30] sm:$0xff]
    %v803 = vld [vmem:[#allocation9 + $0x38] sm:$0xff]
    %v804 = vld [vmem:[#allocation9 + $0x40] sm:$0xff]
    %v805 = vld [vmem:[#allocation9 + $0x48] sm:$0xff]
    %v806 = vld [vmem:[#allocation9 + $0x50] sm:$0xff]
    %v807 = vld [vmem:[#allocation9 + $0x58] sm:$0xff]
    %v808 = vld [vmem:[#allocation9 + $0x60] sm:$0xff]
    %v809 = vld [vmem:[#allocation9 + $0x68] sm:$0xff]
    %v810 = vld [vmem:[#allocation9 + $0x70] sm:$0xff]
    %v811 = vld [vmem:[#allocation9 + $0x78] sm:$0xff]
    %v812 = vld [vmem:[#allocation11] sm:$0x1]
    %v814 = vlaneseq
    %v815 = vshrl.u32 %v814, 7
    %v816 = vsub.s32 0, %v815
    %v817 = vrot.slane %v812, %v816
    %819 = vmatprep.subr.mxu0 0.0
    %820 = vmatpush1.msra.mxu0 %v796
    %821 = vmatprep.subr.mxu0 0.0
    %822 = vmatpush1.msra.mxu0 %v797
    %823 = vmatprep.subr.mxu0 0.0
    %824 = vmatpush1.msra.mxu0 %v798
    %825 = vmatprep.subr.mxu0 0.0
    %826 = vmatpush1.msra.mxu0 %v799
    %827 = vmatprep.subr.mxu0 0.0
    %828 = vmatpush1.msra.mxu0 %v800
    %829 = vmatprep.subr.mxu0 0.0
    %830 = vmatpush1.msra.mxu0 %v801
    %831 = vmatprep.subr.mxu0 0.0
    %832 = vmatpush1.msra.mxu0 %v802
    %833 = vmatprep.subr.mxu0 0.0
    %834 = vmatpush1.msra.mxu0 %v803
    %835 = vmatprep.subr.mxu0 0.0
    %836 = vmatpush1.msra.mxu0 %v804
    %837 = vmatprep.subr.mxu0 0.0
    %838 = vmatpush1.msra.mxu0 %v805
    %839 = vmatprep.subr.mxu0 0.0
    %840 = vmatpush1.msra.mxu0 %v806
    %841 = vmatprep.subr.mxu0 0.0
    %842 = vmatpush1.msra.mxu0 %v807
    %843 = vmatprep.subr.mxu0 0.0
    %844 = vmatpush1.msra.mxu0 %v808
    %845 = vmatprep.subr.mxu0 0.0
    %846 = vmatpush1.msra.mxu0 %v809
    %847 = vmatprep.subr.mxu0 0.0
    %848 = vmatpush1.msra.mxu0 %v810
    %849 = vmatprep.subr.mxu0 0.0
    %850 = vmatpush1.msra.mxu0 %v811
    %851 = vmatprep.subr.mxu0 0.0
    %852 = vmatpush1.msra.mxu0 0.0
    %853 = vmatprep.subr.mxu0 0.0
    %854 = vmatpush1.msra.mxu0 0.0
    %855 = vmatprep.subr.mxu0 0.0
    %856 = vmatpush1.msra.mxu0 0.0
    %857 = vmatprep.subr.mxu0 0.0
    %858 = vmatpush1.msra.mxu0 0.0
    %859 = vmatprep.subr.mxu0 0.0
    %860 = vmatpush1.msra.mxu0 0.0
    %861 = vmatprep.subr.mxu0 0.0
    %862 = vmatpush1.msra.mxu0 0.0
    %863 = vmatprep.subr.mxu0 0.0
    %864 = vmatpush1.msra.mxu0 0.0
    %865 = vmatprep.subr.mxu0 0.0
    %866 = vmatpush1.msra.mxu0 0.0
    %867 = vmatprep.subr.mxu0 0.0
    %868 = vmatpush1.msra.mxu0 0.0
    %869 = vmatprep.subr.mxu0 0.0
    %870 = vmatpush1.msra.mxu0 0.0
    %871 = vmatprep.subr.mxu0 0.0
    %872 = vmatpush1.msra.mxu0 0.0
    %873 = vmatprep.subr.mxu0 0.0
    %874 = vmatpush1.msra.mxu0 0.0
    %875 = vmatprep.subr.mxu0 0.0
    %876 = vmatpush1.msra.mxu0 0.0
    %877 = vmatprep.subr.mxu0 0.0
    %878 = vmatpush1.msra.mxu0 0.0
    %879 = vmatprep.subr.mxu0 0.0
    %880 = vmatpush1.msra.mxu0 0.0
    %881 = vmatprep.subr.mxu0 0.0
    %882 = vmatpush1.msra.mxu0 0.0
    %883 = vmatprep.mubr.f32.mxu0 0.0
    %884 = vmatmul.mubr.f32.gmra.mrb[0].mxu0 %v795
    %v885 = vpop.f32.mrb[0].mxu0
    %v886 = vadd.f32 %v817, %v885
    %v887 = vpop.f32.mrb[0].mxu0
    %888 = vdwg.mxu0
    %vm889 = vcmask 254976
    %v890 = vsel %vm889, %v886, 0.0
    %891 = vadd.xlane.f32.xlu0 %v890
    %v892 = vpop.xlane.xlu0 %891
    %v893 = vrcp.pop 32.0
    %v894 = vmul.f32 %v892, %v893
    %v895 = vsub.f32 %v886, %v894
    %v896 = vmul.f32 %v895, %v895
    %v897 = vsel %vm889, %v896, 0.0
    %898 = vadd.xlane.f32.xlu0 %v897
    %v899 = vpop.xlane.xlu0 %898
    %v900 = vmul.f32 %v899, %v893
    %v901 = vadd.f32 %v900, 1e-05
    %v902 = vrsqrt.pop %v901
    %v903 = vmul.f32 %v895, %v902
    %v904 = vmul.f32 %v903, 0.2
    %v905 = vmax.f32 %v903, %v904
    %v906 = vld [vmem:[#allocation12] sm:$0xff]
    %v907 = vld [vmem:[#allocation14] sm:$0x1]
    %v909 = vlaneseq
    %v910 = vshrl.u32 %v909, 7
    %v911 = vsub.s32 0, %v910
    %v912 = vrot.slane %v907, %v911
    %vm914 = vcmask 64512
    %v916 = vsel %vm914, %v688, 0
    %918 = vmatprep.subr.mxu0 0.0
    %919 = vmatpush1.msra.mxu0 %v906
    %920 = vmatprep.subr.mxu0 0.0
    %921 = vmatpush1.msra.mxu0 0.0
    %922 = vmatprep.subr.mxu0 0.0
    %923 = vmatpush1.msra.mxu0 0.0
    %924 = vmatprep.subr.mxu0 0.0
    %925 = vmatpush1.msra.mxu0 0.0
    %926 = vmatprep.subr.mxu0 0.0
    %927 = vmatpush1.msra.mxu0 0.0
    %928 = vmatprep.subr.mxu0 0.0
    %929 = vmatpush1.msra.mxu0 0.0
    %930 = vmatprep.subr.mxu0 0.0
    %931 = vmatpush1.msra.mxu0 0.0
    %932 = vmatprep.subr.mxu0 0.0
    %933 = vmatpush1.msra.mxu0 0.0
    %934 = vmatprep.subr.mxu0 0.0
    %935 = vmatpush1.msra.mxu0 0.0
    %936 = vmatprep.subr.mxu0 0.0
    %937 = vmatpush1.msra.mxu0 0.0
    %938 = vmatprep.subr.mxu0 0.0
    %939 = vmatpush1.msra.mxu0 0.0
    %940 = vmatprep.subr.mxu0 0.0
    %941 = vmatpush1.msra.mxu0 0.0
    %942 = vmatprep.subr.mxu0 0.0
    %943 = vmatpush1.msra.mxu0 0.0
    %944 = vmatprep.subr.mxu0 0.0
    %945 = vmatpush1.msra.mxu0 0.0
    %946 = vmatprep.subr.mxu0 0.0
    %947 = vmatpush1.msra.mxu0 0.0
    %948 = vmatprep.subr.mxu0 0.0
    %949 = vmatpush1.msra.mxu0 0.0
    %950 = vmatprep.subr.mxu0 0.0
    %951 = vmatpush1.msra.mxu0 0.0
    %952 = vmatprep.subr.mxu0 0.0
    %953 = vmatpush1.msra.mxu0 0.0
    %954 = vmatprep.subr.mxu0 0.0
    %955 = vmatpush1.msra.mxu0 0.0
    %956 = vmatprep.subr.mxu0 0.0
    %957 = vmatpush1.msra.mxu0 0.0
    %958 = vmatprep.subr.mxu0 0.0
    %959 = vmatpush1.msra.mxu0 0.0
    %960 = vmatprep.subr.mxu0 0.0
    %961 = vmatpush1.msra.mxu0 0.0
    %962 = vmatprep.subr.mxu0 0.0
    %963 = vmatpush1.msra.mxu0 0.0
    %964 = vmatprep.subr.mxu0 0.0
    %965 = vmatpush1.msra.mxu0 0.0
    %966 = vmatprep.subr.mxu0 0.0
    %967 = vmatpush1.msra.mxu0 0.0
    %968 = vmatprep.subr.mxu0 0.0
    %969 = vmatpush1.msra.mxu0 0.0
    %970 = vmatprep.subr.mxu0 0.0
    %971 = vmatpush1.msra.mxu0 0.0
    %972 = vmatprep.subr.mxu0 0.0
    %973 = vmatpush1.msra.mxu0 0.0
    %974 = vmatprep.subr.mxu0 0.0
    %975 = vmatpush1.msra.mxu0 0.0
    %976 = vmatprep.subr.mxu0 0.0
    %977 = vmatpush1.msra.mxu0 0.0
    %978 = vmatprep.subr.mxu0 0.0
    %979 = vmatpush1.msra.mxu0 0.0
    %980 = vmatprep.subr.mxu0 0.0
    %981 = vmatpush1.msra.mxu0 0.0
    %982 = vmatprep.mubr.f32.mxu0 0.0
    %983 = vmatmul.mubr.f32.gmra.mrb[0].mxu0 %v916
    %v984 = vpop.f32.mrb[0].mxu0
    %v985 = vadd.f32 %v912, %v984
    %v986 = vpop.f32.mrb[0].mxu0
    %987 = vdwg.mxu0
    %v988 = vxor.u32 %v985, 2147483648
    %v989 = vmul.f32 %v988, 1.442695
    %v990 = vpow.pop %v989
    %v991 = vadd.f32 %v990, 1.0
    %v992 = vrcp.pop %v991
    %v993 = vmul.f32 1.0, %v992
    %v994 = vmul.f32 %v985, %v993
    %v995 = vld [vmem:[#allocation15] sm:$0xff]
    %v996 = vld [vmem:[#allocation15 + $0x8] sm:$0xff]
    %v997 = vld [vmem:[#allocation15 + $0x10] sm:$0xff]
    %v998 = vld [vmem:[#allocation15 + $0x18] sm:$0xff]
    %v999 = vld [vmem:[#allocation15 + $0x20] sm:$0xff]
    %v1000 = vld [vmem:[#allocation15 + $0x28] sm:$0xff]
    %v1001 = vld [vmem:[#allocation15 + $0x30] sm:$0xff]
    %v1002 = vld [vmem:[#allocation15 + $0x38] sm:$0xff]
    %v1003 = vld [vmem:[#allocation17] sm:$0x1]
    %v1005 = vlaneseq
    %v1006 = vshrl.u32 %v1005, 7
    %v1007 = vsub.s32 0, %v1006
    %v1008 = vrot.slane %v1003, %v1007
    %vm1010 = vcmask 523264
    %v1012 = vsel %vm1010, %v994, 0
    %1014 = vmatprep.subr.mxu0 0.0
    %1015 = vmatpush1.msra.mxu0 %v995
    %1016 = vmatprep.subr.mxu0 0.0
    %1017 = vmatpush1.msra.mxu0 %v996
    %1018 = vmatprep.subr.mxu0 0.0
    %1019 = vmatpush1.msra.mxu0 %v997
    %1020 = vmatprep.subr.mxu0 0.0
    %1021 = vmatpush1.msra.mxu0 %v998
    %1022 = vmatprep.subr.mxu0 0.0
    %1023 = vmatpush1.msra.mxu0 %v999
    %1024 = vmatprep.subr.mxu0 0.0
    %1025 = vmatpush1.msra.mxu0 %v1000
    %1026 = vmatprep.subr.mxu0 0.0
    %1027 = vmatpush1.msra.mxu0 %v1001
    %1028 = vmatprep.subr.mxu0 0.0
    %1029 = vmatpush1.msra.mxu0 %v1002
    %1030 = vmatprep.subr.mxu0 0.0
    %1031 = vmatpush1.msra.mxu0 0.0
    %1032 = vmatprep.subr.mxu0 0.0
    %1033 = vmatpush1.msra.mxu0 0.0
    %1034 = vmatprep.subr.mxu0 0.0
    %1035 = vmatpush1.msra.mxu0 0.0
    %1036 = vmatprep.subr.mxu0 0.0
    %1037 = vmatpush1.msra.mxu0 0.0
    %1038 = vmatprep.subr.mxu0 0.0
    %1039 = vmatpush1.msra.mxu0 0.0
    %1040 = vmatprep.subr.mxu0 0.0
    %1041 = vmatpush1.msra.mxu0 0.0
    %1042 = vmatprep.subr.mxu0 0.0
    %1043 = vmatpush1.msra.mxu0 0.0
    %1044 = vmatprep.subr.mxu0 0.0
    %1045 = vmatpush1.msra.mxu0 0.0
    %1046 = vmatprep.subr.mxu0 0.0
    %1047 = vmatpush1.msra.mxu0 0.0
    %1048 = vmatprep.subr.mxu0 0.0
    %1049 = vmatpush1.msra.mxu0 0.0
    %1050 = vmatprep.subr.mxu0 0.0
    %1051 = vmatpush1.msra.mxu0 0.0
    %1052 = vmatprep.subr.mxu0 0.0
    %1053 = vmatpush1.msra.mxu0 0.0
    %1054 = vmatprep.subr.mxu0 0.0
    %1055 = vmatpush1.msra.mxu0 0.0
    %1056 = vmatprep.subr.mxu0 0.0
    %1057 = vmatpush1.msra.mxu0 0.0
    %1058 = vmatprep.subr.mxu0 0.0
    %1059 = vmatpush1.msra.mxu0 0.0
    %1060 = vmatprep.subr.mxu0 0.0
    %1061 = vmatpush1.msra.mxu0 0.0
    %1062 = vmatprep.subr.mxu0 0.0
    %1063 = vmatpush1.msra.mxu0 0.0
    %1064 = vmatprep.subr.mxu0 0.0
    %1065 = vmatpush1.msra.mxu0 0.0
    %1066 = vmatprep.subr.mxu0 0.0
    %1067 = vmatpush1.msra.mxu0 0.0
    %1068 = vmatprep.subr.mxu0 0.0
    %1069 = vmatpush1.msra.mxu0 0.0
    %1070 = vmatprep.subr.mxu0 0.0
    %1071 = vmatpush1.msra.mxu0 0.0
    %1072 = vmatprep.subr.mxu0 0.0
    %1073 = vmatpush1.msra.mxu0 0.0
    %1074 = vmatprep.subr.mxu0 0.0
    %1075 = vmatpush1.msra.mxu0 0.0
    %1076 = vmatprep.subr.mxu0 0.0
    %1077 = vmatpush1.msra.mxu0 0.0
    %1078 = vmatprep.mubr.f32.mxu0 0.0
    %1079 = vmatmul.mubr.f32.gmra.mrb[0].mxu0 %v1012
    %v1080 = vpop.f32.mrb[0].mxu0
    %v1081 = vadd.f32 %v1008, %v1080
    %v1082 = vpop.f32.mrb[0].mxu0
    %1083 = vdwg.mxu0
    %v1084 = vadd.f32 %v905, %v1081
    %v1085 = vxor.u32 %v1084, 2147483648
    %v1086 = vmul.f32 %v1085, 1.442695
    %v1087 = vpow.pop %v1086
    %v1088 = vadd.f32 %v1087, 1.0
    %v1089 = vrcp.pop %v1088
    %v1090 = vmul.f32 1.0, %v1089
    %v1091 = vmul.f32 %v1084, %v1090
    %v1092 = vld [vmem:[#allocation18] sm:$0xff]
    %v1093 = vld [vmem:[#allocation18 + $0x8] sm:$0xff]
    %v1094 = vld [vmem:[#allocation18 + $0x10] sm:$0xff]
    %v1095 = vld [vmem:[#allocation18 + $0x18] sm:$0xff]
    %v1096 = vld [vmem:[#allocation20] sm:$0x1]
    %v1098 = vlaneseq
    %v1099 = vshrl.u32 %v1098, 7
    %v1100 = vsub.s32 0, %v1099
    %v1101 = vrot.slane %v1096, %v1100
    %vm1103 = vcmask 261120
    %v1105 = vsel %vm1103, %v1091, 0
    %1107 = vmatprep.subr.mxu0 0.0
    %1108 = vmatpush1.msra.mxu0 %v1092
    %1109 = vmatprep.subr.mxu0 0.0
    %1110 = vmatpush1.msra.mxu0 %v1093
    %1111 = vmatprep.subr.mxu0 0.0
    %1112 = vmatpush1.msra.mxu0 %v1094
    %1113 = vmatprep.subr.mxu0 0.0
    %1114 = vmatpush1.msra.mxu0 %v1095
    %1115 = vmatprep.subr.mxu0 0.0
    %1116 = vmatpush1.msra.mxu0 0.0
    %1117 = vmatprep.subr.mxu0 0.0
    %1118 = vmatpush1.msra.mxu0 0.0
    %1119 = vmatprep.subr.mxu0 0.0
    %1120 = vmatpush1.msra.mxu0 0.0
    %1121 = vmatprep.subr.mxu0 0.0
    %1122 = vmatpush1.msra.mxu0 0.0
    %1123 = vmatprep.subr.mxu0 0.0
    %1124 = vmatpush1.msra.mxu0 0.0
    %1125 = vmatprep.subr.mxu0 0.0
    %1126 = vmatpush1.msra.mxu0 0.0
    %1127 = vmatprep.subr.mxu0 0.0
    %1128 = vmatpush1.msra.mxu0 0.0
    %1129 = vmatprep.subr.mxu0 0.0
    %1130 = vmatpush1.msra.mxu0 0.0
    %1131 = vmatprep.subr.mxu0 0.0
    %1132 = vmatpush1.msra.mxu0 0.0
    %1133 = vmatprep.subr.mxu0 0.0
    %1134 = vmatpush1.msra.mxu0 0.0
    %1135 = vmatprep.subr.mxu0 0.0
    %1136 = vmatpush1.msra.mxu0 0.0
    %1137 = vmatprep.subr.mxu0 0.0
    %1138 = vmatpush1.msra.mxu0 0.0
    %1139 = vmatprep.subr.mxu0 0.0
    %1140 = vmatpush1.msra.mxu0 0.0
    %1141 = vmatprep.subr.mxu0 0.0
    %1142 = vmatpush1.msra.mxu0 0.0
    %1143 = vmatprep.subr.mxu0 0.0
    %1144 = vmatpush1.msra.mxu0 0.0
    %1145 = vmatprep.subr.mxu0 0.0
    %1146 = vmatpush1.msra.mxu0 0.0
    %1147 = vmatprep.subr.mxu0 0.0
    %1148 = vmatpush1.msra.mxu0 0.0
    %1149 = vmatprep.subr.mxu0 0.0
    %1150 = vmatpush1.msra.mxu0 0.0
    %1151 = vmatprep.subr.mxu0 0.0
    %1152 = vmatpush1.msra.mxu0 0.0
    %1153 = vmatprep.subr.mxu0 0.0
    %1154 = vmatpush1.msra.mxu0 0.0
    %1155 = vmatprep.subr.mxu0 0.0
    %1156 = vmatpush1.msra.mxu0 0.0
    %1157 = vmatprep.subr.mxu0 0.0
    %1158 = vmatpush1.msra.mxu0 0.0
    %1159 = vmatprep.subr.mxu0 0.0
    %1160 = vmatpush1.msra.mxu0 0.0
    %1161 = vmatprep.subr.mxu0 0.0
    %1162 = vmatpush1.msra.mxu0 0.0
    %1163 = vmatprep.subr.mxu0 0.0
    %1164 = vmatpush1.msra.mxu0 0.0
    %1165 = vmatprep.subr.mxu0 0.0
    %1166 = vmatpush1.msra.mxu0 0.0
    %1167 = vmatprep.subr.mxu0 0.0
    %1168 = vmatpush1.msra.mxu0 0.0
    %1169 = vmatprep.subr.mxu0 0.0
    %1170 = vmatpush1.msra.mxu0 0.0
    %1171 = vmatprep.mubr.f32.mxu0 0.0
    %1172 = vmatmul.mubr.f32.gmra.mrb[0].mxu0 %v1105
    %v1173 = vpop.f32.mrb[0].mxu0
    %v1174 = vadd.f32 %v1101, %v1173
    %v1175 = vpop.f32.mrb[0].mxu0
    %1176 = vdwg.mxu0
    %vm1177 = vcmask 517120
    %v1178 = vsel %vm1177, %v1174, 0.0
    %1179 = vadd.xlane.f32.xlu0 %v1178
    %v1180 = vpop.xlane.xlu0 %1179
    %v1181 = vrcp.pop 64.0
    %v1182 = vmul.f32 %v1180, %v1181
    %v1183 = vsub.f32 %v1174, %v1182
    %v1184 = vmul.f32 %v1183, %v1183
    %v1185 = vsel %vm1177, %v1184, 0.0
    %1186 = vadd.xlane.f32.xlu0 %v1185
    %v1187 = vpop.xlane.xlu0 %1186
    %v1188 = vmul.f32 %v1187, %v1181
    %v1189 = vadd.f32 %v1188, 1e-05
    %v1190 = vrsqrt.pop %v1189
    %v1191 = vmul.f32 %v1183, %v1190
    %v1192 = vmul.f32 %v1191, 0.2
    %v1193 = vmax.f32 %v1191, %v1192
    %v1194 = vld [vmem:[#allocation21] sm:$0xff]
    %v1195 = vld [vmem:[#allocation21 + $0x8] sm:$0xff]
    %v1196 = vld [vmem:[#allocation21 + $0x10] sm:$0xff]
    %v1197 = vld [vmem:[#allocation21 + $0x18] sm:$0xff]
    %v1198 = vld [vmem:[#allocation21 + $0x20] sm:$0xff]
    %v1199 = vld [vmem:[#allocation21 + $0x28] sm:$0xff]
    %v1200 = vld [vmem:[#allocation21 + $0x30] sm:$0xff]
    %v1201 = vld [vmem:[#allocation21 + $0x38] sm:$0xff]
    %v1202 = vld [vmem:[#allocation23] sm:$0x1]
    %v1204 = vlaneseq
    %v1205 = vshrl.u32 %v1204, 7
    %v1206 = vsub.s32 0, %v1205
    %v1207 = vrot.slane %v1202, %v1206
    %v1210 = vsel %vm1010, %v1193, 0
    %1212 = vmatprep.subr.mxu0 0.0
    %1213 = vmatpush1.msra.mxu0 %v1194
    %1214 = vmatprep.subr.mxu0 0.0
    %1215 = vmatpush1.msra.mxu0 %v1195
    %1216 = vmatprep.subr.mxu0 0.0
    %1217 = vmatpush1.msra.mxu0 %v1196
    %1218 = vmatprep.subr.mxu0 0.0
    %1219 = vmatpush1.msra.mxu0 %v1197
    %1220 = vmatprep.subr.mxu0 0.0
    %1221 = vmatpush1.msra.mxu0 %v1198
    %1222 = vmatprep.subr.mxu0 0.0
    %1223 = vmatpush1.msra.mxu0 %v1199
    %1224 = vmatprep.subr.mxu0 0.0
    %1225 = vmatpush1.msra.mxu0 %v1200
    %1226 = vmatprep.subr.mxu0 0.0
    %1227 = vmatpush1.msra.mxu0 %v1201
    %1228 = vmatprep.subr.mxu0 0.0
    %1229 = vmatpush1.msra.mxu0 0.0
    %1230 = vmatprep.subr.mxu0 0.0
    %1231 = vmatpush1.msra.mxu0 0.0
    %1232 = vmatprep.subr.mxu0 0.0
    %1233 = vmatpush1.msra.mxu0 0.0
    %1234 = vmatprep.subr.mxu0 0.0
    %1235 = vmatpush1.msra.mxu0 0.0
    %1236 = vmatprep.subr.mxu0 0.0
    %1237 = vmatpush1.msra.mxu0 0.0
    %1238 = vmatprep.subr.mxu0 0.0
    %1239 = vmatpush1.msra.mxu0 0.0
    %1240 = vmatprep.subr.mxu0 0.0
    %1241 = vmatpush1.msra.mxu0 0.0
    %1242 = vmatprep.subr.mxu0 0.0
    %1243 = vmatpush1.msra.mxu0 0.0
    %1244 = vmatprep.subr.mxu0 0.0
    %1245 = vmatpush1.msra.mxu0 0.0
    %1246 = vmatprep.subr.mxu0 0.0
    %1247 = vmatpush1.msra.mxu0 0.0
    %1248 = vmatprep.subr.mxu0 0.0
    %1249 = vmatpush1.msra.mxu0 0.0
    %1250 = vmatprep.subr.mxu0 0.0
    %1251 = vmatpush1.msra.mxu0 0.0
    %1252 = vmatprep.subr.mxu0 0.0
    %1253 = vmatpush1.msra.mxu0 0.0
    %1254 = vmatprep.subr.mxu0 0.0
    %1255 = vmatpush1.msra.mxu0 0.0
    %1256 = vmatprep.subr.mxu0 0.0
    %1257 = vmatpush1.msra.mxu0 0.0
    %1258 = vmatprep.subr.mxu0 0.0
    %1259 = vmatpush1.msra.mxu0 0.0
    %1260 = vmatprep.subr.mxu0 0.0
    %1261 = vmatpush1.msra.mxu0 0.0
    %1262 = vmatprep.subr.mxu0 0.0
    %1263 = vmatpush1.msra.mxu0 0.0
    %1264 = vmatprep.subr.mxu0 0.0
    %1265 = vmatpush1.msra.mxu0 0.0
    %1266 = vmatprep.subr.mxu0 0.0
    %1267 = vmatpush1.msra.mxu0 0.0
    %1268 = vmatprep.subr.mxu0 0.0
    %1269 = vmatpush1.msra.mxu0 0.0
    %1270 = vmatprep.subr.mxu0 0.0
    %1271 = vmatpush1.msra.mxu0 0.0
    %1272 = vmatprep.subr.mxu0 0.0
    %1273 = vmatpush1.msra.mxu0 0.0
    %1274 = vmatprep.subr.mxu0 0.0
    %1275 = vmatpush1.msra.mxu0 0.0
    %1276 = vmatprep.mubr.f32.mxu0 0.0
    %1277 = vmatmul.mubr.f32.gmra.mrb[0].mxu0 %v1210
    %v1278 = vpop.f32.mrb[0].mxu0
    %v1279 = vadd.f32 %v1207, %v1278
    %v1280 = vpop.f32.mrb[0].mxu0
    %1281 = vdwg.mxu0
    %vm1282 = vcmask 123904
    %v1283 = vsel %vm1282, %v1279, 0.0
    %1284 = vadd.xlane.f32.xlu0 %v1283
    %v1285 = vpop.xlane.xlu0 %1284
    %v1286 = vrcp.pop 16.0
    %v1287 = vmul.f32 %v1285, %v1286
    %v1288 = vsub.f32 %v1279, %v1287
    %v1289 = vmul.f32 %v1288, %v1288
    %v1290 = vsel %vm1282, %v1289, 0.0
    %1291 = vadd.xlane.f32.xlu0 %v1290
    %v1292 = vpop.xlane.xlu0 %1291
    %v1293 = vmul.f32 %v1292, %v1286
    %v1294 = vadd.f32 %v1293, 1e-05
    %v1295 = vrsqrt.pop %v1294
    %v1296 = vmul.f32 %v1288, %v1295
    %v1297 = vmul.f32 %v1296, 0.2
    %v1298 = vmax.f32 %v1296, %v1297
    %v1299 = vld [vmem:[#allocation24] sm:$0xff]
    %v1300 = vld [vmem:[#allocation26] sm:$0x1]
    %v1302 = vlaneseq
    %v1303 = vshrl.u32 %v1302, 7
    %v1304 = vsub.s32 0, %v1303
    %v1305 = vrot.slane %v1300, %v1304
    %1307 = vmatprep.subr.mxu0 0.0
    %1308 = vmatpush1.msra.mxu0 %v1299
    %1309 = vmatprep.subr.mxu0 0.0
    %1310 = vmatpush1.msra.mxu0 0.0
    %1311 = vmatprep.subr.mxu0 0.0
    %1312 = vmatpush1.msra.mxu0 0.0
    %1313 = vmatprep.subr.mxu0 0.0
    %1314 = vmatpush1.msra.mxu0 0.0
    %1315 = vmatprep.subr.mxu0 0.0
    %1316 = vmatpush1.msra.mxu0 0.0
    %1317 = vmatprep.subr.mxu0 0.0
    %1318 = vmatpush1.msra.mxu0 0.0
    %1319 = vmatprep.subr.mxu0 0.0
    %1320 = vmatpush1.msra.mxu0 0.0
    %1321 = vmatprep.subr.mxu0 0.0
    %1322 = vmatpush1.msra.mxu0 0.0
    %1323 = vmatprep.subr.mxu0 0.0
    %1324 = vmatpush1.msra.mxu0 0.0
    %1325 = vmatprep.subr.mxu0 0.0
    %1326 = vmatpush1.msra.mxu0 0.0
    %1327 = vmatprep.subr.mxu0 0.0
    %1328 = vmatpush1.msra.mxu0 0.0
    %1329 = vmatprep.subr.mxu0 0.0
    %1330 = vmatpush1.msra.mxu0 0.0
    %1331 = vmatprep.subr.mxu0 0.0
    %1332 = vmatpush1.msra.mxu0 0.0
    %1333 = vmatprep.subr.mxu0 0.0
    %1334 = vmatpush1.msra.mxu0 0.0
    %1335 = vmatprep.subr.mxu0 0.0
    %1336 = vmatpush1.msra.mxu0 0.0
    %1337 = vmatprep.subr.mxu0 0.0
    %1338 = vmatpush1.msra.mxu0 0.0
    %1339 = vmatprep.subr.mxu0 0.0
    %1340 = vmatpush1.msra.mxu0 0.0
    %1341 = vmatprep.subr.mxu0 0.0
    %1342 = vmatpush1.msra.mxu0 0.0
    %1343 = vmatprep.subr.mxu0 0.0
    %1344 = vmatpush1.msra.mxu0 0.0
    %1345 = vmatprep.subr.mxu0 0.0
    %1346 = vmatpush1.msra.mxu0 0.0
    %1347 = vmatprep.subr.mxu0 0.0
    %1348 = vmatpush1.msra.mxu0 0.0
    %1349 = vmatprep.subr.mxu0 0.0
    %1350 = vmatpush1.msra.mxu0 0.0
    %1351 = vmatprep.subr.mxu0 0.0
    %1352 = vmatpush1.msra.mxu0 0.0
    %1353 = vmatprep.subr.mxu0 0.0
    %1354 = vmatpush1.msra.mxu0 0.0
    %1355 = vmatprep.subr.mxu0 0.0
    %1356 = vmatpush1.msra.mxu0 0.0
    %1357 = vmatprep.subr.mxu0 0.0
    %1358 = vmatpush1.msra.mxu0 0.0
    %1359 = vmatprep.subr.mxu0 0.0
    %1360 = vmatpush1.msra.mxu0 0.0
    %1361 = vmatprep.subr.mxu0 0.0
    %1362 = vmatpush1.msra.mxu0 0.0
    %1363 = vmatprep.subr.mxu0 0.0
    %1364 = vmatpush1.msra.mxu0 0.0
    %1365 = vmatprep.subr.mxu0 0.0
    %1366 = vmatpush1.msra.mxu0 0.0
    %1367 = vmatprep.subr.mxu0 0.0
    %1368 = vmatpush1.msra.mxu0 0.0
    %1369 = vmatprep.subr.mxu0 0.0
    %1370 = vmatpush1.msra.mxu0 0.0
    %1371 = vmatprep.mubr.f32.mxu0 0.0
    %1372 = vmatmul.mubr.f32.gmra.mrb[0].mxu0 %v916
    %v1373 = vpop.f32.mrb[0].mxu0
    %v1374 = vadd.f32 %v1305, %v1373
    %v1375 = vpop.f32.mrb[0].mxu0
    %1376 = vdwg.mxu0
    %v1377 = vxor.u32 %v1374, 2147483648
    %v1378 = vmul.f32 %v1377, 1.442695
    %v1379 = vpow.pop %v1378
    %v1380 = vadd.f32 %v1379, 1.0
    %v1381 = vrcp.pop %v1380
    %v1382 = vmul.f32 1.0, %v1381
    %v1383 = vmul.f32 %v1374, %v1382
    %v1384 = vld [vmem:[#allocation27] sm:$0xff]
    %v1385 = vld [vmem:[#allocation27 + $0x8] sm:$0xff]
    %v1386 = vld [vmem:[#allocation27 + $0x10] sm:$0xff]
    %v1387 = vld [vmem:[#allocation27 + $0x18] sm:$0xff]
    %v1388 = vld [vmem:[#allocation29] sm:$0x1]
    %v1390 = vlaneseq
    %v1391 = vshrl.u32 %v1390, 7
    %v1392 = vsub.s32 0, %v1391
    %v1393 = vrot.slane %v1388, %v1392
    %v1396 = vsel %vm1103, %v1383, 0
    %1398 = vmatprep.subr.mxu0 0.0
    %1399 = vmatpush1.msra.mxu0 %v1384
    %1400 = vmatprep.subr.mxu0 0.0
    %1401 = vmatpush1.msra.mxu0 %v1385
    %1402 = vmatprep.subr.mxu0 0.0
    %1403 = vmatpush1.msra.mxu0 %v1386
    %1404 = vmatprep.subr.mxu0 0.0
    %1405 = vmatpush1.msra.mxu0 %v1387
    %1406 = vmatprep.subr.mxu0 0.0
    %1407 = vmatpush1.msra.mxu0 0.0
    %1408 = vmatprep.subr.mxu0 0.0
    %1409 = vmatpush1.msra.mxu0 0.0
    %1410 = vmatprep.subr.mxu0 0.0
    %1411 = vmatpush1.msra.mxu0 0.0
    %1412 = vmatprep.subr.mxu0 0.0
    %1413 = vmatpush1.msra.mxu0 0.0
    %1414 = vmatprep.subr.mxu0 0.0
    %1415 = vmatpush1.msra.mxu0 0.0
    %1416 = vmatprep.subr.mxu0 0.0
    %1417 = vmatpush1.msra.mxu0 0.0
    %1418 = vmatprep.subr.mxu0 0.0
    %1419 = vmatpush1.msra.mxu0 0.0
    %1420 = vmatprep.subr.mxu0 0.0
    %1421 = vmatpush1.msra.mxu0 0.0
    %1422 = vmatprep.subr.mxu0 0.0
    %1423 = vmatpush1.msra.mxu0 0.0
    %1424 = vmatprep.subr.mxu0 0.0
    %1425 = vmatpush1.msra.mxu0 0.0
    %1426 = vmatprep.subr.mxu0 0.0
    %1427 = vmatpush1.msra.mxu0 0.0
    %1428 = vmatprep.subr.mxu0 0.0
    %1429 = vmatpush1.msra.mxu0 0.0
    %1430 = vmatprep.subr.mxu0 0.0
    %1431 = vmatpush1.msra.mxu0 0.0
    %1432 = vmatprep.subr.mxu0 0.0
    %1433 = vmatpush1.msra.mxu0 0.0
    %1434 = vmatprep.subr.mxu0 0.0
    %1435 = vmatpush1.msra.mxu0 0.0
    %1436 = vmatprep.subr.mxu0 0.0
    %1437 = vmatpush1.msra.mxu0 0.0
    %1438 = vmatprep.subr.mxu0 0.0
    %1439 = vmatpush1.msra.mxu0 0.0
    %1440 = vmatprep.subr.mxu0 0.0
    %1441 = vmatpush1.msra.mxu0 0.0
    %1442 = vmatprep.subr.mxu0 0.0
    %1443 = vmatpush1.msra.mxu0 0.0
    %1444 = vmatprep.subr.mxu0 0.0
    %1445 = vmatpush1.msra.mxu0 0.0
    %1446 = vmatprep.subr.mxu0 0.0
    %1447 = vmatpush1.msra.mxu0 0.0
    %1448 = vmatprep.subr.mxu0 0.0
    %1449 = vmatpush1.msra.mxu0 0.0
    %1450 = vmatprep.subr.mxu0 0.0
    %1451 = vmatpush1.msra.mxu0 0.0
    %1452 = vmatprep.subr.mxu0 0.0
    %1453 = vmatpush1.msra.mxu0 0.0
    %1454 = vmatprep.subr.mxu0 0.0
    %1455 = vmatpush1.msra.mxu0 0.0
    %1456 = vmatprep.subr.mxu0 0.0
    %1457 = vmatpush1.msra.mxu0 0.0
    %1458 = vmatprep.subr.mxu0 0.0
    %1459 = vmatpush1.msra.mxu0 0.0
    %1460 = vmatprep.subr.mxu0 0.0
    %1461 = vmatpush1.msra.mxu0 0.0
    %1462 = vmatprep.mubr.f32.mxu0 0.0
    %1463 = vmatmul.mubr.f32.gmra.mrb[0].mxu0 %v1396
    %v1464 = vpop.f32.mrb[0].mxu0
    %v1465 = vadd.f32 %v1393, %v1464
    %v1466 = vpop.f32.mrb[0].mxu0
    %1467 = vdwg.mxu0
    %v1468 = vadd.f32 %v1298, %v1465
    %v1469 = vxor.u32 %v1468, 2147483648
    %v1470 = vmul.f32 %v1469, 1.442695
    %v1471 = vpow.pop %v1470
    %v1472 = vadd.f32 %v1471, 1.0
    %v1473 = vrcp.pop %v1472
    %v1474 = vmul.f32 1.0, %v1473
    %v1475 = vmul.f32 %v1468, %v1474
    %v1476 = vld [vmem:[#allocation30] sm:$0xff]
    %v1477 = vld [vmem:[#allocation30 + $0x8] sm:$0xff]
    %v1478 = vld [vmem:[#allocation32] sm:$0x1]
    %v1480 = vlaneseq
    %v1481 = vshrl.u32 %v1480, 7
    %v1482 = vsub.s32 0, %v1481
    %v1483 = vrot.slane %v1478, %v1482
    %v1486 = vsel %vm617, %v1475, 0
    %1488 = vmatprep.subr.mxu0 0.0
    %1489 = vmatpush1.msra.mxu0 %v1476
    %1490 = vmatprep.subr.mxu0 0.0
    %1491 = vmatpush1.msra.mxu0 %v1477
    %1492 = vmatprep.subr.mxu0 0.0
    %1493 = vmatpush1.msra.mxu0 0.0
    %1494 = vmatprep.subr.mxu0 0.0
    %1495 = vmatpush1.msra.mxu0 0.0
    %1496 = vmatprep.subr.mxu0 0.0
    %1497 = vmatpush1.msra.mxu0 0.0
    %1498 = vmatprep.subr.mxu0 0.0
    %1499 = vmatpush1.msra.mxu0 0.0
    %1500 = vmatprep.subr.mxu0 0.0
    %1501 = vmatpush1.msra.mxu0 0.0
    %1502 = vmatprep.subr.mxu0 0.0
    %1503 = vmatpush1.msra.mxu0 0.0
    %1504 = vmatprep.subr.mxu0 0.0
    %1505 = vmatpush1.msra.mxu0 0.0
    %1506 = vmatprep.subr.mxu0 0.0
    %1507 = vmatpush1.msra.mxu0 0.0
    %1508 = vmatprep.subr.mxu0 0.0
    %1509 = vmatpush1.msra.mxu0 0.0
    %1510 = vmatprep.subr.mxu0 0.0
    %1511 = vmatpush1.msra.mxu0 0.0
    %1512 = vmatprep.subr.mxu0 0.0
    %1513 = vmatpush1.msra.mxu0 0.0
    %1514 = vmatprep.subr.mxu0 0.0
    %1515 = vmatpush1.msra.mxu0 0.0
    %1516 = vmatprep.subr.mxu0 0.0
    %1517 = vmatpush1.msra.mxu0 0.0
    %1518 = vmatprep.subr.mxu0 0.0
    %1519 = vmatpush1.msra.mxu0 0.0
    %1520 = vmatprep.subr.mxu0 0.0
    %1521 = vmatpush1.msra.mxu0 0.0
    %1522 = vmatprep.subr.mxu0 0.0
    %1523 = vmatpush1.msra.mxu0 0.0
    %1524 = vmatprep.subr.mxu0 0.0
    %1525 = vmatpush1.msra.mxu0 0.0
    %1526 = vmatprep.subr.mxu0 0.0
    %1527 = vmatpush1.msra.mxu0 0.0
    %1528 = vmatprep.subr.mxu0 0.0
    %1529 = vmatpush1.msra.mxu0 0.0
    %1530 = vmatprep.subr.mxu0 0.0
    %1531 = vmatpush1.msra.mxu0 0.0
    %1532 = vmatprep.subr.mxu0 0.0
    %1533 = vmatpush1.msra.mxu0 0.0
    %1534 = vmatprep.subr.mxu0 0.0
    %1535 = vmatpush1.msra.mxu0 0.0
    %1536 = vmatprep.subr.mxu0 0.0
    %1537 = vmatpush1.msra.mxu0 0.0
    %1538 = vmatprep.subr.mxu0 0.0
    %1539 = vmatpush1.msra.mxu0 0.0
    %1540 = vmatprep.subr.mxu0 0.0
    %1541 = vmatpush1.msra.mxu0 0.0
    %1542 = vmatprep.subr.mxu0 0.0
    %1543 = vmatpush1.msra.mxu0 0.0
    %1544 = vmatprep.subr.mxu0 0.0
    %1545 = vmatpush1.msra.mxu0 0.0
    %1546 = vmatprep.subr.mxu0 0.0
    %1547 = vmatpush1.msra.mxu0 0.0
    %1548 = vmatprep.subr.mxu0 0.0
    %1549 = vmatpush1.msra.mxu0 0.0
    %1550 = vmatprep.subr.mxu0 0.0
    %1551 = vmatpush1.msra.mxu0 0.0
    %1552 = vmatprep.mubr.f32.mxu0 0.0
    %1553 = vmatmul.mubr.f32.gmra.mrb[0].mxu0 %v1486
    %v1554 = vpop.f32.mrb[0].mxu0
    %v1555 = vadd.f32 %v1483, %v1554
    %v1556 = vpop.f32.mrb[0].mxu0
    %1557 = vdwg.mxu0
    %v1558 = vsel %vm889, %v1555, 0.0
    %1559 = vadd.xlane.f32.xlu0 %v1558
    %v1560 = vpop.xlane.xlu0 %1559
    %v1561 = vmul.f32 %v1560, %v893
    %v1562 = vsub.f32 %v1555, %v1561
    %v1563 = vmul.f32 %v1562, %v1562
    %v1564 = vsel %vm889, %v1563, 0.0
    %1565 = vadd.xlane.f32.xlu0 %v1564
    %v1566 = vpop.xlane.xlu0 %1565
    %v1567 = vmul.f32 %v1566, %v893
    %v1568 = vadd.f32 %v1567, 1e-05
    %v1569 = vrsqrt.pop %v1568
    %v1570 = vmul.f32 %v1562, %v1569
    %v1571 = vmul.f32 %v1570, 0.2
    %v1572 = vmax.f32 %v1570, %v1571
    %v1573 = vld [vmem:[#allocation33] sm:$0xff]
    %v1574 = vld [vmem:[#allocation33 + $0x8] sm:$0xff]
    %v1575 = vld [vmem:[#allocation33 + $0x10] sm:$0xff]
    %v1576 = vld [vmem:[#allocation33 + $0x18] sm:$0xff]
    %v1577 = vld [vmem:[#allocation35] sm:$0x1]
    %v1579 = vlaneseq
    %v1580 = vshrl.u32 %v1579, 7
    %v1581 = vsub.s32 0, %v1580
    %v1582 = vrot.slane %v1577, %v1581
    %v1585 = vsel %vm1103, %v1572, 0
    %1587 = vmatprep.subr.mxu0 0.0
    %1588 = vmatpush1.msra.mxu0 %v1573
    %1589 = vmatprep.subr.mxu0 0.0
    %1590 = vmatpush1.msra.mxu0 %v1574
    %1591 = vmatprep.subr.mxu0 0.0
    %1592 = vmatpush1.msra.mxu0 %v1575
    %1593 = vmatprep.subr.mxu0 0.0
    %1594 = vmatpush1.msra.mxu0 %v1576
    %1595 = vmatprep.subr.mxu0 0.0
    %1596 = vmatpush1.msra.mxu0 0.0
    %1597 = vmatprep.subr.mxu0 0.0
    %1598 = vmatpush1.msra.mxu0 0.0
    %1599 = vmatprep.subr.mxu0 0.0
    %1600 = vmatpush1.msra.mxu0 0.0
    %1601 = vmatprep.subr.mxu0 0.0
    %1602 = vmatpush1.msra.mxu0 0.0
    %1603 = vmatprep.subr.mxu0 0.0
    %1604 = vmatpush1.msra.mxu0 0.0
    %1605 = vmatprep.subr.mxu0 0.0
    %1606 = vmatpush1.msra.mxu0 0.0
    %1607 = vmatprep.subr.mxu0 0.0
    %1608 = vmatpush1.msra.mxu0 0.0
    %1609 = vmatprep.subr.mxu0 0.0
    %1610 = vmatpush1.msra.mxu0 0.0
    %1611 = vmatprep.subr.mxu0 0.0
    %1612 = vmatpush1.msra.mxu0 0.0
    %1613 = vmatprep.subr.mxu0 0.0
    %1614 = vmatpush1.msra.mxu0 0.0
    %1615 = vmatprep.subr.mxu0 0.0
    %1616 = vmatpush1.msra.mxu0 0.0
    %1617 = vmatprep.subr.mxu0 0.0
    %1618 = vmatpush1.msra.mxu0 0.0
    %1619 = vmatprep.subr.mxu0 0.0
    %1620 = vmatpush1.msra.mxu0 0.0
    %1621 = vmatprep.subr.mxu0 0.0
    %1622 = vmatpush1.msra.mxu0 0.0
    %1623 = vmatprep.subr.mxu0 0.0
    %1624 = vmatpush1.msra.mxu0 0.0
    %1625 = vmatprep.subr.mxu0 0.0
    %1626 = vmatpush1.msra.mxu0 0.0
    %1627 = vmatprep.subr.mxu0 0.0
    %1628 = vmatpush1.msra.mxu0 0.0
    %1629 = vmatprep.subr.mxu0 0.0
    %1630 = vmatpush1.msra.mxu0 0.0
    %1631 = vmatprep.subr.mxu0 0.0
    %1632 = vmatpush1.msra.mxu0 0.0
    %1633 = vmatprep.subr.mxu0 0.0
    %1634 = vmatpush1.msra.mxu0 0.0
    %1635 = vmatprep.subr.mxu0 0.0
    %1636 = vmatpush1.msra.mxu0 0.0
    %1637 = vmatprep.subr.mxu0 0.0
    %1638 = vmatpush1.msra.mxu0 0.0
    %1639 = vmatprep.subr.mxu0 0.0
    %1640 = vmatpush1.msra.mxu0 0.0
    %1641 = vmatprep.subr.mxu0 0.0
    %1642 = vmatpush1.msra.mxu0 0.0
    %1643 = vmatprep.subr.mxu0 0.0
    %1644 = vmatpush1.msra.mxu0 0.0
    %1645 = vmatprep.subr.mxu0 0.0
    %1646 = vmatpush1.msra.mxu0 0.0
    %1647 = vmatprep.subr.mxu0 0.0
    %1648 = vmatpush1.msra.mxu0 0.0
    %1649 = vmatprep.subr.mxu0 0.0
    %1650 = vmatpush1.msra.mxu0 0.0
    %1651 = vmatprep.mubr.f32.mxu0 0.0
    %1652 = vmatmul.mubr.f32.gmra.mrb[0].mxu0 %v1585
    %v1653 = vpop.f32.mrb[0].mxu0
    %v1654 = vadd.f32 %v1582, %v1653
    %v1655 = vpop.f32.mrb[0].mxu0
    %1656 = vdwg.mxu0
    %v1657 = vsel %vm1282, %v1654, 0.0
    %1658 = vadd.xlane.f32.xlu0 %v1657
    %v1659 = vpop.xlane.xlu0 %1658
    %v1660 = vmul.f32 %v1659, %v1286
    %v1661 = vsub.f32 %v1654, %v1660
    %v1662 = vmul.f32 %v1661, %v1661
    %v1663 = vsel %vm1282, %v1662, 0.0
    %1664 = vadd.xlane.f32.xlu0 %v1663
    %v1665 = vpop.xlane.xlu0 %1664
    %v1666 = vmul.f32 %v1665, %v1286
    %v1667 = vadd.f32 %v1666, 1e-05
    %v1668 = vrsqrt.pop %v1667
    %v1669 = vmul.f32 %v1661, %v1668
    %v1670 = vmul.f32 %v1669, 0.2
    %v1671 = vmax.f32 %v1669, %v1670
    %v1672 = vld [vmem:[#allocation36] sm:$0xff]
    %v1673 = vld [vmem:[#allocation36 + $0x8] sm:$0xff]
    %v1674 = vld [vmem:[#allocation36 + $0x10] sm:$0xff]
    %v1675 = vld [vmem:[#allocation36 + $0x18] sm:$0xff]
    %v1677 = vsel %vm617, %v1298, 0
    %1679 = vmatprep.subr.mxu0 0.0
    %1680 = vmatpush1.msra.mxu0 %v1674
    %1681 = vmatprep.subr.mxu0 0.0
    %1682 = vmatpush1.msra.mxu0 %v1675
    %1683 = vmatprep.subr.mxu0 0.0
    %1684 = vmatpush1.msra.mxu0 0.0
    %1685 = vmatprep.subr.mxu0 0.0
    %1686 = vmatpush1.msra.mxu0 0.0
    %1687 = vmatprep.subr.mxu0 0.0
    %1688 = vmatpush1.msra.mxu0 0.0
    %1689 = vmatprep.subr.mxu0 0.0
    %1690 = vmatpush1.msra.mxu0 0.0
    %1691 = vmatprep.subr.mxu0 0.0
    %1692 = vmatpush1.msra.mxu0 0.0
    %1693 = vmatprep.subr.mxu0 0.0
    %1694 = vmatpush1.msra.mxu0 0.0
    %1695 = vmatprep.subr.mxu0 0.0
    %1696 = vmatpush1.msra.mxu0 0.0
    %1697 = vmatprep.subr.mxu0 0.0
    %1698 = vmatpush1.msra.mxu0 0.0
    %1699 = vmatprep.subr.mxu0 0.0
    %1700 = vmatpush1.msra.mxu0 0.0
    %1701 = vmatprep.subr.mxu0 0.0
    %1702 = vmatpush1.msra.mxu0 0.0
    %1703 = vmatprep.subr.mxu0 0.0
    %1704 = vmatpush1.msra.mxu0 0.0
    %1705 = vmatprep.subr.mxu0 0.0
    %1706 = vmatpush1.msra.mxu0 0.0
    %1707 = vmatprep.subr.mxu0 0.0
    %1708 = vmatpush1.msra.mxu0 0.0
    %1709 = vmatprep.subr.mxu0 0.0
    %1710 = vmatpush1.msra.mxu0 0.0
    %1711 = vmatprep.subr.mxu0 0.0
    %1712 = vmatpush1.msra.mxu0 0.0
    %1713 = vmatprep.subr.mxu0 0.0
    %1714 = vmatpush1.msra.mxu0 0.0
    %1715 = vmatprep.subr.mxu0 0.0
    %1716 = vmatpush1.msra.mxu0 0.0
    %1717 = vmatprep.subr.mxu0 0.0
    %1718 = vmatpush1.msra.mxu0 0.0
    %1719 = vmatprep.subr.mxu0 0.0
    %1720 = vmatpush1.msra.mxu0 0.0
    %1721 = vmatprep.subr.mxu0 0.0
    %1722 = vmatpush1.msra.mxu0 0.0
    %1723 = vmatprep.subr.mxu0 0.0
    %1724 = vmatpush1.msra.mxu0 0.0
    %1725 = vmatprep.subr.mxu0 0.0
    %1726 = vmatpush1.msra.mxu0 0.0
    %1727 = vmatprep.subr.mxu0 0.0
    %1728 = vmatpush1.msra.mxu0 0.0
    %1729 = vmatprep.subr.mxu0 0.0
    %1730 = vmatpush1.msra.mxu0 0.0
    %1731 = vmatprep.subr.mxu0 0.0
    %1732 = vmatpush1.msra.mxu0 0.0
    %1733 = vmatprep.subr.mxu0 0.0
    %1734 = vmatpush1.msra.mxu0 0.0
    %1735 = vmatprep.subr.mxu0 0.0
    %1736 = vmatpush1.msra.mxu0 0.0
    %1737 = vmatprep.subr.mxu0 0.0
    %1738 = vmatpush1.msra.mxu0 0.0
    %1739 = vmatprep.subr.mxu0 0.0
    %1740 = vmatpush1.msra.mxu0 0.0
    %1741 = vmatprep.subr.mxu0 0.0
    %1742 = vmatpush1.msra.mxu0 0.0
    %1743 = vmatprep.mubr.f32.mxu0 0.0
    %1744 = vmatmul.mubr.f32.gmra.mrb[0].mxu0 %v1677
    %v1745 = vpop.f32.mrb[0].mxu0
    %v1746 = vadd.f32 0.0, %v1745
    %v1747 = vpop.f32.mrb[0].mxu0
    %1748 = vdwg.mxu0
    %v1750 = vsel %vm617, %v1671, 0
    %1752 = vmatprep.subr.mxu0 0.0
    %1753 = vmatpush1.msra.mxu0 %v1672
    %1754 = vmatprep.subr.mxu0 0.0
    %1755 = vmatpush1.msra.mxu0 %v1673
    %1756 = vmatprep.subr.mxu0 0.0
    %1757 = vmatpush1.msra.mxu0 0.0
    %1758 = vmatprep.subr.mxu0 0.0
    %1759 = vmatpush1.msra.mxu0 0.0
    %1760 = vmatprep.subr.mxu0 0.0
    %1761 = vmatpush1.msra.mxu0 0.0
    %1762 = vmatprep.subr.mxu0 0.0
    %1763 = vmatpush1.msra.mxu0 0.0
    %1764 = vmatprep.subr.mxu0 0.0
    %1765 = vmatpush1.msra.mxu0 0.0
    %1766 = vmatprep.subr.mxu0 0.0
    %1767 = vmatpush1.msra.mxu0 0.0
    %1768 = vmatprep.subr.mxu0 0.0
    %1769 = vmatpush1.msra.mxu0 0.0
    %1770 = vmatprep.subr.mxu0 0.0
    %1771 = vmatpush1.msra.mxu0 0.0
    %1772 = vmatprep.subr.mxu0 0.0
    %1773 = vmatpush1.msra.mxu0 0.0
    %1774 = vmatprep.subr.mxu0 0.0
    %1775 = vmatpush1.msra.mxu0 0.0
    %1776 = vmatprep.subr.mxu0 0.0
    %1777 = vmatpush1.msra.mxu0 0.0
    %1778 = vmatprep.subr.mxu0 0.0
    %1779 = vmatpush1.msra.mxu0 0.0
    %1780 = vmatprep.subr.mxu0 0.0
    %1781 = vmatpush1.msra.mxu0 0.0
    %1782 = vmatprep.subr.mxu0 0.0
    %1783 = vmatpush1.msra.mxu0 0.0
    %1784 = vmatprep.subr.mxu0 0.0
    %1785 = vmatpush1.msra.mxu0 0.0
    %1786 = vmatprep.subr.mxu0 0.0
    %1787 = vmatpush1.msra.mxu0 0.0
    %1788 = vmatprep.subr.mxu0 0.0
    %1789 = vmatpush1.msra.mxu0 0.0
    %1790 = vmatprep.subr.mxu0 0.0
    %1791 = vmatpush1.msra.mxu0 0.0
    %1792 = vmatprep.subr.mxu0 0.0
    %1793 = vmatpush1.msra.mxu0 0.0
    %1794 = vmatprep.subr.mxu0 0.0
    %1795 = vmatpush1.msra.mxu0 0.0
    %1796 = vmatprep.subr.mxu0 0.0
    %1797 = vmatpush1.msra.mxu0 0.0
    %1798 = vmatprep.subr.mxu0 0.0
    %1799 = vmatpush1.msra.mxu0 0.0
    %1800 = vmatprep.subr.mxu0 0.0
    %1801 = vmatpush1.msra.mxu0 0.0
    %1802 = vmatprep.subr.mxu0 0.0
    %1803 = vmatpush1.msra.mxu0 0.0
    %1804 = vmatprep.subr.mxu0 0.0
    %1805 = vmatpush1.msra.mxu0 0.0
    %1806 = vmatprep.subr.mxu0 0.0
    %1807 = vmatpush1.msra.mxu0 0.0
    %1808 = vmatprep.subr.mxu0 0.0
    %1809 = vmatpush1.msra.mxu0 0.0
    %1810 = vmatprep.subr.mxu0 0.0
    %1811 = vmatpush1.msra.mxu0 0.0
    %1812 = vmatprep.subr.mxu0 0.0
    %1813 = vmatpush1.msra.mxu0 0.0
    %1814 = vmatprep.subr.mxu0 0.0
    %1815 = vmatpush1.msra.mxu0 0.0
    %1816 = vmatprep.mubr.f32.mxu0 0.0
    %1817 = vmatmul.mubr.f32.gmra.mrb[0].mxu0 %v1750
    %v1818 = vpop.f32.mrb[0].mxu0
    %v1819 = vadd.f32 %v1746, %v1818
    %v1820 = vpop.f32.mrb[0].mxu0
    %1821 = vdwg.mxu0
    %v1822 = vld [vmem:[#allocation38] sm:$0x1]
    %v1824 = vlaneseq
    %v1825 = vshrl.u32 %v1824, 7
    %v1826 = vsub.s32 0, %v1825
    %v1827 = vrot.slane %v1822, %v1826
    %v1829 = vadd.f32 %v1819, %v1827
    %v1830 = vsel %vm1282, %v1829, 0.0
    %1831 = vadd.xlane.f32.xlu0 %v1830
    %v1832 = vpop.xlane.xlu0 %1831
    %v1833 = vmul.f32 %v1832, %v1286
    %v1834 = vsub.f32 %v1829, %v1833
    %v1835 = vmul.f32 %v1834, %v1834
    %v1836 = vsel %vm1282, %v1835, 0.0
    %1837 = vadd.xlane.f32.xlu0 %v1836
    %v1838 = vpop.xlane.xlu0 %1837
    %v1839 = vmul.f32 %v1838, %v1286
    %v1840 = vadd.f32 %v1839, 1e-05
    %v1841 = vrsqrt.pop %v1840
    %v1842 = vmul.f32 %v1834, %v1841
    %v1843 = vmul.f32 %v1842, 0.2
    %v1844 = vmax.f32 %v1842, %v1843
    %v1845 = vld [vmem:[#allocation39] sm:$0xff]
    %v1846 = vld [vmem:[#allocation41] sm:$0x1]
    %v1848 = vlaneseq
    %v1849 = vshrl.u32 %v1848, 7
    %v1850 = vsub.s32 0, %v1849
    %v1851 = vrot.slane %v1846, %v1850
    %1853 = vmatprep.subr.mxu0 0.0
    %1854 = vmatpush1.msra.mxu0 %v1845
    %1855 = vmatprep.subr.mxu0 0.0
    %1856 = vmatpush1.msra.mxu0 0.0
    %1857 = vmatprep.subr.mxu0 0.0
    %1858 = vmatpush1.msra.mxu0 0.0
    %1859 = vmatprep.subr.mxu0 0.0
    %1860 = vmatpush1.msra.mxu0 0.0
    %1861 = vmatprep.subr.mxu0 0.0
    %1862 = vmatpush1.msra.mxu0 0.0
    %1863 = vmatprep.subr.mxu0 0.0
    %1864 = vmatpush1.msra.mxu0 0.0
    %1865 = vmatprep.subr.mxu0 0.0
    %1866 = vmatpush1.msra.mxu0 0.0
    %1867 = vmatprep.subr.mxu0 0.0
    %1868 = vmatpush1.msra.mxu0 0.0
    %1869 = vmatprep.subr.mxu0 0.0
    %1870 = vmatpush1.msra.mxu0 0.0
    %1871 = vmatprep.subr.mxu0 0.0
    %1872 = vmatpush1.msra.mxu0 0.0
    %1873 = vmatprep.subr.mxu0 0.0
    %1874 = vmatpush1.msra.mxu0 0.0
    %1875 = vmatprep.subr.mxu0 0.0
    %1876 = vmatpush1.msra.mxu0 0.0
    %1877 = vmatprep.subr.mxu0 0.0
    %1878 = vmatpush1.msra.mxu0 0.0
    %1879 = vmatprep.subr.mxu0 0.0
    %1880 = vmatpush1.msra.mxu0 0.0
    %1881 = vmatprep.subr.mxu0 0.0
    %1882 = vmatpush1.msra.mxu0 0.0
    %1883 = vmatprep.subr.mxu0 0.0
    %1884 = vmatpush1.msra.mxu0 0.0
    %1885 = vmatprep.subr.mxu0 0.0
    %1886 = vmatpush1.msra.mxu0 0.0
    %1887 = vmatprep.subr.mxu0 0.0
    %1888 = vmatpush1.msra.mxu0 0.0
    %1889 = vmatprep.subr.mxu0 0.0
    %1890 = vmatpush1.msra.mxu0 0.0
    %1891 = vmatprep.subr.mxu0 0.0
    %1892 = vmatpush1.msra.mxu0 0.0
    %1893 = vmatprep.subr.mxu0 0.0
    %1894 = vmatpush1.msra.mxu0 0.0
    %1895 = vmatprep.subr.mxu0 0.0
    %1896 = vmatpush1.msra.mxu0 0.0
    %1897 = vmatprep.subr.mxu0 0.0
    %1898 = vmatpush1.msra.mxu0 0.0
    %1899 = vmatprep.subr.mxu0 0.0
    %1900 = vmatpush1.msra.mxu0 0.0
    %1901 = vmatprep.subr.mxu0 0.0
    %1902 = vmatpush1.msra.mxu0 0.0
    %1903 = vmatprep.subr.mxu0 0.0
    %1904 = vmatpush1.msra.mxu0 0.0
    %1905 = vmatprep.subr.mxu0 0.0
    %1906 = vmatpush1.msra.mxu0 0.0
    %1907 = vmatprep.subr.mxu0 0.0
    %1908 = vmatpush1.msra.mxu0 0.0
    %1909 = vmatprep.subr.mxu0 0.0
    %1910 = vmatpush1.msra.mxu0 0.0
    %1911 = vmatprep.subr.mxu0 0.0
    %1912 = vmatpush1.msra.mxu0 0.0
    %1913 = vmatprep.subr.mxu0 0.0
    %1914 = vmatpush1.msra.mxu0 0.0
    %1915 = vmatprep.subr.mxu0 0.0
    %1916 = vmatpush1.msra.mxu0 0.0
    %1917 = vmatprep.mubr.f32.mxu0 0.0
    %1918 = vmatmul.mubr.f32.gmra.mrb[0].mxu0 %v916
    %v1919 = vpop.f32.mrb[0].mxu0
    %v1920 = vadd.f32 %v1851, %v1919
    %v1921 = vpop.f32.mrb[0].mxu0
    %1922 = vdwg.mxu0
    %v1923 = vxor.u32 %v1920, 2147483648
    %v1924 = vmul.f32 %v1923, 1.442695
    %v1925 = vpow.pop %v1924
    %v1926 = vadd.f32 %v1925, 1.0
    %v1927 = vrcp.pop %v1926
    %v1928 = vmul.f32 1.0, %v1927
    %v1929 = vmul.f32 %v1920, %v1928
    %v1930 = vld [vmem:[#allocation42] sm:$0xff]
    %v1931 = vld [vmem:[#allocation42 + $0x8] sm:$0xff]
    %v1932 = vld [vmem:[#allocation42 + $0x10] sm:$0xff]
    %v1933 = vld [vmem:[#allocation42 + $0x18] sm:$0xff]
    %v1934 = vld [vmem:[#allocation44] sm:$0x1]
    %v1936 = vlaneseq
    %v1937 = vshrl.u32 %v1936, 7
    %v1938 = vsub.s32 0, %v1937
    %v1939 = vrot.slane %v1934, %v1938
    %v1942 = vsel %vm1103, %v1929, 0
    %1944 = vmatprep.subr.mxu0 0.0
    %1945 = vmatpush1.msra.mxu0 %v1930
    %1946 = vmatprep.subr.mxu0 0.0
    %1947 = vmatpush1.msra.mxu0 %v1931
    %1948 = vmatprep.subr.mxu0 0.0
    %1949 = vmatpush1.msra.mxu0 %v1932
    %1950 = vmatprep.subr.mxu0 0.0
    %1951 = vmatpush1.msra.mxu0 %v1933
    %1952 = vmatprep.subr.mxu0 0.0
    %1953 = vmatpush1.msra.mxu0 0.0
    %1954 = vmatprep.subr.mxu0 0.0
    %1955 = vmatpush1.msra.mxu0 0.0
    %1956 = vmatprep.subr.mxu0 0.0
    %1957 = vmatpush1.msra.mxu0 0.0
    %1958 = vmatprep.subr.mxu0 0.0
    %1959 = vmatpush1.msra.mxu0 0.0
    %1960 = vmatprep.subr.mxu0 0.0
    %1961 = vmatpush1.msra.mxu0 0.0
    %1962 = vmatprep.subr.mxu0 0.0
    %1963 = vmatpush1.msra.mxu0 0.0
    %1964 = vmatprep.subr.mxu0 0.0
    %1965 = vmatpush1.msra.mxu0 0.0
    %1966 = vmatprep.subr.mxu0 0.0
    %1967 = vmatpush1.msra.mxu0 0.0
    %1968 = vmatprep.subr.mxu0 0.0
    %1969 = vmatpush1.msra.mxu0 0.0
    %1970 = vmatprep.subr.mxu0 0.0
    %1971 = vmatpush1.msra.mxu0 0.0
    %1972 = vmatprep.subr.mxu0 0.0
    %1973 = vmatpush1.msra.mxu0 0.0
    %1974 = vmatprep.subr.mxu0 0.0
    %1975 = vmatpush1.msra.mxu0 0.0
    %1976 = vmatprep.subr.mxu0 0.0
    %1977 = vmatpush1.msra.mxu0 0.0
    %1978 = vmatprep.subr.mxu0 0.0
    %1979 = vmatpush1.msra.mxu0 0.0
    %1980 = vmatprep.subr.mxu0 0.0
    %1981 = vmatpush1.msra.mxu0 0.0
    %1982 = vmatprep.subr.mxu0 0.0
    %1983 = vmatpush1.msra.mxu0 0.0
    %1984 = vmatprep.subr.mxu0 0.0
    %1985 = vmatpush1.msra.mxu0 0.0
    %1986 = vmatprep.subr.mxu0 0.0
    %1987 = vmatpush1.msra.mxu0 0.0
    %1988 = vmatprep.subr.mxu0 0.0
    %1989 = vmatpush1.msra.mxu0 0.0
    %1990 = vmatprep.subr.mxu0 0.0
    %1991 = vmatpush1.msra.mxu0 0.0
    %1992 = vmatprep.subr.mxu0 0.0
    %1993 = vmatpush1.msra.mxu0 0.0
    %1994 = vmatprep.subr.mxu0 0.0
    %1995 = vmatpush1.msra.mxu0 0.0
    %1996 = vmatprep.subr.mxu0 0.0
    %1997 = vmatpush1.msra.mxu0 0.0
    %1998 = vmatprep.subr.mxu0 0.0
    %1999 = vmatpush1.msra.mxu0 0.0
    %2000 = vmatprep.subr.mxu0 0.0
    %2001 = vmatpush1.msra.mxu0 0.0
    %2002 = vmatprep.subr.mxu0 0.0
    %2003 = vmatpush1.msra.mxu0 0.0
    %2004 = vmatprep.subr.mxu0 0.0
    %2005 = vmatpush1.msra.mxu0 0.0
    %2006 = vmatprep.subr.mxu0 0.0
    %2007 = vmatpush1.msra.mxu0 0.0
    %2008 = vmatprep.mubr.f32.mxu0 0.0
    %2009 = vmatmul.mubr.f32.gmra.mrb[0].mxu0 %v1942
    %v2010 = vpop.f32.mrb[0].mxu0
    %v2011 = vadd.f32 %v1939, %v2010
    %v2012 = vpop.f32.mrb[0].mxu0
    %2013 = vdwg.mxu0
    %v2014 = vadd.f32 %v1844, %v2011
    %v2015 = vxor.u32 %v2014, 2147483648
    %v2016 = vmul.f32 %v2015, 1.442695
    %v2017 = vpow.pop %v2016
    %v2018 = vadd.f32 %v2017, 1.0
    %v2019 = vrcp.pop %v2018
    %v2020 = vmul.f32 1.0, %v2019
    %v2021 = vmul.f32 %v2014, %v2020
    %v2022 = vld [vmem:[#allocation45] sm:$0xff]
    %v2023 = vld [vmem:[#allocation45 + $0x8] sm:$0xff]
    %v2024 = vld [vmem:[#allocation47] sm:$0x1]
    %v2026 = vlaneseq
    %v2027 = vshrl.u32 %v2026, 7
    %v2028 = vsub.s32 0, %v2027
    %v2029 = vrot.slane %v2024, %v2028
    %v2032 = vsel %vm617, %v2021, 0
    %2034 = vmatprep.subr.mxu0 0.0
    %2035 = vmatpush1.msra.mxu0 %v2022
    %2036 = vmatprep.subr.mxu0 0.0
    %2037 = vmatpush1.msra.mxu0 %v2023
    %2038 = vmatprep.subr.mxu0 0.0
    %2039 = vmatpush1.msra.mxu0 0.0
    %2040 = vmatprep.subr.mxu0 0.0
    %2041 = vmatpush1.msra.mxu0 0.0
    %2042 = vmatprep.subr.mxu0 0.0
    %2043 = vmatpush1.msra.mxu0 0.0
    %2044 = vmatprep.subr.mxu0 0.0
    %2045 = vmatpush1.msra.mxu0 0.0
    %2046 = vmatprep.subr.mxu0 0.0
    %2047 = vmatpush1.msra.mxu0 0.0
    %2048 = vmatprep.subr.mxu0 0.0
    %2049 = vmatpush1.msra.mxu0 0.0
    %2050 = vmatprep.subr.mxu0 0.0
    %2051 = vmatpush1.msra.mxu0 0.0
    %2052 = vmatprep.subr.mxu0 0.0
    %2053 = vmatpush1.msra.mxu0 0.0
    %2054 = vmatprep.subr.mxu0 0.0
    %2055 = vmatpush1.msra.mxu0 0.0
    %2056 = vmatprep.subr.mxu0 0.0
    %2057 = vmatpush1.msra.mxu0 0.0
    %2058 = vmatprep.subr.mxu0 0.0
    %2059 = vmatpush1.msra.mxu0 0.0
    %2060 = vmatprep.subr.mxu0 0.0
    %2061 = vmatpush1.msra.mxu0 0.0
    %2062 = vmatprep.subr.mxu0 0.0
    %2063 = vmatpush1.msra.mxu0 0.0
    %2064 = vmatprep.subr.mxu0 0.0
    %2065 = vmatpush1.msra.mxu0 0.0
    %2066 = vmatprep.subr.mxu0 0.0
    %2067 = vmatpush1.msra.mxu0 0.0
    %2068 = vmatprep.subr.mxu0 0.0
    %2069 = vmatpush1.msra.mxu0 0.0
    %2070 = vmatprep.subr.mxu0 0.0
    %2071 = vmatpush1.msra.mxu0 0.0
    %2072 = vmatprep.subr.mxu0 0.0
    %2073 = vmatpush1.msra.mxu0 0.0
    %2074 = vmatprep.subr.mxu0 0.0
    %2075 = vmatpush1.msra.mxu0 0.0
    %2076 = vmatprep.subr.mxu0 0.0
    %2077 = vmatpush1.msra.mxu0 0.0
    %2078 = vmatprep.subr.mxu0 0.0
    %2079 = vmatpush1.msra.mxu0 0.0
    %2080 = vmatprep.subr.mxu0 0.0
    %2081 = vmatpush1.msra.mxu0 0.0
    %2082 = vmatprep.subr.mxu0 0.0
    %2083 = vmatpush1.msra.mxu0 0.0
    %2084 = vmatprep.subr.mxu0 0.0
    %2085 = vmatpush1.msra.mxu0 0.0
    %2086 = vmatprep.subr.mxu0 0.0
    %2087 = vmatpush1.msra.mxu0 0.0
    %2088 = vmatprep.subr.mxu0 0.0
    %2089 = vmatpush1.msra.mxu0 0.0
    %2090 = vmatprep.subr.mxu0 0.0
    %2091 = vmatpush1.msra.mxu0 0.0
    %2092 = vmatprep.subr.mxu0 0.0
    %2093 = vmatpush1.msra.mxu0 0.0
    %2094 = vmatprep.subr.mxu0 0.0
    %2095 = vmatpush1.msra.mxu0 0.0
    %2096 = vmatprep.subr.mxu0 0.0
    %2097 = vmatpush1.msra.mxu0 0.0
    %2098 = vmatprep.mubr.f32.mxu0 0.0
    %2099 = vmatmul.mubr.f32.gmra.mrb[0].mxu0 %v2032
    %v2100 = vpop.f32.mrb[0].mxu0
    %v2101 = vadd.f32 %v2029, %v2100
    %v2102 = vpop.f32.mrb[0].mxu0
    %2103 = vdwg.mxu0
    %v2104 = vsel %vm889, %v2101, 0.0
    %2105 = vadd.xlane.f32.xlu0 %v2104
    %v2106 = vpop.xlane.xlu0 %2105
    %v2107 = vmul.f32 %v2106, %v893
    %v2108 = vsub.f32 %v2101, %v2107
    %v2109 = vmul.f32 %v2108, %v2108
    %v2110 = vsel %vm889, %v2109, 0.0
    %2111 = vadd.xlane.f32.xlu0 %v2110
    %v2112 = vpop.xlane.xlu0 %2111
    %v2113 = vmul.f32 %v2112, %v893
    %v2114 = vadd.f32 %v2113, 1e-05
    %v2115 = vrsqrt.pop %v2114
    %v2116 = vmul.f32 %v2108, %v2115
    %v2117 = vmul.f32 %v2116, 0.2
    %v2118 = vmax.f32 %v2116, %v2117
    %v2119 = vld [vmem:[#allocation48] sm:$0xff]
    %v2120 = vld [vmem:[#allocation48 + $0x8] sm:$0xff]
    %v2121 = vld [vmem:[#allocation48 + $0x10] sm:$0xff]
    %v2122 = vld [vmem:[#allocation48 + $0x18] sm:$0xff]
    %v2123 = vld [vmem:[#allocation48 + $0x20] sm:$0xff]
    %v2124 = vld [vmem:[#allocation48 + $0x28] sm:$0xff]
    %v2125 = vld [vmem:[#allocation48 + $0x30] sm:$0xff]
    %v2126 = vld [vmem:[#allocation48 + $0x38] sm:$0xff]
    %v2128 = vsel %vm1103, %v905, 0
    %2130 = vmatprep.subr.mxu0 0.0
    %2131 = vmatpush1.msra.mxu0 %v2123
    %2132 = vmatprep.subr.mxu0 0.0
    %2133 = vmatpush1.msra.mxu0 %v2124
    %2134 = vmatprep.subr.mxu0 0.0
    %2135 = vmatpush1.msra.mxu0 %v2125
    %2136 = vmatprep.subr.mxu0 0.0
    %2137 = vmatpush1.msra.mxu0 %v2126
    %2138 = vmatprep.subr.mxu0 0.0
    %2139 = vmatpush1.msra.mxu0 0.0
    %2140 = vmatprep.subr.mxu0 0.0
    %2141 = vmatpush1.msra.mxu0 0.0
    %2142 = vmatprep.subr.mxu0 0.0
    %2143 = vmatpush1.msra.mxu0 0.0
    %2144 = vmatprep.subr.mxu0 0.0
    %2145 = vmatpush1.msra.mxu0 0.0
    %2146 = vmatprep.subr.mxu0 0.0
    %2147 = vmatpush1.msra.mxu0 0.0
    %2148 = vmatprep.subr.mxu0 0.0
    %2149 = vmatpush1.msra.mxu0 0.0
    %2150 = vmatprep.subr.mxu0 0.0
    %2151 = vmatpush1.msra.mxu0 0.0
    %2152 = vmatprep.subr.mxu0 0.0
    %2153 = vmatpush1.msra.mxu0 0.0
    %2154 = vmatprep.subr.mxu0 0.0
    %2155 = vmatpush1.msra.mxu0 0.0
    %2156 = vmatprep.subr.mxu0 0.0
    %2157 = vmatpush1.msra.mxu0 0.0
    %2158 = vmatprep.subr.mxu0 0.0
    %2159 = vmatpush1.msra.mxu0 0.0
    %2160 = vmatprep.subr.mxu0 0.0
    %2161 = vmatpush1.msra.mxu0 0.0
    %2162 = vmatprep.subr.mxu0 0.0
    %2163 = vmatpush1.msra.mxu0 0.0
    %2164 = vmatprep.subr.mxu0 0.0
    %2165 = vmatpush1.msra.mxu0 0.0
    %2166 = vmatprep.subr.mxu0 0.0
    %2167 = vmatpush1.msra.mxu0 0.0
    %2168 = vmatprep.subr.mxu0 0.0
    %2169 = vmatpush1.msra.mxu0 0.0
    %2170 = vmatprep.subr.mxu0 0.0
    %2171 = vmatpush1.msra.mxu0 0.0
    %2172 = vmatprep.subr.mxu0 0.0
    %2173 = vmatpush1.msra.mxu0 0.0
    %2174 = vmatprep.subr.mxu0 0.0
    %2175 = vmatpush1.msra.mxu0 0.0
    %2176 = vmatprep.subr.mxu0 0.0
    %2177 = vmatpush1.msra.mxu0 0.0
    %2178 = vmatprep.subr.mxu0 0.0
    %2179 = vmatpush1.msra.mxu0 0.0
    %2180 = vmatprep.subr.mxu0 0.0
    %2181 = vmatpush1.msra.mxu0 0.0
    %2182 = vmatprep.subr.mxu0 0.0
    %2183 = vmatpush1.msra.mxu0 0.0
    %2184 = vmatprep.subr.mxu0 0.0
    %2185 = vmatpush1.msra.mxu0 0.0
    %2186 = vmatprep.subr.mxu0 0.0
    %2187 = vmatpush1.msra.mxu0 0.0
    %2188 = vmatprep.subr.mxu0 0.0
    %2189 = vmatpush1.msra.mxu0 0.0
    %2190 = vmatprep.subr.mxu0 0.0
    %2191 = vmatpush1.msra.mxu0 0.0
    %2192 = vmatprep.subr.mxu0 0.0
    %2193 = vmatpush1.msra.mxu0 0.0
    %2194 = vmatprep.mubr.f32.mxu0 0.0
    %2195 = vmatmul.mubr.f32.gmra.mrb[0].mxu0 %v2128
    %v2196 = vpop.f32.mrb[0].mxu0
    %v2197 = vadd.f32 0.0, %v2196
    %v2198 = vpop.f32.mrb[0].mxu0
    %2199 = vdwg.mxu0
    %v2201 = vsel %vm1103, %v2118, 0
    %2203 = vmatprep.subr.mxu0 0.0
    %2204 = vmatpush1.msra.mxu0 %v2119
    %2205 = vmatprep.subr.mxu0 0.0
    %2206 = vmatpush1.msra.mxu0 %v2120
    %2207 = vmatprep.subr.mxu0 0.0
    %2208 = vmatpush1.msra.mxu0 %v2121
    %2209 = vmatprep.subr.mxu0 0.0
    %2210 = vmatpush1.msra.mxu0 %v2122
    %2211 = vmatprep.subr.mxu0 0.0
    %2212 = vmatpush1.msra.mxu0 0.0
    %2213 = vmatprep.subr.mxu0 0.0
    %2214 = vmatpush1.msra.mxu0 0.0
    %2215 = vmatprep.subr.mxu0 0.0
    %2216 = vmatpush1.msra.mxu0 0.0
    %2217 = vmatprep.subr.mxu0 0.0
    %2218 = vmatpush1.msra.mxu0 0.0
    %2219 = vmatprep.subr.mxu0 0.0
    %2220 = vmatpush1.msra.mxu0 0.0
    %2221 = vmatprep.subr.mxu0 0.0
    %2222 = vmatpush1.msra.mxu0 0.0
    %2223 = vmatprep.subr.mxu0 0.0
    %2224 = vmatpush1.msra.mxu0 0.0
    %2225 = vmatprep.subr.mxu0 0.0
    %2226 = vmatpush1.msra.mxu0 0.0
    %2227 = vmatprep.subr.mxu0 0.0
    %2228 = vmatpush1.msra.mxu0 0.0
    %2229 = vmatprep.subr.mxu0 0.0
    %2230 = vmatpush1.msra.mxu0 0.0
    %2231 = vmatprep.subr.mxu0 0.0
    %2232 = vmatpush1.msra.mxu0 0.0
    %2233 = vmatprep.subr.mxu0 0.0
    %2234 = vmatpush1.msra.mxu0 0.0
    %2235 = vmatprep.subr.mxu0 0.0
    %2236 = vmatpush1.msra.mxu0 0.0
    %2237 = vmatprep.subr.mxu0 0.0
    %2238 = vmatpush1.msra.mxu0 0.0
    %2239 = vmatprep.subr.mxu0 0.0
    %2240 = vmatpush1.msra.mxu0 0.0
    %2241 = vmatprep.subr.mxu0 0.0
    %2242 = vmatpush1.msra.mxu0 0.0
    %2243 = vmatprep.subr.mxu0 0.0
    %2244 = vmatpush1.msra.mxu0 0.0
    %2245 = vmatprep.subr.mxu0 0.0
    %2246 = vmatpush1.msra.mxu0 0.0
    %2247 = vmatprep.subr.mxu0 0.0
    %2248 = vmatpush1.msra.mxu0 0.0
    %2249 = vmatprep.subr.mxu0 0.0
    %2250 = vmatpush1.msra.mxu0 0.0
    %2251 = vmatprep.subr.mxu0 0.0
    %2252 = vmatpush1.msra.mxu0 0.0
    %2253 = vmatprep.subr.mxu0 0.0
    %2254 = vmatpush1.msra.mxu0 0.0
    %2255 = vmatprep.subr.mxu0 0.0
    %2256 = vmatpush1.msra.mxu0 0.0
    %2257 = vmatprep.subr.mxu0 0.0
    %2258 = vmatpush1.msra.mxu0 0.0
    %2259 = vmatprep.subr.mxu0 0.0
    %2260 = vmatpush1.msra.mxu0 0.0
    %2261 = vmatprep.subr.mxu0 0.0
    %2262 = vmatpush1.msra.mxu0 0.0
    %2263 = vmatprep.subr.mxu0 0.0
    %2264 = vmatpush1.msra.mxu0 0.0
    %2265 = vmatprep.subr.mxu0 0.0
    %2266 = vmatpush1.msra.mxu0 0.0
    %2267 = vmatprep.mubr.f32.mxu0 0.0
    %2268 = vmatmul.mubr.f32.gmra.mrb[0].mxu0 %v2201
    %v2269 = vpop.f32.mrb[0].mxu0
    %v2270 = vadd.f32 %v2197, %v2269
    %v2271 = vpop.f32.mrb[0].mxu0
    %2272 = vdwg.mxu0
    %v2273 = vld [vmem:[#allocation50] sm:$0x1]
    %v2275 = vlaneseq
    %v2276 = vshrl.u32 %v2275, 7
    %v2277 = vsub.s32 0, %v2276
    %v2278 = vrot.slane %v2273, %v2277
    %v2280 = vadd.f32 %v2270, %v2278
    %v2281 = vsel %vm889, %v2280, 0.0
    %2282 = vadd.xlane.f32.xlu0 %v2281
    %v2283 = vpop.xlane.xlu0 %2282
    %v2284 = vmul.f32 %v2283, %v893
    %v2285 = vsub.f32 %v2280, %v2284
    %v2286 = vmul.f32 %v2285, %v2285
    %v2287 = vsel %vm889, %v2286, 0.0
    %2288 = vadd.xlane.f32.xlu0 %v2287
    %v2289 = vpop.xlane.xlu0 %2288
    %v2290 = vmul.f32 %v2289, %v893
    %v2291 = vadd.f32 %v2290, 1e-05
    %v2292 = vrsqrt.pop %v2291
    %v2293 = vmul.f32 %v2285, %v2292
    %v2294 = vmul.f32 %v2293, 0.2
    %v2295 = vmax.f32 %v2293, %v2294
    %v2296 = vld [vmem:[#allocation51] sm:$0xff]
    %v2297 = vld [vmem:[#allocation53] sm:$0x1]
    %v2299 = vlaneseq
    %v2300 = vshrl.u32 %v2299, 7
    %v2301 = vsub.s32 0, %v2300
    %v2302 = vrot.slane %v2297, %v2301
    %2304 = vmatprep.subr.mxu0 0.0
    %2305 = vmatpush1.msra.mxu0 %v2296
    %2306 = vmatprep.subr.mxu0 0.0
    %2307 = vmatpush1.msra.mxu0 0.0
    %2308 = vmatprep.subr.mxu0 0.0
    %2309 = vmatpush1.msra.mxu0 0.0
    %2310 = vmatprep.subr.mxu0 0.0
    %2311 = vmatpush1.msra.mxu0 0.0
    %2312 = vmatprep.subr.mxu0 0.0
    %2313 = vmatpush1.msra.mxu0 0.0
    %2314 = vmatprep.subr.mxu0 0.0
    %2315 = vmatpush1.msra.mxu0 0.0
    %2316 = vmatprep.subr.mxu0 0.0
    %2317 = vmatpush1.msra.mxu0 0.0
    %2318 = vmatprep.subr.mxu0 0.0
    %2319 = vmatpush1.msra.mxu0 0.0
    %2320 = vmatprep.subr.mxu0 0.0
    %2321 = vmatpush1.msra.mxu0 0.0
    %2322 = vmatprep.subr.mxu0 0.0
    %2323 = vmatpush1.msra.mxu0 0.0
    %2324 = vmatprep.subr.mxu0 0.0
    %2325 = vmatpush1.msra.mxu0 0.0
    %2326 = vmatprep.subr.mxu0 0.0
    %2327 = vmatpush1.msra.mxu0 0.0
    %2328 = vmatprep.subr.mxu0 0.0
    %2329 = vmatpush1.msra.mxu0 0.0
    %2330 = vmatprep.subr.mxu0 0.0
    %2331 = vmatpush1.msra.mxu0 0.0
    %2332 = vmatprep.subr.mxu0 0.0
    %2333 = vmatpush1.msra.mxu0 0.0
    %2334 = vmatprep.subr.mxu0 0.0
    %2335 = vmatpush1.msra.mxu0 0.0
    %2336 = vmatprep.subr.mxu0 0.0
    %2337 = vmatpush1.msra.mxu0 0.0
    %2338 = vmatprep.subr.mxu0 0.0
    %2339 = vmatpush1.msra.mxu0 0.0
    %2340 = vmatprep.subr.mxu0 0.0
    %2341 = vmatpush1.msra.mxu0 0.0
    %2342 = vmatprep.subr.mxu0 0.0
    %2343 = vmatpush1.msra.mxu0 0.0
    %2344 = vmatprep.subr.mxu0 0.0
    %2345 = vmatpush1.msra.mxu0 0.0
    %2346 = vmatprep.subr.mxu0 0.0
    %2347 = vmatpush1.msra.mxu0 0.0
    %2348 = vmatprep.subr.mxu0 0.0
    %2349 = vmatpush1.msra.mxu0 0.0
    %2350 = vmatprep.subr.mxu0 0.0
    %2351 = vmatpush1.msra.mxu0 0.0
    %2352 = vmatprep.subr.mxu0 0.0
    %2353 = vmatpush1.msra.mxu0 0.0
    %2354 = vmatprep.subr.mxu0 0.0
    %2355 = vmatpush1.msra.mxu0 0.0
    %2356 = vmatprep.subr.mxu0 0.0
    %2357 = vmatpush1.msra.mxu0 0.0
    %2358 = vmatprep.subr.mxu0 0.0
    %2359 = vmatpush1.msra.mxu0 0.0
    %2360 = vmatprep.subr.mxu0 0.0
    %2361 = vmatpush1.msra.mxu0 0.0
    %2362 = vmatprep.subr.mxu0 0.0
    %2363 = vmatpush1.msra.mxu0 0.0
    %2364 = vmatprep.subr.mxu0 0.0
    %2365 = vmatpush1.msra.mxu0 0.0
    %2366 = vmatprep.subr.mxu0 0.0
    %2367 = vmatpush1.msra.mxu0 0.0
    %2368 = vmatprep.mubr.f32.mxu0 0.0
    %2369 = vmatmul.mubr.f32.gmra.mrb[0].mxu0 %v916
    %v2370 = vpop.f32.mrb[0].mxu0
    %v2371 = vadd.f32 %v2302, %v2370
    %v2372 = vpop.f32.mrb[0].mxu0
    %2373 = vdwg.mxu0
    %v2374 = vxor.u32 %v2371, 2147483648
    %v2375 = vmul.f32 %v2374, 1.442695
    %v2376 = vpow.pop %v2375
    %v2377 = vadd.f32 %v2376, 1.0
    %v2378 = vrcp.pop %v2377
    %v2379 = vmul.f32 1.0, %v2378
    %v2380 = vmul.f32 %v2371, %v2379
    %v2381 = vld [vmem:[%s71] sm:$0xff]
    %v2382 = vld [vmem:[%s71 + $0x8] sm:$0xff]
    %v2383 = vld [vmem:[%s71 + $0x10] sm:$0xff]
    %v2384 = vld [vmem:[%s71 + $0x18] sm:$0xff]
    %v2385 = vld [vmem:[%s71 + $0x20] sm:$0xff]
    %v2386 = vld [vmem:[%s71 + $0x28] sm:$0xff]
    %v2387 = vld [vmem:[%s71 + $0x30] sm:$0xff]
    %v2388 = vld [vmem:[%s71 + $0x38] sm:$0xff]
    %v2389 = vld [vmem:[#allocation54] sm:$0x1]
    %v2391 = vlaneseq
    %v2392 = vshrl.u32 %v2391, 7
    %v2393 = vsub.s32 0, %v2392
    %v2394 = vrot.slane %v2389, %v2393
    %v2397 = vsel %vm1010, %v2380, 0
    %2399 = vmatprep.subr.mxu0 0.0
    %2400 = vmatpush1.msra.mxu0 %v2381
    %2401 = vmatprep.subr.mxu0 0.0
    %2402 = vmatpush1.msra.mxu0 %v2382
    %2403 = vmatprep.subr.mxu0 0.0
    %2404 = vmatpush1.msra.mxu0 %v2383
    %2405 = vmatprep.subr.mxu0 0.0
    %2406 = vmatpush1.msra.mxu0 %v2384
    %2407 = vmatprep.subr.mxu0 0.0
    %2408 = vmatpush1.msra.mxu0 %v2385
    %2409 = vmatprep.subr.mxu0 0.0
    %2410 = vmatpush1.msra.mxu0 %v2386
    %2411 = vmatprep.subr.mxu0 0.0
    %2412 = vmatpush1.msra.mxu0 %v2387
    %2413 = vmatprep.subr.mxu0 0.0
    %2414 = vmatpush1.msra.mxu0 %v2388
    %2415 = vmatprep.subr.mxu0 0.0
    %2416 = vmatpush1.msra.mxu0 0.0
    %2417 = vmatprep.subr.mxu0 0.0
    %2418 = vmatpush1.msra.mxu0 0.0
    %2419 = vmatprep.subr.mxu0 0.0
    %2420 = vmatpush1.msra.mxu0 0.0
    %2421 = vmatprep.subr.mxu0 0.0
    %2422 = vmatpush1.msra.mxu0 0.0
    %2423 = vmatprep.subr.mxu0 0.0
    %2424 = vmatpush1.msra.mxu0 0.0
    %2425 = vmatprep.subr.mxu0 0.0
    %2426 = vmatpush1.msra.mxu0 0.0
    %2427 = vmatprep.subr.mxu0 0.0
    %2428 = vmatpush1.msra.mxu0 0.0
    %2429 = vmatprep.subr.mxu0 0.0
    %2430 = vmatpush1.msra.mxu0 0.0
    %2431 = vmatprep.subr.mxu0 0.0
    %2432 = vmatpush1.msra.mxu0 0.0
    %2433 = vmatprep.subr.mxu0 0.0
    %2434 = vmatpush1.msra.mxu0 0.0
    %2435 = vmatprep.subr.mxu0 0.0
    %2436 = vmatpush1.msra.mxu0 0.0
    %2437 = vmatprep.subr.mxu0 0.0
    %2438 = vmatpush1.msra.mxu0 0.0
    %2439 = vmatprep.subr.mxu0 0.0
    %2440 = vmatpush1.msra.mxu0 0.0
    %2441 = vmatprep.subr.mxu0 0.0
    %2442 = vmatpush1.msra.mxu0 0.0
    %2443 = vmatprep.subr.mxu0 0.0
    %2444 = vmatpush1.msra.mxu0 0.0
    %2445 = vmatprep.subr.mxu0 0.0
    %2446 = vmatpush1.msra.mxu0 0.0
    %2447 = vmatprep.subr.mxu0 0.0
    %2448 = vmatpush1.msra.mxu0 0.0
    %2449 = vmatprep.subr.mxu0 0.0
    %2450 = vmatpush1.msra.mxu0 0.0
    %2451 = vmatprep.subr.mxu0 0.0
    %2452 = vmatpush1.msra.mxu0 0.0
    %2453 = vmatprep.subr.mxu0 0.0
    %2454 = vmatpush1.msra.mxu0 0.0
    %2455 = vmatprep.subr.mxu0 0.0
    %2456 = vmatpush1.msra.mxu0 0.0
    %2457 = vmatprep.subr.mxu0 0.0
    %2458 = vmatpush1.msra.mxu0 0.0
    %2459 = vmatprep.subr.mxu0 0.0
    %2460 = vmatpush1.msra.mxu0 0.0
    %2461 = vmatprep.subr.mxu0 0.0
    %2462 = vmatpush1.msra.mxu0 0.0
    %2463 = vmatprep.mubr.f32.mxu0 0.0
    %2464 = vmatmul.mubr.f32.gmra.mrb[0].mxu0 %v2397
    %v2465 = vpop.f32.mrb[0].mxu0
    %v2466 = vadd.f32 %v2394, %v2465
    %v2467 = vpop.f32.mrb[0].mxu0
    %2468 = vdwg.mxu0
    %v2469 = vadd.f32 %v2295, %v2466
    %v2470 = vxor.u32 %v2469, 2147483648
    %v2471 = vmul.f32 %v2470, 1.442695
    %v2472 = vpow.pop %v2471
    %v2473 = vadd.f32 %v2472, 1.0
    %v2474 = vrcp.pop %v2473
    %v2475 = vmul.f32 1.0, %v2474
    %v2476 = vmul.f32 %v2469, %v2475
    %v2477 = vld [vmem:[%s75] sm:$0xff]
    %v2478 = vld [vmem:[%s75 + $0x8] sm:$0xff]
    %v2479 = vld [vmem:[%s75 + $0x10] sm:$0xff]
    %v2480 = vld [vmem:[%s75 + $0x18] sm:$0xff]
    %v2481 = vld [vmem:[%s77] sm:$0x1]
    %v2483 = vlaneseq
    %v2484 = vshrl.u32 %v2483, 7
    %v2485 = vsub.s32 0, %v2484
    %v2486 = vrot.slane %v2481, %v2485
    %v2489 = vsel %vm1103, %v2476, 0
    %2491 = vmatprep.subr.mxu0 0.0
    %2492 = vmatpush1.msra.mxu0 %v2477
    %2493 = vmatprep.subr.mxu0 0.0
    %2494 = vmatpush1.msra.mxu0 %v2478
    %2495 = vmatprep.subr.mxu0 0.0
    %2496 = vmatpush1.msra.mxu0 %v2479
    %2497 = vmatprep.subr.mxu0 0.0
    %2498 = vmatpush1.msra.mxu0 %v2480
    %2499 = vmatprep.subr.mxu0 0.0
    %2500 = vmatpush1.msra.mxu0 0.0
    %2501 = vmatprep.subr.mxu0 0.0
    %2502 = vmatpush1.msra.mxu0 0.0
    %2503 = vmatprep.subr.mxu0 0.0
    %2504 = vmatpush1.msra.mxu0 0.0
    %2505 = vmatprep.subr.mxu0 0.0
    %2506 = vmatpush1.msra.mxu0 0.0
    %2507 = vmatprep.subr.mxu0 0.0
    %2508 = vmatpush1.msra.mxu0 0.0
    %2509 = vmatprep.subr.mxu0 0.0
    %2510 = vmatpush1.msra.mxu0 0.0
    %2511 = vmatprep.subr.mxu0 0.0
    %2512 = vmatpush1.msra.mxu0 0.0
    %2513 = vmatprep.subr.mxu0 0.0
    %2514 = vmatpush1.msra.mxu0 0.0
    %2515 = vmatprep.subr.mxu0 0.0
    %2516 = vmatpush1.msra.mxu0 0.0
    %2517 = vmatprep.subr.mxu0 0.0
    %2518 = vmatpush1.msra.mxu0 0.0
    %2519 = vmatprep.subr.mxu0 0.0
    %2520 = vmatpush1.msra.mxu0 0.0
    %2521 = vmatprep.subr.mxu0 0.0
    %2522 = vmatpush1.msra.mxu0 0.0
    %2523 = vmatprep.subr.mxu0 0.0
    %2524 = vmatpush1.msra.mxu0 0.0
    %2525 = vmatprep.subr.mxu0 0.0
    %2526 = vmatpush1.msra.mxu0 0.0
    %2527 = vmatprep.subr.mxu0 0.0
    %2528 = vmatpush1.msra.mxu0 0.0
    %2529 = vmatprep.subr.mxu0 0.0
    %2530 = vmatpush1.msra.mxu0 0.0
    %2531 = vmatprep.subr.mxu0 0.0
    %2532 = vmatpush1.msra.mxu0 0.0
    %2533 = vmatprep.subr.mxu0 0.0
    %2534 = vmatpush1.msra.mxu0 0.0
    %2535 = vmatprep.subr.mxu0 0.0
    %2536 = vmatpush1.msra.mxu0 0.0
    %2537 = vmatprep.subr.mxu0 0.0
    %2538 = vmatpush1.msra.mxu0 0.0
    %2539 = vmatprep.subr.mxu0 0.0
    %2540 = vmatpush1.msra.mxu0 0.0
    %2541 = vmatprep.subr.mxu0 0.0
    %2542 = vmatpush1.msra.mxu0 0.0
    %2543 = vmatprep.subr.mxu0 0.0
    %2544 = vmatpush1.msra.mxu0 0.0
    %2545 = vmatprep.subr.mxu0 0.0
    %2546 = vmatpush1.msra.mxu0 0.0
    %2547 = vmatprep.subr.mxu0 0.0
    %2548 = vmatpush1.msra.mxu0 0.0
    %2549 = vmatprep.subr.mxu0 0.0
    %2550 = vmatpush1.msra.mxu0 0.0
    %2551 = vmatprep.subr.mxu0 0.0
    %2552 = vmatpush1.msra.mxu0 0.0
    %2553 = vmatprep.subr.mxu0 0.0
    %2554 = vmatpush1.msra.mxu0 0.0
    %2555 = vmatprep.mubr.f32.mxu0 0.0
    %2556 = vmatmul.mubr.f32.gmra.mrb[0].mxu0 %v2489
    %v2557 = vpop.f32.mrb[0].mxu0
    %v2558 = vadd.f32 %v2486, %v2557
    %v2559 = vpop.f32.mrb[0].mxu0
    %2560 = vdwg.mxu0
    %v2561 = vsel %vm1177, %v2558, 0.0
    %2562 = vadd.xlane.f32.xlu0 %v2561
    %v2563 = vpop.xlane.xlu0 %2562
    %v2564 = vmul.f32 %v2563, %v1181
    %v2565 = vsub.f32 %v2558, %v2564
    %v2566 = vmul.f32 %v2565, %v2565
    %v2567 = vsel %vm1177, %v2566, 0.0
    %2568 = vadd.xlane.f32.xlu0 %v2567
    %v2569 = vpop.xlane.xlu0 %2568
    %v2570 = vmul.f32 %v2569, %v1181
    %v2571 = vadd.f32 %v2570, 1e-05
    %v2572 = vrsqrt.pop %v2571
    %v2573 = vmul.f32 %v2565, %v2572
    %v2574 = vmul.f32 %v2573, 0.2
    %v2575 = vmax.f32 %v2573, %v2574
    %v2576 = vld [vmem:[%s79] sm:$0xff]
    %v2577 = vld [vmem:[%s79 + $0x8] sm:$0xff]
    %v2578 = vld [vmem:[%s79 + $0x10] sm:$0xff]
    %v2579 = vld [vmem:[%s79 + $0x18] sm:$0xff]
    %v2580 = vld [vmem:[%s79 + $0x20] sm:$0xff]
    %v2581 = vld [vmem:[%s79 + $0x28] sm:$0xff]
    %v2582 = vld [vmem:[%s79 + $0x30] sm:$0xff]
    %v2583 = vld [vmem:[%s79 + $0x38] sm:$0xff]
    %v2584 = vld [vmem:[%s81] sm:$0x1]
    %v2586 = vlaneseq
    %v2587 = vshrl.u32 %v2586, 7
    %v2588 = vsub.s32 0, %v2587
    %v2589 = vrot.slane %v2584, %v2588
    %v2592 = vsel %vm1010, %v2575, 0
    %2594 = vmatprep.subr.mxu0 0.0
    %2595 = vmatpush1.msra.mxu0 %v2576
    %2596 = vmatprep.subr.mxu0 0.0
    %2597 = vmatpush1.msra.mxu0 %v2577
    %2598 = vmatprep.subr.mxu0 0.0
    %2599 = vmatpush1.msra.mxu0 %v2578
    %2600 = vmatprep.subr.mxu0 0.0
    %2601 = vmatpush1.msra.mxu0 %v2579
    %2602 = vmatprep.subr.mxu0 0.0
    %2603 = vmatpush1.msra.mxu0 %v2580
    %2604 = vmatprep.subr.mxu0 0.0
    %2605 = vmatpush1.msra.mxu0 %v2581
    %2606 = vmatprep.subr.mxu0 0.0
    %2607 = vmatpush1.msra.mxu0 %v2582
    %2608 = vmatprep.subr.mxu0 0.0
    %2609 = vmatpush1.msra.mxu0 %v2583
    %2610 = vmatprep.subr.mxu0 0.0
    %2611 = vmatpush1.msra.mxu0 0.0
    %2612 = vmatprep.subr.mxu0 0.0
    %2613 = vmatpush1.msra.mxu0 0.0
    %2614 = vmatprep.subr.mxu0 0.0
    %2615 = vmatpush1.msra.mxu0 0.0
    %2616 = vmatprep.subr.mxu0 0.0
    %2617 = vmatpush1.msra.mxu0 0.0
    %2618 = vmatprep.subr.mxu0 0.0
    %2619 = vmatpush1.msra.mxu0 0.0
    %2620 = vmatprep.subr.mxu0 0.0
    %2621 = vmatpush1.msra.mxu0 0.0
    %2622 = vmatprep.subr.mxu0 0.0
    %2623 = vmatpush1.msra.mxu0 0.0
    %2624 = vmatprep.subr.mxu0 0.0
    %2625 = vmatpush1.msra.mxu0 0.0
    %2626 = vmatprep.subr.mxu0 0.0
    %2627 = vmatpush1.msra.mxu0 0.0
    %2628 = vmatprep.subr.mxu0 0.0
    %2629 = vmatpush1.msra.mxu0 0.0
    %2630 = vmatprep.subr.mxu0 0.0
    %2631 = vmatpush1.msra.mxu0 0.0
    %2632 = vmatprep.subr.mxu0 0.0
    %2633 = vmatpush1.msra.mxu0 0.0
    %2634 = vmatprep.subr.mxu0 0.0
    %2635 = vmatpush1.msra.mxu0 0.0
    %2636 = vmatprep.subr.mxu0 0.0
    %2637 = vmatpush1.msra.mxu0 0.0
    %2638 = vmatprep.subr.mxu0 0.0
    %2639 = vmatpush1.msra.mxu0 0.0
    %2640 = vmatprep.subr.mxu0 0.0
    %2641 = vmatpush1.msra.mxu0 0.0
    %2642 = vmatprep.subr.mxu0 0.0
    %2643 = vmatpush1.msra.mxu0 0.0
    %2644 = vmatprep.subr.mxu0 0.0
    %2645 = vmatpush1.msra.mxu0 0.0
    %2646 = vmatprep.subr.mxu0 0.0
    %2647 = vmatpush1.msra.mxu0 0.0
    %2648 = vmatprep.subr.mxu0 0.0
    %2649 = vmatpush1.msra.mxu0 0.0
    %2650 = vmatprep.subr.mxu0 0.0
    %2651 = vmatpush1.msra.mxu0 0.0
    %2652 = vmatprep.subr.mxu0 0.0
    %2653 = vmatpush1.msra.mxu0 0.0
    %2654 = vmatprep.subr.mxu0 0.0
    %2655 = vmatpush1.msra.mxu0 0.0
    %2656 = vmatprep.subr.mxu0 0.0
    %2657 = vmatpush1.msra.mxu0 0.0
    %2658 = vmatprep.mubr.f32.mxu0 0.0
    %2659 = vmatmul.mubr.f32.gmra.mrb[0].mxu0 %v2592
    %v2660 = vpop.f32.mrb[0].mxu0
    %v2661 = vadd.f32 %v2589, %v2660
    %v2662 = vpop.f32.mrb[0].mxu0
    %2663 = vdwg.mxu0
    %v2664 = vsel %vm889, %v2661, 0.0
    %2665 = vadd.xlane.f32.xlu0 %v2664
    %v2666 = vpop.xlane.xlu0 %2665
    %v2667 = vmul.f32 %v2666, %v893
    %v2668 = vsub.f32 %v2661, %v2667
    %v2669 = vmul.f32 %v2668, %v2668
    %v2670 = vsel %vm889, %v2669, 0.0
    %2671 = vadd.xlane.f32.xlu0 %v2670
    %v2672 = vpop.xlane.xlu0 %2671
    %v2673 = vmul.f32 %v2672, %v893
    %v2674 = vadd.f32 %v2673, 1e-05
    %v2675 = vrsqrt.pop %v2674
    %v2676 = vmul.f32 %v2668, %v2675
    %v2677 = vmul.f32 %v2676, 0.2
    %v2678 = vmax.f32 %v2676, %v2677
    %2679 = vst.msk [vmem:[%s83] sm:$0x3] %vm889, %v2678
    // Predicated region
    $region306: #{fc_forward.1} parent=1 // pred_check
      _
    $region307: #{fc_forward.1} parent=1 // pred_check_branch
      %2681 = sbr.rel (0) target = $region309
    $region308: #{fc_forward.1} parent=1 // pred_region
      _
    $region309: #{fc_forward.1} parent=1 // pred_fallthru
      _
    // Predicated region
    $region310: #{fc_forward.1} parent=1 // pred_check
      _
    $region311: #{fc_forward.1} parent=1 // pred_check_branch
      %2683 = sbr.rel (0) target = $region313
    $region312: #{fc_forward.1} parent=1 // pred_region
      _
    $region313: #{fc_forward.1} parent=1 // pred_fallthru
      _
    %2684 = vsyncpa [#allocation3], 1
    %2685 = vsyncpa [#allocation7], 1
    %2686 = vsyncpa [#allocation10], 1
    %2687 = vsyncpa [#allocation13], 1
    %2688 = vsyncpa [#allocation16], 1
    %2689 = vsyncpa [#allocation19], 1
    %2690 = vsyncpa [#allocation22], 1
    %2691 = vsyncpa [#allocation25], 1
    %2692 = vsyncpa [#allocation28], 1
    %2693 = vsyncpa [#allocation31], 1
    %2694 = vsyncpa [#allocation34], 1
    %2695 = vsyncpa [#allocation37], 1
    %2696 = vsyncpa [#allocation40], 1
    %2697 = vsyncpa [#allocation43], 1
    %2698 = vsyncpa [#allocation46], 1
    %2699 = vsyncpa [#allocation49], 1
    %2700 = vsyncpa [#allocation52], 1
    %2701 = vsyncpa [#allocation55], 1
    %2702 = vsyncpa [#allocation4], 1

</llo_original>
